<compile_context>
chip_gen: v7x
topology: tpu7x:2x2x1
jax: 0.10.0
libtpu: 0.0.40
codegen_flags: <defaults>
</compile_context>

<pallas_src>
import functools
import math

import jax
import jax.numpy as jnp
from jax.experimental import pallas as pl
from jax.experimental.pallas import tpu as pltpu

# ----------------------------- small BERT config -----------------------------
HIDDEN = 32
NUM_HEADS = 4
HEAD_DIM = HIDDEN // NUM_HEADS
INTERMEDIATE = 4 * HIDDEN            # 128
NUM_LAYERS = 2
VOCAB = 50
MAX_POS = 64
TYPE_VOCAB = 2
LN_EPS = 1e-12
SEQ = 8
BATCH = 2

# --------------------------- packed-slab layout -------------------------------
# w_h slab: every weight whose *input* dim is HIDDEN, 128-lane aligned. (HIDDEN, 1152)
W_H_TIME_W1 = 0                                        # time_w1 (H, 4H)
W_H_LAYER = 128                                        # per-layer block start
W_H_LAYER_STR = 384                                    # [wqkv(128) | wo(128) | wi(128)]
W_H_WQKV_REL = 0
W_H_WO_REL = 128
W_H_WI_REL = 256
W_H_CLS = W_H_LAYER + NUM_LAYERS * W_H_LAYER_STR       # 896
W_H_DEC = W_H_CLS + 128                                # 1024
W_H_COLS = W_H_DEC + 128                               # 1152

# w_4h slab: every weight whose input dim is 4H/INTERMEDIATE, row-stacked. (384, HIDDEN)
W4_TIME_W2 = 0
W4_WO2 = INTERMEDIATE                                  # + layer * INTERMEDIATE

# vec slab: every 1-D gamma/beta/bias as a 128-lane row. (32, 128)
R_EMB_LN_G, R_EMB_LN_B = 0, 1
R_POST_LN_G, R_POST_LN_B = 2, 3
R_TIME_B1, R_TIME_B2 = 4, 5
R_LAYER = 6          # 8 rows / layer: bqkv, bo, ln1_g, ln1_b, bi, bo2, ln2_g, ln2_b
R_CLS_B = R_LAYER + NUM_LAYERS * 8                     # 22
R_CLS_LN_G = R_CLS_B + 1
R_CLS_LN_B = R_CLS_B + 2
R_DEC_B = R_CLS_B + 3
VEC_ROWS = 32

# emb slab: padded word table + precombined (pos + token_type) rows. (120, HIDDEN)
WORD_ROWS = 56                                         # VOCAB padded to sublane multiple
EMB_ROWS = WORD_ROWS + MAX_POS                         # 120

# single lane-dense packed output: [ logits(64) | sequence_output(32) | embeds(32) ]
DEC_PAD = 64
SEQ_COL = 64
EMB_COL = 96
OUT_COLS = 128


# ------------------------------ fused Pallas kernel ---------------------------
def _fused_forward_kernel(ids_ref, te_ref, emb_ref, vec_ref, wh_ref, w4_ref, out_ref,
                          *, batch, seq, num_heads, head_dim, num_layers, eps):
    B, S = batch, seq
    N = B * S
    H = num_heads * head_dim
    HD = head_dim
    H4 = INTERMEDIATE

    vec = vec_ref[...]                                   # (32, 128): all biases/LN params

    def vrow(r, width):                                  # (1, width) broadcast row
        return vec[r:r + 1, :width]

    def layernorm(h, g, b):
        mu = jnp.mean(h, axis=-1, keepdims=True)
        var = jnp.mean(jnp.square(h - mu), axis=-1, keepdims=True)
        return (h - mu) * jax.lax.rsqrt(var + eps) * g + b

    def gelu(x):
        # TODO(synk): tanh-approx GELU (Mosaic erf lowering not guaranteed);
        #             max |err| ~3e-4 vs HF BERT's exact-erf "gelu".
        c = math.sqrt(2.0 / math.pi)
        return 0.5 * x * (1.0 + jnp.tanh(c * (x + 0.044715 * x * x * x)))

    # --- BertEmbeddings: in-kernel gather (one-hot matmul) + LayerNorm ---
    ids = ids_ref[...]                                                  # (N, 1) int32
    vocab_iota = jax.lax.broadcasted_iota(jnp.int32, (N, WORD_ROWS), 1)
    onehot = (vocab_iota == ids).astype(jnp.float32)                    # (N, 56)
    word = jnp.dot(onehot, emb_ref[0:WORD_ROWS, :],
                   preferred_element_type=jnp.float32)                  # (N, H)
    pos_type = emb_ref[WORD_ROWS:WORD_ROWS + S, :]                      # (S, H) pos + type
    pos_rows = jnp.concatenate([pos_type] * B, axis=0)                  # (N, H)
    token_embed = layernorm(word + pos_rows,
                            vrow(R_EMB_LN_G, H), vrow(R_EMB_LN_B, H))

    # --- time_embed MLP: Linear(H,4H) -> SiLU -> Linear(4H,H), broadcast over seq ---
    te = te_ref[...]                                                    # (B, H) sinusoid
    t = jnp.dot(te, wh_ref[:, W_H_TIME_W1:W_H_TIME_W1 + H4],
                preferred_element_type=jnp.float32) + vrow(R_TIME_B1, H4)
    t = t * jax.nn.sigmoid(t)                                           # SiLU
    t = jnp.dot(t, w4_ref[W4_TIME_W2:W4_TIME_W2 + H4, :],
                preferred_element_type=jnp.float32) + vrow(R_TIME_B2, H)
    time_rows = jnp.concatenate(
        [jnp.broadcast_to(t[b:b + 1, :], (S, H)) for b in range(B)], axis=0)

    # embed = dropout(LayerNorm(token_embed + time_embed)); dropout p = 0.
    x = layernorm(token_embed + time_rows,
                  vrow(R_POST_LN_G, H), vrow(R_POST_LN_B, H))

    # --- BertEncoder: post-LN layers, all weights resident in VMEM ---
    scale = 1.0 / math.sqrt(HD)
    for li in range(num_layers):
        wbase = W_H_LAYER + li * W_H_LAYER_STR
        rbase = R_LAYER + li * 8

        # fused Q/K/V projection: one (N, H) @ (H, 3H) matmul
        qkv = jnp.dot(x, wh_ref[:, wbase + W_H_WQKV_REL:wbase + W_H_WQKV_REL + 3 * H],
                      preferred_element_type=jnp.float32) + vrow(rbase + 0, 3 * H)

        # head-batched attention: fold (head, batch) into one leading batch axis,
        # so each layer is 2 batched matmul issues instead of 8.
        q = jnp.concatenate(
            [qkv[:, h * HD:(h + 1) * HD].reshape(B, S, HD) for h in range(num_heads)], axis=0)
        k = jnp.concatenate(
            [qkv[:, H + h * HD:H + (h + 1) * HD].reshape(B, S, HD) for h in range(num_heads)], axis=0)
        v = jnp.concatenate(
            [qkv[:, 2 * H + h * HD:2 * H + (h + 1) * HD].reshape(B, S, HD) for h in range(num_heads)], axis=0)

        s = jnp.einsum("bqd,bkd->bqk", q, k,
                       preferred_element_type=jnp.float32) * scale      # (NH*B, S, S)
        s = s - jnp.max(s, axis=-1, keepdims=True)
        p = jnp.exp(s)
        p = p / jnp.sum(p, axis=-1, keepdims=True)                      # exact softmax
        ctx = jnp.einsum("bqk,bkd->bqd", p, v,
                         preferred_element_type=jnp.float32)            # (NH*B, S, HD)
        ctx = jnp.concatenate(
            [ctx[h * B:(h + 1) * B].reshape(N, HD) for h in range(num_heads)], axis=-1)

        attn = jnp.dot(ctx, wh_ref[:, wbase + W_H_WO_REL:wbase + W_H_WO_REL + H],
                       preferred_element_type=jnp.float32) + vrow(rbase + 1, H)
        x = layernorm(attn + x, vrow(rbase + 2, H), vrow(rbase + 3, H))

        inter = jnp.dot(x, wh_ref[:, wbase + W_H_WI_REL:wbase + W_H_WI_REL + H4],
                        preferred_element_type=jnp.float32) + vrow(rbase + 4, H4)
        inter = gelu(inter)
        ff = jnp.dot(inter, w4_ref[W4_WO2 + li * H4:W4_WO2 + (li + 1) * H4, :],
                     preferred_element_type=jnp.float32) + vrow(rbase + 5, H)
        x = layernorm(ff + x, vrow(rbase + 6, H), vrow(rbase + 7, H))

    # --- BertOnlyMLMHead: Linear + GELU + LayerNorm + decoder (64-lane padded) ---
    h0 = jnp.dot(x, wh_ref[:, W_H_CLS:W_H_CLS + H],
                 preferred_element_type=jnp.float32) + vrow(R_CLS_B, H)
    h0 = layernorm(gelu(h0), vrow(R_CLS_LN_G, H), vrow(R_CLS_LN_B, H))
    logits = jnp.dot(h0, wh_ref[:, W_H_DEC:W_H_DEC + DEC_PAD],
                     preferred_element_type=jnp.float32) + vrow(R_DEC_B, DEC_PAD)

    # one lane-dense (N, 128) store: [logits | sequence_output | embeds]
    out_ref[...] = jnp.concatenate([logits, x, token_embed], axis=-1).astype(out_ref.dtype)


# ------------------------------ parameter setup -------------------------------
def init_params(key):
    """Raw parameters mirroring the PyTorch module layout."""
    def nrm(k, shape, scale=0.02):
        return scale * jax.random.normal(k, shape, dtype=jnp.float32)

    keys = iter(jax.random.split(key, 64))
    p = {
        "word_emb": nrm(next(keys), (VOCAB, HIDDEN)),
        "pos_emb": nrm(next(keys), (MAX_POS, HIDDEN)),
        "type_emb": nrm(next(keys), (TYPE_VOCAB, HIDDEN)),
        "emb_ln_g": jnp.ones((HIDDEN,), jnp.float32),
        "emb_ln_b": jnp.zeros((HIDDEN,), jnp.float32),
        # time_embed = Linear(H,4H) -> SiLU -> Linear(4H,H)
        "time_w1": nrm(next(keys), (HIDDEN, INTERMEDIATE)),
        "time_b1": jnp.zeros((INTERMEDIATE,), jnp.float32),
        "time_w2": nrm(next(keys), (INTERMEDIATE, HIDDEN)),
        "time_b2": jnp.zeros((HIDDEN,), jnp.float32),
        # self.LayerNorm applied to token_embed + time_embed
        "post_ln_g": jnp.ones((HIDDEN,), jnp.float32),
        "post_ln_b": jnp.zeros((HIDDEN,), jnp.float32),
        # BertOnlyMLMHead: transform (Linear+gelu+LN) + decoder (Linear to vocab)
        "cls_w": nrm(next(keys), (HIDDEN, HIDDEN)),
        "cls_b": jnp.zeros((HIDDEN,), jnp.float32),
        "cls_ln_g": jnp.ones((HIDDEN,), jnp.float32),
        "cls_ln_b": jnp.zeros((HIDDEN,), jnp.float32),
        "dec_w": nrm(next(keys), (HIDDEN, VOCAB)),
        "dec_b": jnp.zeros((VOCAB,), jnp.float32),
    }
    layers = []
    for _ in range(NUM_LAYERS):
        layers.append({
            "wq": nrm(next(keys), (HIDDEN, HIDDEN)), "bq": jnp.zeros((HIDDEN,), jnp.float32),
            "wk": nrm(next(keys), (HIDDEN, HIDDEN)), "bk": jnp.zeros((HIDDEN,), jnp.float32),
            "wv": nrm(next(keys), (HIDDEN, HIDDEN)), "bv": jnp.zeros((HIDDEN,), jnp.float32),
            "wo": nrm(next(keys), (HIDDEN, HIDDEN)), "bo": jnp.zeros((HIDDEN,), jnp.float32),
            "ln1_g": jnp.ones((HIDDEN,), jnp.float32), "ln1_b": jnp.zeros((HIDDEN,), jnp.float32),
            "wi": nrm(next(keys), (HIDDEN, INTERMEDIATE)), "bi": jnp.zeros((INTERMEDIATE,), jnp.float32),
            "wo2": nrm(next(keys), (INTERMEDIATE, HIDDEN)), "bo2": jnp.zeros((HIDDEN,), jnp.float32),
            "ln2_g": jnp.ones((HIDDEN,), jnp.float32), "ln2_b": jnp.zeros((HIDDEN,), jnp.float32),
        })
    p["layers"] = layers
    return p


def pack_params(p):
    """One-time repack into 4 VMEM slabs so the kernel prologue is 4 param DMAs."""
    L = p["layers"]

    def pad_cols(w, width):
        return jnp.pad(w, ((0, 0), (0, width - w.shape[1])))

    # (HIDDEN, 1152): time_w1 | per-layer [wqkv|wo|wi] | cls_w | dec_w, 128-lane aligned
    blocks = [pad_cols(p["time_w1"], 128)]
    for l in L:
        wqkv = jnp.concatenate([l["wq"], l["wk"], l["wv"]], axis=1)      # (H, 3H)
        blocks += [pad_cols(wqkv, 128), pad_cols(l["wo"], 128), pad_cols(l["wi"], 128)]
    blocks += [pad_cols(p["cls_w"], 128), pad_cols(p["dec_w"], 128)]
    w_h = jnp.concatenate(blocks, axis=1)
    assert w_h.shape == (HIDDEN, W_H_COLS)

    # (384, HIDDEN): time_w2 | wo2 layer0 | wo2 layer1 (row-stacked, sublane aligned)
    w_4h = jnp.concatenate([p["time_w2"]] + [l["wo2"] for l in L], axis=0)

    # (32, 128): every 1-D gamma/beta/bias as one lane-padded row
    def row(v):
        v = v.reshape(1, -1)
        return jnp.pad(v, ((0, 0), (0, 128 - v.shape[1])))

    rows = [row(p["emb_ln_g"]), row(p["emb_ln_b"]),
            row(p["post_ln_g"]), row(p["post_ln_b"]),
            row(p["time_b1"]), row(p["time_b2"])]
    for l in L:
        rows += [row(jnp.concatenate([l["bq"], l["bk"], l["bv"]])),
                 row(l["bo"]), row(l["ln1_g"]), row(l["ln1_b"]),
                 row(l["bi"]), row(l["bo2"]), row(l["ln2_g"]), row(l["ln2_b"])]
    rows += [row(p["cls_b"]), row(p["cls_ln_g"]), row(p["cls_ln_b"]), row(p["dec_b"])]
    rows.append(jnp.zeros((VEC_ROWS - len(rows), 128), jnp.float32))
    vec = jnp.concatenate(rows, axis=0)
    assert vec.shape == (VEC_ROWS, 128)

    # (120, HIDDEN): padded word table + (pos_emb + token_type_emb[0]) rows
    word = jnp.pad(p["word_emb"], ((0, WORD_ROWS - VOCAB), (0, 0)))
    pos_type = p["pos_emb"] + p["type_emb"][0][None, :]
    emb = jnp.concatenate([word, pos_type], axis=0)
    assert emb.shape == (EMB_ROWS, HIDDEN)

    return {"w_h": w_h, "w_4h": w_4h, "vec": vec, "emb": emb}


# ------------------------------- model forward --------------------------------
def timestep_embedding(timesteps, dim, max_period=10000):
    # Kept in the JAX wrapper (fuses into one tiny XLA op): Mosaic has no
    # guaranteed sin/cos lowering.
    # TODO(synk): move in-kernel once sin/cos are in the Mosaic elementwise set.
    half = dim // 2
    freqs = jnp.exp(-math.log(max_period) * jnp.arange(half, dtype=jnp.float32) / half)
    args = timesteps.astype(jnp.float32)[:, None] * freqs[None, :]
    emb = jnp.concatenate([jnp.cos(args), jnp.sin(args)], axis=-1)
    if dim % 2:
        emb = jnp.concatenate([emb, jnp.zeros_like(emb[:, :1])], axis=-1)
    return emb


def _full_spec(shape):
    zeros = (0,) * len(shape)
    return pl.BlockSpec(shape, lambda i, _z=zeros: _z)


def forward(pp, corrupted_ids, timesteps, attn_mask=None, token_embed=None):
    # attn_mask is routed as encoder_attention_mask in the reference, which HF
    # ignores for pure self-attention (no cross-attention) -> unused.
    del attn_mask
    # TODO(synk): external token_embed override is not supported by the fused kernel.
    assert token_embed is None, "token_embed override not supported in fused kernel"

    B, S = corrupted_ids.shape
    N = B * S

    ids_col = corrupted_ids.reshape(N, 1).astype(jnp.int32)
    te = timestep_embedding(timesteps, HIDDEN)                           # (B, HIDDEN)

    inputs = (ids_col, te, pp["emb"], pp["vec"], pp["w_h"], pp["w_4h"])

    kernel = functools.partial(
        _fused_forward_kernel, batch=B, seq=S, num_heads=NUM_HEADS,
        head_dim=HEAD_DIM, num_layers=NUM_LAYERS, eps=LN_EPS)

    packed = pl.pallas_call(
        kernel,
        out_shape=jax.ShapeDtypeStruct((N, OUT_COLS), jnp.float32),
        grid=(1,),
        in_specs=[_full_spec(a.shape) for a in inputs],
        out_specs=_full_spec((N, OUT_COLS)),
        compiler_params=pltpu.CompilerParams(dimension_semantics=("arbitrary",)),
    )(*inputs)

    return {
        "logits": packed[:, :VOCAB].reshape(B, S, VOCAB),
        "sequence_output": packed[:, SEQ_COL:SEQ_COL + HIDDEN].reshape(B, S, HIDDEN),
        "embeds": packed[:, EMB_COL:EMB_COL + HIDDEN].reshape(B, S, HIDDEN),
    }


# ------------------------------------ main -------------------------------------
if __name__ == "__main__":
    key = jax.random.PRNGKey(0)
    k_param, k_ids, k_t = jax.random.split(key, 3)

    params = pack_params(init_params(k_param))
    corrupted_ids = jax.random.randint(k_ids, (BATCH, SEQ), 0, VOCAB, dtype=jnp.int32)
    timesteps = jax.random.randint(k_t, (BATCH,), 0, 1000, dtype=jnp.int32)

    fwd = jax.jit(forward)
    out = fwd(params, corrupted_ids, timesteps)
    jax.block_until_ready(out)

    assert out["logits"].shape == (BATCH, SEQ, VOCAB)
    assert out["sequence_output"].shape == (BATCH, SEQ, HIDDEN)
    assert out["embeds"].shape == (BATCH, SEQ, HIDDEN)
    assert bool(jnp.all(jnp.isfinite(out["logits"])))
    print("KERNEL_OK")
</pallas_src>

<mosaic_0001>
module attributes {stable_mosaic.version = 11 : i64} {
  func.func @_fused_forward_kernel(%arg0: i32, %arg1: memref<16x1xi32, #tpu.memory_space<vmem>>, %arg2: memref<2x32xf32, #tpu.memory_space<vmem>>, %arg3: memref<120x32xf32, #tpu.memory_space<vmem>>, %arg4: memref<32x128xf32, #tpu.memory_space<vmem>>, %arg5: memref<32x1152xf32, #tpu.memory_space<vmem>>, %arg6: memref<384x32xf32, #tpu.memory_space<vmem>>, %arg7: memref<16x128xf32, #tpu.memory_space<vmem>>) attributes {dimension_semantics = [#tpu.dimension_semantics<arbitrary>], iteration_bounds = array<i64: 1>, scalar_prefetch = 0 : i64, scratch_operands = 0 : i64, tpu.core_type = #tpu.core_type<tc>, window_params = [{pipeline_mode = #tpu.pipeline_mode<synchronous>, transform_indices = @transform_0, window_bounds = array<i64: 16, 1>}, {pipeline_mode = #tpu.pipeline_mode<synchronous>, transform_indices = @transform_1, window_bounds = array<i64: 2, 32>}, {pipeline_mode = #tpu.pipeline_mode<synchronous>, transform_indices = @transform_2, window_bounds = array<i64: 120, 32>}, {pipeline_mode = #tpu.pipeline_mode<synchronous>, transform_indices = @transform_3, window_bounds = array<i64: 32, 128>}, {pipeline_mode = #tpu.pipeline_mode<synchronous>, transform_indices = @transform_4, window_bounds = array<i64: 32, 1152>}, {pipeline_mode = #tpu.pipeline_mode<synchronous>, transform_indices = @transform_5, window_bounds = array<i64: 384, 32>}, {pipeline_mode = #tpu.pipeline_mode<synchronous>, transform_indices = @transform_6, window_bounds = array<i64: 16, 128>}]} {
    %c0 = arith.constant 0 : index
    %c0_0 = arith.constant 0 : index
    %0 = vector.load %arg4[%c0, %c0_0] : memref<32x128xf32, #tpu.memory_space<vmem>>, vector<32x128xf32>
    %c0_1 = arith.constant 0 : index
    %c0_2 = arith.constant 0 : index
    %1 = vector.load %arg1[%c0_1, %c0_2] : memref<16x1xi32, #tpu.memory_space<vmem>>, vector<16x1xi32>
    %2 = tpu.iota {dimensions = array<i32: 1>} : vector<16x56xi32>
    %3 = vector.broadcast %1 : vector<16x1xi32> to vector<16x56xi32>
    %4 = arith.cmpi eq, %2, %3 : vector<16x56xi32>
    %5 = arith.extui %4 : vector<16x56xi1> to vector<16x56xi32>
    %6 = arith.sitofp %5 : vector<16x56xi32> to vector<16x56xf32>
    %c0_3 = arith.constant 0 : index
    %c0_4 = arith.constant 0 : index
    %7 = vector.load %arg3[%c0_3, %c0_4] : memref<120x32xf32, #tpu.memory_space<vmem>>, vector<56x32xf32>
    %cst = arith.constant dense<0.000000e+00> : vector<16x32xf32>
    %8 = tpu.matmul %6, %7, %cst {dimension_numbers = #tpu.dot_dimension_numbers<[1], [0], [0], [1], [0, 0, 1, 1], [], []>} : vector<16x56xf32>, vector<56x32xf32>, vector<16x32xf32> -> vector<16x32xf32>
    %c56 = arith.constant 56 : index
    %c0_5 = arith.constant 0 : index
    %9 = vector.load %arg3[%c56, %c0_5] : memref<120x32xf32, #tpu.memory_space<vmem>>, vector<8x32xf32>
    %10 = tpu.concatenate %9, %9 in 0 : vector<8x32xf32>, vector<8x32xf32> -> vector<16x32xf32>
    %11 = arith.addf %8, %10 : vector<16x32xf32>
    %12 = vector.extract_strided_slice %0 {offsets = [0, 0], sizes = [1, 32], strides = [1, 1]} : vector<32x128xf32> to vector<1x32xf32>
    %13 = vector.extract_strided_slice %0 {offsets = [1, 0], sizes = [1, 32], strides = [1, 1]} : vector<32x128xf32> to vector<1x32xf32>
    %cst_6 = arith.constant dense<0.000000e+00> : vector<16xf32>
    %14 = vector.multi_reduction <add>, %11, %cst_6 [1] : vector<16x32xf32> to vector<16xf32>
    %15 = vector.shape_cast %14 : vector<16xf32> to vector<16x1xf32>
    %cst_7 = arith.constant 3.200000e+01 : f32
    %16 = vector.broadcast %cst_7 : f32 to vector<16x1xf32>
    %17 = arith.divf %15, %16 : vector<16x1xf32>
    %18 = vector.broadcast %17 : vector<16x1xf32> to vector<16x32xf32>
    %19 = arith.subf %11, %18 : vector<16x32xf32>
    %20 = arith.mulf %19, %19 : vector<16x32xf32>
    %cst_8 = arith.constant dense<0.000000e+00> : vector<16xf32>
    %21 = vector.multi_reduction <add>, %20, %cst_8 [1] : vector<16x32xf32> to vector<16xf32>
    %22 = vector.shape_cast %21 : vector<16xf32> to vector<16x1xf32>
    %cst_9 = arith.constant 3.200000e+01 : f32
    %23 = vector.broadcast %cst_9 : f32 to vector<16x1xf32>
    %24 = arith.divf %22, %23 : vector<16x1xf32>
    %25 = vector.broadcast %17 : vector<16x1xf32> to vector<16x32xf32>
    %26 = arith.subf %11, %25 : vector<16x32xf32>
    %cst_10 = arith.constant 9.99999996E-13 : f32
    %27 = vector.broadcast %cst_10 : f32 to vector<16x1xf32>
    %28 = arith.addf %24, %27 : vector<16x1xf32>
    %29 = math.rsqrt %28 : vector<16x1xf32>
    %30 = vector.broadcast %29 : vector<16x1xf32> to vector<16x32xf32>
    %31 = arith.mulf %26, %30 : vector<16x32xf32>
    %32 = vector.broadcast %12 : vector<1x32xf32> to vector<16x32xf32>
    %33 = arith.mulf %31, %32 : vector<16x32xf32>
    %34 = vector.broadcast %13 : vector<1x32xf32> to vector<16x32xf32>
    %35 = arith.addf %33, %34 : vector<16x32xf32>
    %c0_11 = arith.constant 0 : index
    %c0_12 = arith.constant 0 : index
    %36 = vector.load %arg2[%c0_11, %c0_12] : memref<2x32xf32, #tpu.memory_space<vmem>>, vector<2x32xf32>
    %c0_13 = arith.constant 0 : index
    %c0_14 = arith.constant 0 : index
    %37 = vector.load %arg5[%c0_13, %c0_14] : memref<32x1152xf32, #tpu.memory_space<vmem>>, vector<32x128xf32>
    %cst_15 = arith.constant dense<0.000000e+00> : vector<2x128xf32>
    %38 = tpu.matmul %36, %37, %cst_15 {dimension_numbers = #tpu.dot_dimension_numbers<[1], [0], [0], [1], [0, 0, 1, 1], [], []>} : vector<2x32xf32>, vector<32x128xf32>, vector<2x128xf32> -> vector<2x128xf32>
    %39 = vector.extract_strided_slice %0 {offsets = [4, 0], sizes = [1, 128], strides = [1, 1]} : vector<32x128xf32> to vector<1x128xf32>
    %40 = vector.broadcast %39 : vector<1x128xf32> to vector<2x128xf32>
    %41 = arith.addf %38, %40 : vector<2x128xf32>
    %42 = arith.negf %41 : vector<2x128xf32>
    %43 = math.exp %42 : vector<2x128xf32>
    %cst_16 = arith.constant 1.000000e+00 : f32
    %44 = vector.broadcast %cst_16 : f32 to vector<2x128xf32>
    %45 = arith.addf %44, %43 : vector<2x128xf32>
    %46 = arith.divf %44, %45 : vector<2x128xf32>
    %47 = arith.mulf %41, %46 : vector<2x128xf32>
    %c0_17 = arith.constant 0 : index
    %c0_18 = arith.constant 0 : index
    %48 = vector.load %arg6[%c0_17, %c0_18] : memref<384x32xf32, #tpu.memory_space<vmem>>, vector<128x32xf32>
    %cst_19 = arith.constant dense<0.000000e+00> : vector<2x32xf32>
    %49 = tpu.matmul %47, %48, %cst_19 {dimension_numbers = #tpu.dot_dimension_numbers<[1], [0], [0], [1], [0, 0, 1, 1], [], []>} : vector<2x128xf32>, vector<128x32xf32>, vector<2x32xf32> -> vector<2x32xf32>
    %50 = vector.extract_strided_slice %0 {offsets = [5, 0], sizes = [1, 32], strides = [1, 1]} : vector<32x128xf32> to vector<1x32xf32>
    %51 = vector.broadcast %50 : vector<1x32xf32> to vector<2x32xf32>
    %52 = arith.addf %49, %51 : vector<2x32xf32>
    %53 = vector.extract_strided_slice %52 {offsets = [0, 0], sizes = [1, 32], strides = [1, 1]} : vector<2x32xf32> to vector<1x32xf32>
    %54 = vector.shape_cast %53 : vector<1x32xf32> to vector<1x32xf32>
    %55 = vector.broadcast %54 : vector<1x32xf32> to vector<8x32xf32>
    %56 = vector.extract_strided_slice %52 {offsets = [1, 0], sizes = [1, 32], strides = [1, 1]} : vector<2x32xf32> to vector<1x32xf32>
    %57 = vector.shape_cast %56 : vector<1x32xf32> to vector<1x32xf32>
    %58 = vector.broadcast %57 : vector<1x32xf32> to vector<8x32xf32>
    %59 = tpu.concatenate %55, %58 in 0 : vector<8x32xf32>, vector<8x32xf32> -> vector<16x32xf32>
    %60 = arith.addf %35, %59 : vector<16x32xf32>
    %61 = vector.extract_strided_slice %0 {offsets = [2, 0], sizes = [1, 32], strides = [1, 1]} : vector<32x128xf32> to vector<1x32xf32>
    %62 = vector.extract_strided_slice %0 {offsets = [3, 0], sizes = [1, 32], strides = [1, 1]} : vector<32x128xf32> to vector<1x32xf32>
    %cst_20 = arith.constant dense<0.000000e+00> : vector<16xf32>
    %63 = vector.multi_reduction <add>, %60, %cst_20 [1] : vector<16x32xf32> to vector<16xf32>
    %64 = vector.shape_cast %63 : vector<16xf32> to vector<16x1xf32>
    %cst_21 = arith.constant 3.200000e+01 : f32
    %65 = vector.broadcast %cst_21 : f32 to vector<16x1xf32>
    %66 = arith.divf %64, %65 : vector<16x1xf32>
    %67 = vector.broadcast %66 : vector<16x1xf32> to vector<16x32xf32>
    %68 = arith.subf %60, %67 : vector<16x32xf32>
    %69 = arith.mulf %68, %68 : vector<16x32xf32>
    %cst_22 = arith.constant dense<0.000000e+00> : vector<16xf32>
    %70 = vector.multi_reduction <add>, %69, %cst_22 [1] : vector<16x32xf32> to vector<16xf32>
    %71 = vector.shape_cast %70 : vector<16xf32> to vector<16x1xf32>
    %cst_23 = arith.constant 3.200000e+01 : f32
    %72 = vector.broadcast %cst_23 : f32 to vector<16x1xf32>
    %73 = arith.divf %71, %72 : vector<16x1xf32>
    %74 = vector.broadcast %66 : vector<16x1xf32> to vector<16x32xf32>
    %75 = arith.subf %60, %74 : vector<16x32xf32>
    %cst_24 = arith.constant 9.99999996E-13 : f32
    %76 = vector.broadcast %cst_24 : f32 to vector<16x1xf32>
    %77 = arith.addf %73, %76 : vector<16x1xf32>
    %78 = math.rsqrt %77 : vector<16x1xf32>
    %79 = vector.broadcast %78 : vector<16x1xf32> to vector<16x32xf32>
    %80 = arith.mulf %75, %79 : vector<16x32xf32>
    %81 = vector.broadcast %61 : vector<1x32xf32> to vector<16x32xf32>
    %82 = arith.mulf %80, %81 : vector<16x32xf32>
    %83 = vector.broadcast %62 : vector<1x32xf32> to vector<16x32xf32>
    %84 = arith.addf %82, %83 : vector<16x32xf32>
    %c0_25 = arith.constant 0 : index
    %c128 = arith.constant 128 : index
    %85 = vector.load %arg5[%c0_25, %c128] : memref<32x1152xf32, #tpu.memory_space<vmem>>, vector<32x96xf32>
    %cst_26 = arith.constant dense<0.000000e+00> : vector<16x96xf32>
    %86 = tpu.matmul %84, %85, %cst_26 {dimension_numbers = #tpu.dot_dimension_numbers<[1], [0], [0], [1], [0, 0, 1, 1], [], []>} : vector<16x32xf32>, vector<32x96xf32>, vector<16x96xf32> -> vector<16x96xf32>
    %87 = vector.extract_strided_slice %0 {offsets = [6, 0], sizes = [1, 96], strides = [1, 1]} : vector<32x128xf32> to vector<1x96xf32>
    %88 = vector.broadcast %87 : vector<1x96xf32> to vector<16x96xf32>
    %89 = arith.addf %86, %88 : vector<16x96xf32>
    %90 = vector.extract_strided_slice %89 {offsets = [0, 0], sizes = [16, 8], strides = [1, 1]} : vector<16x96xf32> to vector<16x8xf32>
    %91 = vector.shape_cast %90 : vector<16x8xf32> to vector<2x8x8xf32>
    %92 = vector.extract_strided_slice %89 {offsets = [0, 8], sizes = [16, 8], strides = [1, 1]} : vector<16x96xf32> to vector<16x8xf32>
    %93 = vector.shape_cast %92 : vector<16x8xf32> to vector<2x8x8xf32>
    %94 = vector.extract_strided_slice %89 {offsets = [0, 16], sizes = [16, 8], strides = [1, 1]} : vector<16x96xf32> to vector<16x8xf32>
    %95 = vector.shape_cast %94 : vector<16x8xf32> to vector<2x8x8xf32>
    %96 = vector.extract_strided_slice %89 {offsets = [0, 24], sizes = [16, 8], strides = [1, 1]} : vector<16x96xf32> to vector<16x8xf32>
    %97 = vector.shape_cast %96 : vector<16x8xf32> to vector<2x8x8xf32>
    %98 = tpu.concatenate %91, %93, %95, %97 in 0 : vector<2x8x8xf32>, vector<2x8x8xf32>, vector<2x8x8xf32>, vector<2x8x8xf32> -> vector<8x8x8xf32>
    %99 = vector.extract_strided_slice %89 {offsets = [0, 32], sizes = [16, 8], strides = [1, 1]} : vector<16x96xf32> to vector<16x8xf32>
    %100 = vector.shape_cast %99 : vector<16x8xf32> to vector<2x8x8xf32>
    %101 = vector.extract_strided_slice %89 {offsets = [0, 40], sizes = [16, 8], strides = [1, 1]} : vector<16x96xf32> to vector<16x8xf32>
    %102 = vector.shape_cast %101 : vector<16x8xf32> to vector<2x8x8xf32>
    %103 = vector.extract_strided_slice %89 {offsets = [0, 48], sizes = [16, 8], strides = [1, 1]} : vector<16x96xf32> to vector<16x8xf32>
    %104 = vector.shape_cast %103 : vector<16x8xf32> to vector<2x8x8xf32>
    %105 = vector.extract_strided_slice %89 {offsets = [0, 56], sizes = [16, 8], strides = [1, 1]} : vector<16x96xf32> to vector<16x8xf32>
    %106 = vector.shape_cast %105 : vector<16x8xf32> to vector<2x8x8xf32>
    %107 = tpu.concatenate %100, %102, %104, %106 in 0 : vector<2x8x8xf32>, vector<2x8x8xf32>, vector<2x8x8xf32>, vector<2x8x8xf32> -> vector<8x8x8xf32>
    %108 = vector.extract_strided_slice %89 {offsets = [0, 64], sizes = [16, 8], strides = [1, 1]} : vector<16x96xf32> to vector<16x8xf32>
    %109 = vector.shape_cast %108 : vector<16x8xf32> to vector<2x8x8xf32>
    %110 = vector.extract_strided_slice %89 {offsets = [0, 72], sizes = [16, 8], strides = [1, 1]} : vector<16x96xf32> to vector<16x8xf32>
    %111 = vector.shape_cast %110 : vector<16x8xf32> to vector<2x8x8xf32>
    %112 = vector.extract_strided_slice %89 {offsets = [0, 80], sizes = [16, 8], strides = [1, 1]} : vector<16x96xf32> to vector<16x8xf32>
    %113 = vector.shape_cast %112 : vector<16x8xf32> to vector<2x8x8xf32>
    %114 = vector.extract_strided_slice %89 {offsets = [0, 88], sizes = [16, 8], strides = [1, 1]} : vector<16x96xf32> to vector<16x8xf32>
    %115 = vector.shape_cast %114 : vector<16x8xf32> to vector<2x8x8xf32>
    %116 = tpu.concatenate %109, %111, %113, %115 in 0 : vector<2x8x8xf32>, vector<2x8x8xf32>, vector<2x8x8xf32>, vector<2x8x8xf32> -> vector<8x8x8xf32>
    "tpu.trace_start"() <{level = 10 : i32, message = "bqd,bkd->bqk"}> : () -> ()
    %cst_27 = arith.constant dense<0.000000e+00> : vector<8x8x8xf32>
    %117 = tpu.matmul %98, %107, %cst_27 {dimension_numbers = #tpu.dot_dimension_numbers<[2], [2], [1], [1], [0, 0, 0, 1, 1, 1], [0], [0]>} : vector<8x8x8xf32>, vector<8x8x8xf32>, vector<8x8x8xf32> -> vector<8x8x8xf32>
    "tpu.trace_stop"() : () -> ()
    %cst_28 = arith.constant 0.353553385 : f32
    %118 = vector.broadcast %cst_28 : f32 to vector<8x8x8xf32>
    %119 = arith.mulf %117, %118 : vector<8x8x8xf32>
    %cst_29 = arith.constant dense<0xFF800000> : vector<8x8xf32>
    %120 = vector.multi_reduction <maximumf>, %119, %cst_29 [2] : vector<8x8x8xf32> to vector<8x8xf32>
    %121 = vector.shape_cast %120 : vector<8x8xf32> to vector<8x8x1xf32>
    %122 = vector.broadcast %121 : vector<8x8x1xf32> to vector<8x8x8xf32>
    %123 = arith.subf %119, %122 : vector<8x8x8xf32>
    %124 = math.exp %123 : vector<8x8x8xf32>
    %cst_30 = arith.constant dense<0.000000e+00> : vector<8x8xf32>
    %125 = vector.multi_reduction <add>, %124, %cst_30 [2] : vector<8x8x8xf32> to vector<8x8xf32>
    %126 = vector.shape_cast %125 : vector<8x8xf32> to vector<8x8x1xf32>
    %127 = vector.broadcast %126 : vector<8x8x1xf32> to vector<8x8x8xf32>
    %128 = arith.divf %124, %127 : vector<8x8x8xf32>
    "tpu.trace_start"() <{level = 10 : i32, message = "bqk,bkd->bqd"}> : () -> ()
    %cst_31 = arith.constant dense<0.000000e+00> : vector<8x8x8xf32>
    %129 = tpu.matmul %128, %116, %cst_31 {dimension_numbers = #tpu.dot_dimension_numbers<[2], [1], [1], [2], [0, 0, 0, 1, 1, 2], [0], [0]>} : vector<8x8x8xf32>, vector<8x8x8xf32>, vector<8x8x8xf32> -> vector<8x8x8xf32>
    "tpu.trace_stop"() : () -> ()
    %130 = vector.extract_strided_slice %129 {offsets = [0, 0, 0], sizes = [2, 8, 8], strides = [1, 1, 1]} : vector<8x8x8xf32> to vector<2x8x8xf32>
    %131 = vector.shape_cast %130 : vector<2x8x8xf32> to vector<16x8xf32>
    %132 = vector.extract_strided_slice %129 {offsets = [2, 0, 0], sizes = [2, 8, 8], strides = [1, 1, 1]} : vector<8x8x8xf32> to vector<2x8x8xf32>
    %133 = vector.shape_cast %132 : vector<2x8x8xf32> to vector<16x8xf32>
    %134 = vector.extract_strided_slice %129 {offsets = [4, 0, 0], sizes = [2, 8, 8], strides = [1, 1, 1]} : vector<8x8x8xf32> to vector<2x8x8xf32>
    %135 = vector.shape_cast %134 : vector<2x8x8xf32> to vector<16x8xf32>
    %136 = vector.extract_strided_slice %129 {offsets = [6, 0, 0], sizes = [2, 8, 8], strides = [1, 1, 1]} : vector<8x8x8xf32> to vector<2x8x8xf32>
    %137 = vector.shape_cast %136 : vector<2x8x8xf32> to vector<16x8xf32>
    %138 = tpu.concatenate %131, %133, %135, %137 in 1 : vector<16x8xf32>, vector<16x8xf32>, vector<16x8xf32>, vector<16x8xf32> -> vector<16x32xf32>
    %c0_32 = arith.constant 0 : index
    %c256 = arith.constant 256 : index
    %139 = vector.load %arg5[%c0_32, %c256] : memref<32x1152xf32, #tpu.memory_space<vmem>>, vector<32x32xf32>
    %cst_33 = arith.constant dense<0.000000e+00> : vector<16x32xf32>
    %140 = tpu.matmul %138, %139, %cst_33 {dimension_numbers = #tpu.dot_dimension_numbers<[1], [0], [0], [1], [0, 0, 1, 1], [], []>} : vector<16x32xf32>, vector<32x32xf32>, vector<16x32xf32> -> vector<16x32xf32>
    %141 = vector.extract_strided_slice %0 {offsets = [7, 0], sizes = [1, 32], strides = [1, 1]} : vector<32x128xf32> to vector<1x32xf32>
    %142 = vector.broadcast %141 : vector<1x32xf32> to vector<16x32xf32>
    %143 = arith.addf %140, %142 : vector<16x32xf32>
    %144 = arith.addf %143, %84 : vector<16x32xf32>
    %145 = vector.extract_strided_slice %0 {offsets = [8, 0], sizes = [1, 32], strides = [1, 1]} : vector<32x128xf32> to vector<1x32xf32>
    %146 = vector.extract_strided_slice %0 {offsets = [9, 0], sizes = [1, 32], strides = [1, 1]} : vector<32x128xf32> to vector<1x32xf32>
    %cst_34 = arith.constant dense<0.000000e+00> : vector<16xf32>
    %147 = vector.multi_reduction <add>, %144, %cst_34 [1] : vector<16x32xf32> to vector<16xf32>
    %148 = vector.shape_cast %147 : vector<16xf32> to vector<16x1xf32>
    %cst_35 = arith.constant 3.200000e+01 : f32
    %149 = vector.broadcast %cst_35 : f32 to vector<16x1xf32>
    %150 = arith.divf %148, %149 : vector<16x1xf32>
    %151 = vector.broadcast %150 : vector<16x1xf32> to vector<16x32xf32>
    %152 = arith.subf %144, %151 : vector<16x32xf32>
    %153 = arith.mulf %152, %152 : vector<16x32xf32>
    %cst_36 = arith.constant dense<0.000000e+00> : vector<16xf32>
    %154 = vector.multi_reduction <add>, %153, %cst_36 [1] : vector<16x32xf32> to vector<16xf32>
    %155 = vector.shape_cast %154 : vector<16xf32> to vector<16x1xf32>
    %cst_37 = arith.constant 3.200000e+01 : f32
    %156 = vector.broadcast %cst_37 : f32 to vector<16x1xf32>
    %157 = arith.divf %155, %156 : vector<16x1xf32>
    %158 = vector.broadcast %150 : vector<16x1xf32> to vector<16x32xf32>
    %159 = arith.subf %144, %158 : vector<16x32xf32>
    %cst_38 = arith.constant 9.99999996E-13 : f32
    %160 = vector.broadcast %cst_38 : f32 to vector<16x1xf32>
    %161 = arith.addf %157, %160 : vector<16x1xf32>
    %162 = math.rsqrt %161 : vector<16x1xf32>
    %163 = vector.broadcast %162 : vector<16x1xf32> to vector<16x32xf32>
    %164 = arith.mulf %159, %163 : vector<16x32xf32>
    %165 = vector.broadcast %145 : vector<1x32xf32> to vector<16x32xf32>
    %166 = arith.mulf %164, %165 : vector<16x32xf32>
    %167 = vector.broadcast %146 : vector<1x32xf32> to vector<16x32xf32>
    %168 = arith.addf %166, %167 : vector<16x32xf32>
    %c0_39 = arith.constant 0 : index
    %c384 = arith.constant 384 : index
    %169 = vector.load %arg5[%c0_39, %c384] : memref<32x1152xf32, #tpu.memory_space<vmem>>, vector<32x128xf32>
    %cst_40 = arith.constant dense<0.000000e+00> : vector<16x128xf32>
    %170 = tpu.matmul %168, %169, %cst_40 {dimension_numbers = #tpu.dot_dimension_numbers<[1], [0], [0], [1], [0, 0, 1, 1], [], []>} : vector<16x32xf32>, vector<32x128xf32>, vector<16x128xf32> -> vector<16x128xf32>
    %171 = vector.extract_strided_slice %0 {offsets = [10, 0], sizes = [1, 128], strides = [1, 1]} : vector<32x128xf32> to vector<1x128xf32>
    %172 = vector.broadcast %171 : vector<1x128xf32> to vector<16x128xf32>
    %173 = arith.addf %170, %172 : vector<16x128xf32>
    %cst_41 = arith.constant 5.000000e-01 : f32
    %174 = vector.broadcast %cst_41 : f32 to vector<16x128xf32>
    %175 = arith.mulf %174, %173 : vector<16x128xf32>
    %cst_42 = arith.constant 4.471500e-02 : f32
    %176 = vector.broadcast %cst_42 : f32 to vector<16x128xf32>
    %177 = arith.mulf %176, %173 : vector<16x128xf32>
    %178 = arith.mulf %177, %173 : vector<16x128xf32>
    %179 = arith.mulf %178, %173 : vector<16x128xf32>
    %180 = arith.addf %173, %179 : vector<16x128xf32>
    %cst_43 = arith.constant 0.797884583 : f32
    %181 = vector.broadcast %cst_43 : f32 to vector<16x128xf32>
    %182 = arith.mulf %181, %180 : vector<16x128xf32>
    %183 = math.tanh %182 : vector<16x128xf32>
    %cst_44 = arith.constant 1.000000e+00 : f32
    %184 = vector.broadcast %cst_44 : f32 to vector<16x128xf32>
    %185 = arith.addf %184, %183 : vector<16x128xf32>
    %186 = arith.mulf %175, %185 : vector<16x128xf32>
    %c128_45 = arith.constant 128 : index
    %c0_46 = arith.constant 0 : index
    %187 = vector.load %arg6[%c128_45, %c0_46] : memref<384x32xf32, #tpu.memory_space<vmem>>, vector<128x32xf32>
    %cst_47 = arith.constant dense<0.000000e+00> : vector<16x32xf32>
    %188 = tpu.matmul %186, %187, %cst_47 {dimension_numbers = #tpu.dot_dimension_numbers<[1], [0], [0], [1], [0, 0, 1, 1], [], []>} : vector<16x128xf32>, vector<128x32xf32>, vector<16x32xf32> -> vector<16x32xf32>
    %189 = vector.extract_strided_slice %0 {offsets = [11, 0], sizes = [1, 32], strides = [1, 1]} : vector<32x128xf32> to vector<1x32xf32>
    %190 = vector.broadcast %189 : vector<1x32xf32> to vector<16x32xf32>
    %191 = arith.addf %188, %190 : vector<16x32xf32>
    %192 = arith.addf %191, %168 : vector<16x32xf32>
    %193 = vector.extract_strided_slice %0 {offsets = [12, 0], sizes = [1, 32], strides = [1, 1]} : vector<32x128xf32> to vector<1x32xf32>
    %194 = vector.extract_strided_slice %0 {offsets = [13, 0], sizes = [1, 32], strides = [1, 1]} : vector<32x128xf32> to vector<1x32xf32>
    %cst_48 = arith.constant dense<0.000000e+00> : vector<16xf32>
    %195 = vector.multi_reduction <add>, %192, %cst_48 [1] : vector<16x32xf32> to vector<16xf32>
    %196 = vector.shape_cast %195 : vector<16xf32> to vector<16x1xf32>
    %cst_49 = arith.constant 3.200000e+01 : f32
    %197 = vector.broadcast %cst_49 : f32 to vector<16x1xf32>
    %198 = arith.divf %196, %197 : vector<16x1xf32>
    %199 = vector.broadcast %198 : vector<16x1xf32> to vector<16x32xf32>
    %200 = arith.subf %192, %199 : vector<16x32xf32>
    %201 = arith.mulf %200, %200 : vector<16x32xf32>
    %cst_50 = arith.constant dense<0.000000e+00> : vector<16xf32>
    %202 = vector.multi_reduction <add>, %201, %cst_50 [1] : vector<16x32xf32> to vector<16xf32>
    %203 = vector.shape_cast %202 : vector<16xf32> to vector<16x1xf32>
    %cst_51 = arith.constant 3.200000e+01 : f32
    %204 = vector.broadcast %cst_51 : f32 to vector<16x1xf32>
    %205 = arith.divf %203, %204 : vector<16x1xf32>
    %206 = vector.broadcast %198 : vector<16x1xf32> to vector<16x32xf32>
    %207 = arith.subf %192, %206 : vector<16x32xf32>
    %cst_52 = arith.constant 9.99999996E-13 : f32
    %208 = vector.broadcast %cst_52 : f32 to vector<16x1xf32>
    %209 = arith.addf %205, %208 : vector<16x1xf32>
    %210 = math.rsqrt %209 : vector<16x1xf32>
    %211 = vector.broadcast %210 : vector<16x1xf32> to vector<16x32xf32>
    %212 = arith.mulf %207, %211 : vector<16x32xf32>
    %213 = vector.broadcast %193 : vector<1x32xf32> to vector<16x32xf32>
    %214 = arith.mulf %212, %213 : vector<16x32xf32>
    %215 = vector.broadcast %194 : vector<1x32xf32> to vector<16x32xf32>
    %216 = arith.addf %214, %215 : vector<16x32xf32>
    %c0_53 = arith.constant 0 : index
    %c512 = arith.constant 512 : index
    %217 = vector.load %arg5[%c0_53, %c512] : memref<32x1152xf32, #tpu.memory_space<vmem>>, vector<32x96xf32>
    %cst_54 = arith.constant dense<0.000000e+00> : vector<16x96xf32>
    %218 = tpu.matmul %216, %217, %cst_54 {dimension_numbers = #tpu.dot_dimension_numbers<[1], [0], [0], [1], [0, 0, 1, 1], [], []>} : vector<16x32xf32>, vector<32x96xf32>, vector<16x96xf32> -> vector<16x96xf32>
    %219 = vector.extract_strided_slice %0 {offsets = [14, 0], sizes = [1, 96], strides = [1, 1]} : vector<32x128xf32> to vector<1x96xf32>
    %220 = vector.broadcast %219 : vector<1x96xf32> to vector<16x96xf32>
    %221 = arith.addf %218, %220 : vector<16x96xf32>
    %222 = vector.extract_strided_slice %221 {offsets = [0, 0], sizes = [16, 8], strides = [1, 1]} : vector<16x96xf32> to vector<16x8xf32>
    %223 = vector.shape_cast %222 : vector<16x8xf32> to vector<2x8x8xf32>
    %224 = vector.extract_strided_slice %221 {offsets = [0, 8], sizes = [16, 8], strides = [1, 1]} : vector<16x96xf32> to vector<16x8xf32>
    %225 = vector.shape_cast %224 : vector<16x8xf32> to vector<2x8x8xf32>
    %226 = vector.extract_strided_slice %221 {offsets = [0, 16], sizes = [16, 8], strides = [1, 1]} : vector<16x96xf32> to vector<16x8xf32>
    %227 = vector.shape_cast %226 : vector<16x8xf32> to vector<2x8x8xf32>
    %228 = vector.extract_strided_slice %221 {offsets = [0, 24], sizes = [16, 8], strides = [1, 1]} : vector<16x96xf32> to vector<16x8xf32>
    %229 = vector.shape_cast %228 : vector<16x8xf32> to vector<2x8x8xf32>
    %230 = tpu.concatenate %223, %225, %227, %229 in 0 : vector<2x8x8xf32>, vector<2x8x8xf32>, vector<2x8x8xf32>, vector<2x8x8xf32> -> vector<8x8x8xf32>
    %231 = vector.extract_strided_slice %221 {offsets = [0, 32], sizes = [16, 8], strides = [1, 1]} : vector<16x96xf32> to vector<16x8xf32>
    %232 = vector.shape_cast %231 : vector<16x8xf32> to vector<2x8x8xf32>
    %233 = vector.extract_strided_slice %221 {offsets = [0, 40], sizes = [16, 8], strides = [1, 1]} : vector<16x96xf32> to vector<16x8xf32>
    %234 = vector.shape_cast %233 : vector<16x8xf32> to vector<2x8x8xf32>
    %235 = vector.extract_strided_slice %221 {offsets = [0, 48], sizes = [16, 8], strides = [1, 1]} : vector<16x96xf32> to vector<16x8xf32>
    %236 = vector.shape_cast %235 : vector<16x8xf32> to vector<2x8x8xf32>
    %237 = vector.extract_strided_slice %221 {offsets = [0, 56], sizes = [16, 8], strides = [1, 1]} : vector<16x96xf32> to vector<16x8xf32>
    %238 = vector.shape_cast %237 : vector<16x8xf32> to vector<2x8x8xf32>
    %239 = tpu.concatenate %232, %234, %236, %238 in 0 : vector<2x8x8xf32>, vector<2x8x8xf32>, vector<2x8x8xf32>, vector<2x8x8xf32> -> vector<8x8x8xf32>
    %240 = vector.extract_strided_slice %221 {offsets = [0, 64], sizes = [16, 8], strides = [1, 1]} : vector<16x96xf32> to vector<16x8xf32>
    %241 = vector.shape_cast %240 : vector<16x8xf32> to vector<2x8x8xf32>
    %242 = vector.extract_strided_slice %221 {offsets = [0, 72], sizes = [16, 8], strides = [1, 1]} : vector<16x96xf32> to vector<16x8xf32>
    %243 = vector.shape_cast %242 : vector<16x8xf32> to vector<2x8x8xf32>
    %244 = vector.extract_strided_slice %221 {offsets = [0, 80], sizes = [16, 8], strides = [1, 1]} : vector<16x96xf32> to vector<16x8xf32>
    %245 = vector.shape_cast %244 : vector<16x8xf32> to vector<2x8x8xf32>
    %246 = vector.extract_strided_slice %221 {offsets = [0, 88], sizes = [16, 8], strides = [1, 1]} : vector<16x96xf32> to vector<16x8xf32>
    %247 = vector.shape_cast %246 : vector<16x8xf32> to vector<2x8x8xf32>
    %248 = tpu.concatenate %241, %243, %245, %247 in 0 : vector<2x8x8xf32>, vector<2x8x8xf32>, vector<2x8x8xf32>, vector<2x8x8xf32> -> vector<8x8x8xf32>
    "tpu.trace_start"() <{level = 10 : i32, message = "bqd,bkd->bqk"}> : () -> ()
    %cst_55 = arith.constant dense<0.000000e+00> : vector<8x8x8xf32>
    %249 = tpu.matmul %230, %239, %cst_55 {dimension_numbers = #tpu.dot_dimension_numbers<[2], [2], [1], [1], [0, 0, 0, 1, 1, 1], [0], [0]>} : vector<8x8x8xf32>, vector<8x8x8xf32>, vector<8x8x8xf32> -> vector<8x8x8xf32>
    "tpu.trace_stop"() : () -> ()
    %cst_56 = arith.constant 0.353553385 : f32
    %250 = vector.broadcast %cst_56 : f32 to vector<8x8x8xf32>
    %251 = arith.mulf %249, %250 : vector<8x8x8xf32>
    %cst_57 = arith.constant dense<0xFF800000> : vector<8x8xf32>
    %252 = vector.multi_reduction <maximumf>, %251, %cst_57 [2] : vector<8x8x8xf32> to vector<8x8xf32>
    %253 = vector.shape_cast %252 : vector<8x8xf32> to vector<8x8x1xf32>
    %254 = vector.broadcast %253 : vector<8x8x1xf32> to vector<8x8x8xf32>
    %255 = arith.subf %251, %254 : vector<8x8x8xf32>
    %256 = math.exp %255 : vector<8x8x8xf32>
    %cst_58 = arith.constant dense<0.000000e+00> : vector<8x8xf32>
    %257 = vector.multi_reduction <add>, %256, %cst_58 [2] : vector<8x8x8xf32> to vector<8x8xf32>
    %258 = vector.shape_cast %257 : vector<8x8xf32> to vector<8x8x1xf32>
    %259 = vector.broadcast %258 : vector<8x8x1xf32> to vector<8x8x8xf32>
    %260 = arith.divf %256, %259 : vector<8x8x8xf32>
    "tpu.trace_start"() <{level = 10 : i32, message = "bqk,bkd->bqd"}> : () -> ()
    %cst_59 = arith.constant dense<0.000000e+00> : vector<8x8x8xf32>
    %261 = tpu.matmul %260, %248, %cst_59 {dimension_numbers = #tpu.dot_dimension_numbers<[2], [1], [1], [2], [0, 0, 0, 1, 1, 2], [0], [0]>} : vector<8x8x8xf32>, vector<8x8x8xf32>, vector<8x8x8xf32> -> vector<8x8x8xf32>
    "tpu.trace_stop"() : () -> ()
    %262 = vector.extract_strided_slice %261 {offsets = [0, 0, 0], sizes = [2, 8, 8], strides = [1, 1, 1]} : vector<8x8x8xf32> to vector<2x8x8xf32>
    %263 = vector.shape_cast %262 : vector<2x8x8xf32> to vector<16x8xf32>
    %264 = vector.extract_strided_slice %261 {offsets = [2, 0, 0], sizes = [2, 8, 8], strides = [1, 1, 1]} : vector<8x8x8xf32> to vector<2x8x8xf32>
    %265 = vector.shape_cast %264 : vector<2x8x8xf32> to vector<16x8xf32>
    %266 = vector.extract_strided_slice %261 {offsets = [4, 0, 0], sizes = [2, 8, 8], strides = [1, 1, 1]} : vector<8x8x8xf32> to vector<2x8x8xf32>
    %267 = vector.shape_cast %266 : vector<2x8x8xf32> to vector<16x8xf32>
    %268 = vector.extract_strided_slice %261 {offsets = [6, 0, 0], sizes = [2, 8, 8], strides = [1, 1, 1]} : vector<8x8x8xf32> to vector<2x8x8xf32>
    %269 = vector.shape_cast %268 : vector<2x8x8xf32> to vector<16x8xf32>
    %270 = tpu.concatenate %263, %265, %267, %269 in 1 : vector<16x8xf32>, vector<16x8xf32>, vector<16x8xf32>, vector<16x8xf32> -> vector<16x32xf32>
    %c0_60 = arith.constant 0 : index
    %c640 = arith.constant 640 : index
    %271 = vector.load %arg5[%c0_60, %c640] : memref<32x1152xf32, #tpu.memory_space<vmem>>, vector<32x32xf32>
    %cst_61 = arith.constant dense<0.000000e+00> : vector<16x32xf32>
    %272 = tpu.matmul %270, %271, %cst_61 {dimension_numbers = #tpu.dot_dimension_numbers<[1], [0], [0], [1], [0, 0, 1, 1], [], []>} : vector<16x32xf32>, vector<32x32xf32>, vector<16x32xf32> -> vector<16x32xf32>
    %273 = vector.extract_strided_slice %0 {offsets = [15, 0], sizes = [1, 32], strides = [1, 1]} : vector<32x128xf32> to vector<1x32xf32>
    %274 = vector.broadcast %273 : vector<1x32xf32> to vector<16x32xf32>
    %275 = arith.addf %272, %274 : vector<16x32xf32>
    %276 = arith.addf %275, %216 : vector<16x32xf32>
    %277 = vector.extract_strided_slice %0 {offsets = [16, 0], sizes = [1, 32], strides = [1, 1]} : vector<32x128xf32> to vector<1x32xf32>
    %278 = vector.extract_strided_slice %0 {offsets = [17, 0], sizes = [1, 32], strides = [1, 1]} : vector<32x128xf32> to vector<1x32xf32>
    %cst_62 = arith.constant dense<0.000000e+00> : vector<16xf32>
    %279 = vector.multi_reduction <add>, %276, %cst_62 [1] : vector<16x32xf32> to vector<16xf32>
    %280 = vector.shape_cast %279 : vector<16xf32> to vector<16x1xf32>
    %cst_63 = arith.constant 3.200000e+01 : f32
    %281 = vector.broadcast %cst_63 : f32 to vector<16x1xf32>
    %282 = arith.divf %280, %281 : vector<16x1xf32>
    %283 = vector.broadcast %282 : vector<16x1xf32> to vector<16x32xf32>
    %284 = arith.subf %276, %283 : vector<16x32xf32>
    %285 = arith.mulf %284, %284 : vector<16x32xf32>
    %cst_64 = arith.constant dense<0.000000e+00> : vector<16xf32>
    %286 = vector.multi_reduction <add>, %285, %cst_64 [1] : vector<16x32xf32> to vector<16xf32>
    %287 = vector.shape_cast %286 : vector<16xf32> to vector<16x1xf32>
    %cst_65 = arith.constant 3.200000e+01 : f32
    %288 = vector.broadcast %cst_65 : f32 to vector<16x1xf32>
    %289 = arith.divf %287, %288 : vector<16x1xf32>
    %290 = vector.broadcast %282 : vector<16x1xf32> to vector<16x32xf32>
    %291 = arith.subf %276, %290 : vector<16x32xf32>
    %cst_66 = arith.constant 9.99999996E-13 : f32
    %292 = vector.broadcast %cst_66 : f32 to vector<16x1xf32>
    %293 = arith.addf %289, %292 : vector<16x1xf32>
    %294 = math.rsqrt %293 : vector<16x1xf32>
    %295 = vector.broadcast %294 : vector<16x1xf32> to vector<16x32xf32>
    %296 = arith.mulf %291, %295 : vector<16x32xf32>
    %297 = vector.broadcast %277 : vector<1x32xf32> to vector<16x32xf32>
    %298 = arith.mulf %296, %297 : vector<16x32xf32>
    %299 = vector.broadcast %278 : vector<1x32xf32> to vector<16x32xf32>
    %300 = arith.addf %298, %299 : vector<16x32xf32>
    %c0_67 = arith.constant 0 : index
    %c768 = arith.constant 768 : index
    %301 = vector.load %arg5[%c0_67, %c768] : memref<32x1152xf32, #tpu.memory_space<vmem>>, vector<32x128xf32>
    %cst_68 = arith.constant dense<0.000000e+00> : vector<16x128xf32>
    %302 = tpu.matmul %300, %301, %cst_68 {dimension_numbers = #tpu.dot_dimension_numbers<[1], [0], [0], [1], [0, 0, 1, 1], [], []>} : vector<16x32xf32>, vector<32x128xf32>, vector<16x128xf32> -> vector<16x128xf32>
    %303 = vector.extract_strided_slice %0 {offsets = [18, 0], sizes = [1, 128], strides = [1, 1]} : vector<32x128xf32> to vector<1x128xf32>
    %304 = vector.broadcast %303 : vector<1x128xf32> to vector<16x128xf32>
    %305 = arith.addf %302, %304 : vector<16x128xf32>
    %cst_69 = arith.constant 5.000000e-01 : f32
    %306 = vector.broadcast %cst_69 : f32 to vector<16x128xf32>
    %307 = arith.mulf %306, %305 : vector<16x128xf32>
    %cst_70 = arith.constant 4.471500e-02 : f32
    %308 = vector.broadcast %cst_70 : f32 to vector<16x128xf32>
    %309 = arith.mulf %308, %305 : vector<16x128xf32>
    %310 = arith.mulf %309, %305 : vector<16x128xf32>
    %311 = arith.mulf %310, %305 : vector<16x128xf32>
    %312 = arith.addf %305, %311 : vector<16x128xf32>
    %cst_71 = arith.constant 0.797884583 : f32
    %313 = vector.broadcast %cst_71 : f32 to vector<16x128xf32>
    %314 = arith.mulf %313, %312 : vector<16x128xf32>
    %315 = math.tanh %314 : vector<16x128xf32>
    %cst_72 = arith.constant 1.000000e+00 : f32
    %316 = vector.broadcast %cst_72 : f32 to vector<16x128xf32>
    %317 = arith.addf %316, %315 : vector<16x128xf32>
    %318 = arith.mulf %307, %317 : vector<16x128xf32>
    %c256_73 = arith.constant 256 : index
    %c0_74 = arith.constant 0 : index
    %319 = vector.load %arg6[%c256_73, %c0_74] : memref<384x32xf32, #tpu.memory_space<vmem>>, vector<128x32xf32>
    %cst_75 = arith.constant dense<0.000000e+00> : vector<16x32xf32>
    %320 = tpu.matmul %318, %319, %cst_75 {dimension_numbers = #tpu.dot_dimension_numbers<[1], [0], [0], [1], [0, 0, 1, 1], [], []>} : vector<16x128xf32>, vector<128x32xf32>, vector<16x32xf32> -> vector<16x32xf32>
    %321 = vector.extract_strided_slice %0 {offsets = [19, 0], sizes = [1, 32], strides = [1, 1]} : vector<32x128xf32> to vector<1x32xf32>
    %322 = vector.broadcast %321 : vector<1x32xf32> to vector<16x32xf32>
    %323 = arith.addf %320, %322 : vector<16x32xf32>
    %324 = arith.addf %323, %300 : vector<16x32xf32>
    %325 = vector.extract_strided_slice %0 {offsets = [20, 0], sizes = [1, 32], strides = [1, 1]} : vector<32x128xf32> to vector<1x32xf32>
    %326 = vector.extract_strided_slice %0 {offsets = [21, 0], sizes = [1, 32], strides = [1, 1]} : vector<32x128xf32> to vector<1x32xf32>
    %cst_76 = arith.constant dense<0.000000e+00> : vector<16xf32>
    %327 = vector.multi_reduction <add>, %324, %cst_76 [1] : vector<16x32xf32> to vector<16xf32>
    %328 = vector.shape_cast %327 : vector<16xf32> to vector<16x1xf32>
    %cst_77 = arith.constant 3.200000e+01 : f32
    %329 = vector.broadcast %cst_77 : f32 to vector<16x1xf32>
    %330 = arith.divf %328, %329 : vector<16x1xf32>
    %331 = vector.broadcast %330 : vector<16x1xf32> to vector<16x32xf32>
    %332 = arith.subf %324, %331 : vector<16x32xf32>
    %333 = arith.mulf %332, %332 : vector<16x32xf32>
    %cst_78 = arith.constant dense<0.000000e+00> : vector<16xf32>
    %334 = vector.multi_reduction <add>, %333, %cst_78 [1] : vector<16x32xf32> to vector<16xf32>
    %335 = vector.shape_cast %334 : vector<16xf32> to vector<16x1xf32>
    %cst_79 = arith.constant 3.200000e+01 : f32
    %336 = vector.broadcast %cst_79 : f32 to vector<16x1xf32>
    %337 = arith.divf %335, %336 : vector<16x1xf32>
    %338 = vector.broadcast %330 : vector<16x1xf32> to vector<16x32xf32>
    %339 = arith.subf %324, %338 : vector<16x32xf32>
    %cst_80 = arith.constant 9.99999996E-13 : f32
    %340 = vector.broadcast %cst_80 : f32 to vector<16x1xf32>
    %341 = arith.addf %337, %340 : vector<16x1xf32>
    %342 = math.rsqrt %341 : vector<16x1xf32>
    %343 = vector.broadcast %342 : vector<16x1xf32> to vector<16x32xf32>
    %344 = arith.mulf %339, %343 : vector<16x32xf32>
    %345 = vector.broadcast %325 : vector<1x32xf32> to vector<16x32xf32>
    %346 = arith.mulf %344, %345 : vector<16x32xf32>
    %347 = vector.broadcast %326 : vector<1x32xf32> to vector<16x32xf32>
    %348 = arith.addf %346, %347 : vector<16x32xf32>
    %c0_81 = arith.constant 0 : index
    %c896 = arith.constant 896 : index
    %349 = vector.load %arg5[%c0_81, %c896] : memref<32x1152xf32, #tpu.memory_space<vmem>>, vector<32x32xf32>
    %cst_82 = arith.constant dense<0.000000e+00> : vector<16x32xf32>
    %350 = tpu.matmul %348, %349, %cst_82 {dimension_numbers = #tpu.dot_dimension_numbers<[1], [0], [0], [1], [0, 0, 1, 1], [], []>} : vector<16x32xf32>, vector<32x32xf32>, vector<16x32xf32> -> vector<16x32xf32>
    %351 = vector.extract_strided_slice %0 {offsets = [22, 0], sizes = [1, 32], strides = [1, 1]} : vector<32x128xf32> to vector<1x32xf32>
    %352 = vector.broadcast %351 : vector<1x32xf32> to vector<16x32xf32>
    %353 = arith.addf %350, %352 : vector<16x32xf32>
    %cst_83 = arith.constant 5.000000e-01 : f32
    %354 = vector.broadcast %cst_83 : f32 to vector<16x32xf32>
    %355 = arith.mulf %354, %353 : vector<16x32xf32>
    %cst_84 = arith.constant 4.471500e-02 : f32
    %356 = vector.broadcast %cst_84 : f32 to vector<16x32xf32>
    %357 = arith.mulf %356, %353 : vector<16x32xf32>
    %358 = arith.mulf %357, %353 : vector<16x32xf32>
    %359 = arith.mulf %358, %353 : vector<16x32xf32>
    %360 = arith.addf %353, %359 : vector<16x32xf32>
    %cst_85 = arith.constant 0.797884583 : f32
    %361 = vector.broadcast %cst_85 : f32 to vector<16x32xf32>
    %362 = arith.mulf %361, %360 : vector<16x32xf32>
    %363 = math.tanh %362 : vector<16x32xf32>
    %cst_86 = arith.constant 1.000000e+00 : f32
    %364 = vector.broadcast %cst_86 : f32 to vector<16x32xf32>
    %365 = arith.addf %364, %363 : vector<16x32xf32>
    %366 = arith.mulf %355, %365 : vector<16x32xf32>
    %367 = vector.extract_strided_slice %0 {offsets = [23, 0], sizes = [1, 32], strides = [1, 1]} : vector<32x128xf32> to vector<1x32xf32>
    %368 = vector.extract_strided_slice %0 {offsets = [24, 0], sizes = [1, 32], strides = [1, 1]} : vector<32x128xf32> to vector<1x32xf32>
    %cst_87 = arith.constant dense<0.000000e+00> : vector<16xf32>
    %369 = vector.multi_reduction <add>, %366, %cst_87 [1] : vector<16x32xf32> to vector<16xf32>
    %370 = vector.shape_cast %369 : vector<16xf32> to vector<16x1xf32>
    %cst_88 = arith.constant 3.200000e+01 : f32
    %371 = vector.broadcast %cst_88 : f32 to vector<16x1xf32>
    %372 = arith.divf %370, %371 : vector<16x1xf32>
    %373 = vector.broadcast %372 : vector<16x1xf32> to vector<16x32xf32>
    %374 = arith.subf %366, %373 : vector<16x32xf32>
    %375 = arith.mulf %374, %374 : vector<16x32xf32>
    %cst_89 = arith.constant dense<0.000000e+00> : vector<16xf32>
    %376 = vector.multi_reduction <add>, %375, %cst_89 [1] : vector<16x32xf32> to vector<16xf32>
    %377 = vector.shape_cast %376 : vector<16xf32> to vector<16x1xf32>
    %cst_90 = arith.constant 3.200000e+01 : f32
    %378 = vector.broadcast %cst_90 : f32 to vector<16x1xf32>
    %379 = arith.divf %377, %378 : vector<16x1xf32>
    %380 = vector.broadcast %372 : vector<16x1xf32> to vector<16x32xf32>
    %381 = arith.subf %366, %380 : vector<16x32xf32>
    %cst_91 = arith.constant 9.99999996E-13 : f32
    %382 = vector.broadcast %cst_91 : f32 to vector<16x1xf32>
    %383 = arith.addf %379, %382 : vector<16x1xf32>
    %384 = math.rsqrt %383 : vector<16x1xf32>
    %385 = vector.broadcast %384 : vector<16x1xf32> to vector<16x32xf32>
    %386 = arith.mulf %381, %385 : vector<16x32xf32>
    %387 = vector.broadcast %367 : vector<1x32xf32> to vector<16x32xf32>
    %388 = arith.mulf %386, %387 : vector<16x32xf32>
    %389 = vector.broadcast %368 : vector<1x32xf32> to vector<16x32xf32>
    %390 = arith.addf %388, %389 : vector<16x32xf32>
    %c0_92 = arith.constant 0 : index
    %c1024 = arith.constant 1024 : index
    %391 = vector.load %arg5[%c0_92, %c1024] : memref<32x1152xf32, #tpu.memory_space<vmem>>, vector<32x64xf32>
    %cst_93 = arith.constant dense<0.000000e+00> : vector<16x64xf32>
    %392 = tpu.matmul %390, %391, %cst_93 {dimension_numbers = #tpu.dot_dimension_numbers<[1], [0], [0], [1], [0, 0, 1, 1], [], []>} : vector<16x32xf32>, vector<32x64xf32>, vector<16x64xf32> -> vector<16x64xf32>
    %393 = vector.extract_strided_slice %0 {offsets = [25, 0], sizes = [1, 64], strides = [1, 1]} : vector<32x128xf32> to vector<1x64xf32>
    %394 = vector.broadcast %393 : vector<1x64xf32> to vector<16x64xf32>
    %395 = arith.addf %392, %394 : vector<16x64xf32>
    %396 = tpu.concatenate %395, %348, %35 in 1 : vector<16x64xf32>, vector<16x32xf32>, vector<16x32xf32> -> vector<16x128xf32>
    %c0_94 = arith.constant 0 : index
    %c0_95 = arith.constant 0 : index
    %397 = vector.load %arg7[%c0_94, %c0_95] : memref<16x128xf32, #tpu.memory_space<vmem>>, vector<16x128xf32>
    tpu.vector_store %arg7[%c0_94, %c0_95], %396 {strides = array<i32>} : memref<16x128xf32, #tpu.memory_space<vmem>>, vector<16x128xf32>,
    return
  }
  func.func @transform_0(%arg0: i32) -> (i32, i32) {
    %c0_i32 = arith.constant 0 : i32
    %c0_i32_0 = arith.constant 0 : i32
    %c0_i32_1 = arith.constant 0 : i32
    return %c0_i32, %c0_i32_0 : i32, i32
  }
  func.func @transform_1(%arg0: i32) -> (i32, i32) {
    %c0_i32 = arith.constant 0 : i32
    %c0_i32_0 = arith.constant 0 : i32
    %c0_i32_1 = arith.constant 0 : i32
    return %c0_i32, %c0_i32_0 : i32, i32
  }
  func.func @transform_2(%arg0: i32) -> (i32, i32) {
    %c0_i32 = arith.constant 0 : i32
    %c0_i32_0 = arith.constant 0 : i32
    %c0_i32_1 = arith.constant 0 : i32
    return %c0_i32, %c0_i32_0 : i32, i32
  }
  func.func @transform_3(%arg0: i32) -> (i32, i32) {
    %c0_i32 = arith.constant 0 : i32
    %c0_i32_0 = arith.constant 0 : i32
    %c0_i32_1 = arith.constant 0 : i32
    return %c0_i32, %c0_i32_0 : i32, i32
  }
  func.func @transform_4(%arg0: i32) -> (i32, i32) {
    %c0_i32 = arith.constant 0 : i32
    %c0_i32_0 = arith.constant 0 : i32
    %c0_i32_1 = arith.constant 0 : i32
    return %c0_i32, %c0_i32_0 : i32, i32
  }
  func.func @transform_5(%arg0: i32) -> (i32, i32) {
    %c0_i32 = arith.constant 0 : i32
    %c0_i32_0 = arith.constant 0 : i32
    %c0_i32_1 = arith.constant 0 : i32
    return %c0_i32, %c0_i32_0 : i32, i32
  }
  func.func @transform_6(%arg0: i32) -> (i32, i32) {
    %c0_i32 = arith.constant 0 : i32
    %c0_i32_0 = arith.constant 0 : i32
    %c0_i32_1 = arith.constant 0 : i32
    return %c0_i32, %c0_i32_0 : i32, i32
  }
}

</mosaic_0001>

<llo_original>
// kernel: forward.1
$region0: #{forward.1}
  #allocation0 [shape = 'u32[]', space=smem, size = 0x4, offset = 0x4, fixed_abs, tag = 'smem constant byte address 0x4 - core index']
  #allocation1 [shape = 'u32[144,128]{1,0:T(1,128)}', space=vmem, size = 0x12000, scoped, tag = 'internal scratch']
  %s0 = inlined_call_operand.vmem [shape: s32[16,1], index: 0, kind: input, shape index: {}]
  %s1 = inlined_call_operand.vmem [shape: f32[2,32], index: 1, kind: input, shape index: {}]
  %s2 = inlined_call_operand.vmem [shape: f32[120,32], index: 2, kind: input, shape index: {}]
  %s3 = inlined_call_operand.vmem [shape: f32[32,128], index: 3, kind: input, shape index: {}]
  %s4 = inlined_call_operand.vmem [shape: f32[32,1152], index: 4, kind: input, shape index: {}]
  %s5 = inlined_call_operand.vmem [shape: f32[384,32], index: 5, kind: input, shape index: {}]
  %s6 = inlined_call_operand.vmem [shape: f32[16,128], index: 6, kind: output, shape index: {}]
  %s7 = sld [smem:[#allocation0]]
  $region34: #{forward.1} parent=0
    _
  %s9 = ssub.s32 1, %s7
  %s10 = scalar_select 0, %s9, %s7
  // Predicated region
  $region2: #{forward.1} parent=0 // pred_check
    _
  $region3: #{forward.1} parent=0 // pred_check_branch
    %12 = sbr.rel (0) target = $region5
  $region4: #{forward.1} parent=0 // pred_region
    _
  $region5: #{forward.1} parent=0 // pred_fallthru
    _
  // Predicated region
  $region6: #{forward.1} parent=0 // pred_check
    _
  $region7: #{forward.1} parent=0 // pred_check_branch
    %14 = sbr.rel (0) target = $region9
  $region8: #{forward.1} parent=0 // pred_region
    _
  $region9: #{forward.1} parent=0 // pred_fallthru
    _
  // Predicated region
  $region10: #{forward.1} parent=0 // pred_check
    _
  $region11: #{forward.1} parent=0 // pred_check_branch
    %16 = sbr.rel (0) target = $region13
  $region12: #{forward.1} parent=0 // pred_region
    _
  $region13: #{forward.1} parent=0 // pred_fallthru
    _
  // Predicated region
  $region14: #{forward.1} parent=0 // pred_check
    _
  $region15: #{forward.1} parent=0 // pred_check_branch
    %18 = sbr.rel (0) target = $region17
  $region16: #{forward.1} parent=0 // pred_region
    _
  $region17: #{forward.1} parent=0 // pred_fallthru
    _
  // Predicated region
  $region18: #{forward.1} parent=0 // pred_check
    _
  $region19: #{forward.1} parent=0 // pred_check_branch
    %20 = sbr.rel (0) target = $region21
  $region20: #{forward.1} parent=0 // pred_region
    _
  $region21: #{forward.1} parent=0 // pred_fallthru
    _
  // Predicated region
  $region22: #{forward.1} parent=0 // pred_check
    _
  $region23: #{forward.1} parent=0 // pred_check_branch
    %22 = sbr.rel (0) target = $region25
  $region24: #{forward.1} parent=0 // pred_region
    _
  $region25: #{forward.1} parent=0 // pred_fallthru
    _
  %v23 = vld [vmem:[%s3] sm:$0xff]
  %v24 = vld [vmem:[%s3 + $0x8] sm:$0xff]
  %v25 = vld [vmem:[%s3 + $0x10] sm:$0xff]
  %v26 = vld [vmem:[%s3 + $0x18] sm:$0xff]
  %v27 = vld [vmem:[%s0] sm:$0xff]
  %v28 = vld [vmem:[%s0 + $0x8] sm:$0xff]
  %v29 = vlaneseq
  %v30 = vand.u32 %v29, 127
  %31 = vset.pattern.permute.xlu0 0
  %32 = vperm.xlu0 %31, %v27
  %v33 = vpop.permute.xlu0 %32
  %34 = vset.pattern.permute.xlu0 0
  %35 = vperm.xlu0 %34, %v28
  %v36 = vpop.permute.xlu0 %35
  %vm37 = vcmp.eq.s32.totalorder %v30, %v33
  %vm38 = vcmp.eq.s32.totalorder %v30, %v36
  %v39 = vsel %vm37, 1, 0
  %v40 = vsel %vm38, 1, 0
  %v41 = vcvt.s32.f32 %v39
  %v42 = vcvt.s32.f32 %v40
  %v43 = vld [vmem:[%s2] sm:$0xff]
  %v44 = vld [vmem:[%s2 + $0x8] sm:$0xff]
  %v45 = vld [vmem:[%s2 + $0x10] sm:$0xff]
  %v46 = vld [vmem:[%s2 + $0x18] sm:$0xff]
  %v47 = vld [vmem:[%s2 + $0x20] sm:$0xff]
  %v48 = vld [vmem:[%s2 + $0x28] sm:$0xff]
  %v49 = vld [vmem:[%s2 + $0x30] sm:$0xff]
  %v50 = vld [vmem:[%s2 + $0x38] sm:$0xff]
  %vm51 = vcmask 457728
  %v53 = vsel %vm51, %v41, 0
  %v56 = vsel %vm51, %v42, 0
  %58 = vmatprep.subr.mxu0 0.0
  %59 = vmatpush1.msra.mxu0 %v43
  %60 = vmatprep.subr.mxu0 0.0
  %61 = vmatpush1.msra.mxu0 %v44
  %62 = vmatprep.subr.mxu0 0.0
  %63 = vmatpush1.msra.mxu0 %v45
  %64 = vmatprep.subr.mxu0 0.0
  %65 = vmatpush1.msra.mxu0 %v46
  %66 = vmatprep.subr.mxu0 0.0
  %67 = vmatpush1.msra.mxu0 %v47
  %68 = vmatprep.subr.mxu0 0.0
  %69 = vmatpush1.msra.mxu0 %v48
  %70 = vmatprep.subr.mxu0 0.0
  %71 = vmatpush1.msra.mxu0 %v49
  %72 = vmatprep.subr.mxu0 0.0
  %73 = vmatpush1.msra.mxu0 0.0
  %74 = vmatprep.subr.mxu0 0.0
  %75 = vmatpush1.msra.mxu0 0.0
  %76 = vmatprep.subr.mxu0 0.0
  %77 = vmatpush1.msra.mxu0 0.0
  %78 = vmatprep.subr.mxu0 0.0
  %79 = vmatpush1.msra.mxu0 0.0
  %80 = vmatprep.subr.mxu0 0.0
  %81 = vmatpush1.msra.mxu0 0.0
  %82 = vmatprep.subr.mxu0 0.0
  %83 = vmatpush1.msra.mxu0 0.0
  %84 = vmatprep.subr.mxu0 0.0
  %85 = vmatpush1.msra.mxu0 0.0
  %86 = vmatprep.subr.mxu0 0.0
  %87 = vmatpush1.msra.mxu0 0.0
  %88 = vmatprep.subr.mxu0 0.0
  %89 = vmatpush1.msra.mxu0 0.0
  %90 = vmatprep.subr.mxu0 0.0
  %91 = vmatpush1.msra.mxu0 0.0
  %92 = vmatprep.subr.mxu0 0.0
  %93 = vmatpush1.msra.mxu0 0.0
  %94 = vmatprep.subr.mxu0 0.0
  %95 = vmatpush1.msra.mxu0 0.0
  %96 = vmatprep.subr.mxu0 0.0
  %97 = vmatpush1.msra.mxu0 0.0
  %98 = vmatprep.subr.mxu0 0.0
  %99 = vmatpush1.msra.mxu0 0.0
  %100 = vmatprep.subr.mxu0 0.0
  %101 = vmatpush1.msra.mxu0 0.0
  %102 = vmatprep.subr.mxu0 0.0
  %103 = vmatpush1.msra.mxu0 0.0
  %104 = vmatprep.subr.mxu0 0.0
  %105 = vmatpush1.msra.mxu0 0.0
  %106 = vmatprep.subr.mxu0 0.0
  %107 = vmatpush1.msra.mxu0 0.0
  %108 = vmatprep.subr.mxu0 0.0
  %109 = vmatpush1.msra.mxu0 0.0
  %110 = vmatprep.subr.mxu0 0.0
  %111 = vmatpush1.msra.mxu0 0.0
  %112 = vmatprep.subr.mxu0 0.0
  %113 = vmatpush1.msra.mxu0 0.0
  %114 = vmatprep.subr.mxu0 0.0
  %115 = vmatpush1.msra.mxu0 0.0
  %116 = vmatprep.subr.mxu0 0.0
  %117 = vmatpush1.msra.mxu0 0.0
  %118 = vmatprep.subr.mxu0 0.0
  %119 = vmatpush1.msra.mxu0 0.0
  %120 = vmatprep.subr.mxu0 0.0
  %121 = vmatpush1.msra.mxu0 0.0
  %122 = vmatprep.mubr.f32.mxu0 0.0
  %123 = vmatmul.mubr.f32.gmra.mrb[0].mxu0 %v53
  %v124 = vpop.f32.mrb[0].mxu0
  %v125 = vadd.f32 %v50, %v124
  %v126 = vpop.f32.mrb[0].mxu0
  %127 = vmatprep.mubr.f32.mxu0 0.0
  %128 = vmatmul.mubr.f32.gmra.mrb[0].mxu0 %v56
  %v129 = vpop.f32.mrb[0].mxu0
  %v130 = vadd.f32 %v50, %v129
  %v131 = vpop.f32.mrb[0].mxu0
  %132 = vdwg.mxu0
  %vm133 = vcmask 261120
  %v134 = vsel %vm133, %v125, 0.0
  %135 = vadd.xlane.f32.xlu0 %v134
  %v136 = vpop.xlane.xlu0 %135
  %v137 = vsel %vm133, %v130, 0.0
  %138 = vadd.xlane.f32.xlu0 %v137
  %v139 = vpop.xlane.xlu0 %138
  %v140 = vrcp.pop 32.0
  %v141 = vmul.f32 %v136, %v140
  %v142 = vmul.f32 %v139, %v140
  %v143 = vsub.f32 %v125, %v141
  %v144 = vsub.f32 %v130, %v142
  %v145 = vmul.f32 %v143, %v143
  %v146 = vmul.f32 %v144, %v144
  %v147 = vsel %vm133, %v145, 0.0
  %148 = vadd.xlane.f32.xlu0 %v147
  %v149 = vpop.xlane.xlu0 %148
  %v150 = vsel %vm133, %v146, 0.0
  %151 = vadd.xlane.f32.xlu0 %v150
  %v152 = vpop.xlane.xlu0 %151
  %v153 = vmul.f32 %v149, %v140
  %v154 = vmul.f32 %v152, %v140
  %v155 = vadd.f32 %v153, 1e-12
  %v156 = vadd.f32 %v154, 1e-12
  %v157 = vrsqrt.pop %v155
  %v158 = vrsqrt.pop %v156
  %v159 = vmul.f32 %v143, %v157
  %v160 = vmul.f32 %v144, %v158
  %v161 = vlaneseq
  %v162 = vshrl.u32 %v161, 7
  %v163 = vsub.s32 0, %v162
  %v164 = vrot.slane %v23, %v163
  %v165 = vmul.f32 %v159, %v164
  %v166 = vmul.f32 %v160, %v164
  %v167 = vlaneseq
  %v168 = vshrl.u32 %v167, 7
  %v169 = vsub.s32 1, %v168
  %v170 = vrot.slane %v23, %v169
  %v171 = vadd.f32 %v165, %v170
  %v172 = vadd.f32 %v166, %v170
  %v173 = vld [vmem:[%s1] sm:$0x3]
  %v174 = vld [vmem:[%s4] sm:$0xff]
  %v175 = vld [vmem:[%s4 + $0x48] sm:$0xff]
  %v176 = vld [vmem:[%s4 + $0x90] sm:$0xff]
  %v177 = vld [vmem:[%s4 + $0xd8] sm:$0xff]
  %v178 = vlaneseq
  %v179 = vshrl.u32 %v178, 7
  %v180 = vsub.s32 4, %v179
  %v181 = vrot.slane %v23, %v180
  %v183 = vsel %vm133, %v173, 0
  %185 = vmatprep.subr.mxu0 0.0
  %186 = vmatpush1.msra.mxu0 %v174
  %187 = vmatprep.subr.mxu0 0.0
  %188 = vmatpush1.msra.mxu0 %v175
  %189 = vmatprep.subr.mxu0 0.0
  %190 = vmatpush1.msra.mxu0 %v176
  %191 = vmatprep.subr.mxu0 0.0
  %192 = vmatpush1.msra.mxu0 %v177
  %193 = vmatprep.subr.mxu0 0.0
  %194 = vmatpush1.msra.mxu0 0.0
  %195 = vmatprep.subr.mxu0 0.0
  %196 = vmatpush1.msra.mxu0 0.0
  %197 = vmatprep.subr.mxu0 0.0
  %198 = vmatpush1.msra.mxu0 0.0
  %199 = vmatprep.subr.mxu0 0.0
  %200 = vmatpush1.msra.mxu0 0.0
  %201 = vmatprep.subr.mxu0 0.0
  %202 = vmatpush1.msra.mxu0 0.0
  %203 = vmatprep.subr.mxu0 0.0
  %204 = vmatpush1.msra.mxu0 0.0
  %205 = vmatprep.subr.mxu0 0.0
  %206 = vmatpush1.msra.mxu0 0.0
  %207 = vmatprep.subr.mxu0 0.0
  %208 = vmatpush1.msra.mxu0 0.0
  %209 = vmatprep.subr.mxu0 0.0
  %210 = vmatpush1.msra.mxu0 0.0
  %211 = vmatprep.subr.mxu0 0.0
  %212 = vmatpush1.msra.mxu0 0.0
  %213 = vmatprep.subr.mxu0 0.0
  %214 = vmatpush1.msra.mxu0 0.0
  %215 = vmatprep.subr.mxu0 0.0
  %216 = vmatpush1.msra.mxu0 0.0
  %217 = vmatprep.subr.mxu0 0.0
  %218 = vmatpush1.msra.mxu0 0.0
  %219 = vmatprep.subr.mxu0 0.0
  %220 = vmatpush1.msra.mxu0 0.0
  %221 = vmatprep.subr.mxu0 0.0
  %222 = vmatpush1.msra.mxu0 0.0
  %223 = vmatprep.subr.mxu0 0.0
  %224 = vmatpush1.msra.mxu0 0.0
  %225 = vmatprep.subr.mxu0 0.0
  %226 = vmatpush1.msra.mxu0 0.0
  %227 = vmatprep.subr.mxu0 0.0
  %228 = vmatpush1.msra.mxu0 0.0
  %229 = vmatprep.subr.mxu0 0.0
  %230 = vmatpush1.msra.mxu0 0.0
  %231 = vmatprep.subr.mxu0 0.0
  %232 = vmatpush1.msra.mxu0 0.0
  %233 = vmatprep.subr.mxu0 0.0
  %234 = vmatpush1.msra.mxu0 0.0
  %235 = vmatprep.subr.mxu0 0.0
  %236 = vmatpush1.msra.mxu0 0.0
  %237 = vmatprep.subr.mxu0 0.0
  %238 = vmatpush1.msra.mxu0 0.0
  %239 = vmatprep.subr.mxu0 0.0
  %240 = vmatpush1.msra.mxu0 0.0
  %241 = vmatprep.subr.mxu0 0.0
  %242 = vmatpush1.msra.mxu0 0.0
  %243 = vmatprep.subr.mxu0 0.0
  %244 = vmatpush1.msra.mxu0 0.0
  %245 = vmatprep.subr.mxu0 0.0
  %246 = vmatpush1.msra.mxu0 0.0
  %247 = vmatprep.subr.mxu0 0.0
  %248 = vmatpush1.msra.mxu0 0.0
  %249 = vmatprep.mubr.f32.mxu0 0.0
  %250 = vmatmul.mubr.f32.gmra.mrb[0].mxu0 %v183
  %v251 = vpop.f32.mrb[0].mxu0
  %v252 = vadd.f32 %v181, %v251
  %v253 = vpop.f32.mrb[0].mxu0
  %254 = vdwg.mxu0
  %v255 = vxor.u32 %v252, 2147483648
  %v256 = vmul.f32 %v255, 1.442695
  %v257 = vpow.pop %v256
  %v258 = vadd.f32 %v257, 1.0
  %v259 = vrcp.pop %v258
  %v260 = vmul.f32 1.0, %v259
  %v261 = vmul.f32 %v252, %v260
  %v262 = vld [vmem:[%s5] sm:$0xff]
  %v263 = vld [vmem:[%s5 + $0x8] sm:$0xff]
  %v264 = vld [vmem:[%s5 + $0x10] sm:$0xff]
  %v265 = vld [vmem:[%s5 + $0x18] sm:$0xff]
  %v266 = vld [vmem:[%s5 + $0x20] sm:$0xff]
  %v267 = vld [vmem:[%s5 + $0x28] sm:$0xff]
  %v268 = vld [vmem:[%s5 + $0x30] sm:$0xff]
  %v269 = vld [vmem:[%s5 + $0x38] sm:$0xff]
  %v270 = vld [vmem:[%s5 + $0x40] sm:$0xff]
  %v271 = vld [vmem:[%s5 + $0x48] sm:$0xff]
  %v272 = vld [vmem:[%s5 + $0x50] sm:$0xff]
  %v273 = vld [vmem:[%s5 + $0x58] sm:$0xff]
  %v274 = vld [vmem:[%s5 + $0x60] sm:$0xff]
  %v275 = vld [vmem:[%s5 + $0x68] sm:$0xff]
  %v276 = vld [vmem:[%s5 + $0x70] sm:$0xff]
  %v277 = vld [vmem:[%s5 + $0x78] sm:$0xff]
  %v278 = vlaneseq
  %v279 = vshrl.u32 %v278, 7
  %v280 = vsub.s32 5, %v279
  %v281 = vrot.slane %v23, %v280
  %282 = vmatprep.subr.mxu0 0.0
  %283 = vmatpush1.msra.mxu0 %v262
  %284 = vmatprep.subr.mxu0 0.0
  %285 = vmatpush1.msra.mxu0 %v263
  %286 = vmatprep.subr.mxu0 0.0
  %287 = vmatpush1.msra.mxu0 %v264
  %288 = vmatprep.subr.mxu0 0.0
  %289 = vmatpush1.msra.mxu0 %v265
  %290 = vmatprep.subr.mxu0 0.0
  %291 = vmatpush1.msra.mxu0 %v266
  %292 = vmatprep.subr.mxu0 0.0
  %293 = vmatpush1.msra.mxu0 %v267
  %294 = vmatprep.subr.mxu0 0.0
  %295 = vmatpush1.msra.mxu0 %v268
  %296 = vmatprep.subr.mxu0 0.0
  %297 = vmatpush1.msra.mxu0 %v269
  %298 = vmatprep.subr.mxu0 0.0
  %299 = vmatpush1.msra.mxu0 %v270
  %300 = vmatprep.subr.mxu0 0.0
  %301 = vmatpush1.msra.mxu0 %v271
  %302 = vmatprep.subr.mxu0 0.0
  %303 = vmatpush1.msra.mxu0 %v272
  %304 = vmatprep.subr.mxu0 0.0
  %305 = vmatpush1.msra.mxu0 %v273
  %306 = vmatprep.subr.mxu0 0.0
  %307 = vmatpush1.msra.mxu0 %v274
  %308 = vmatprep.subr.mxu0 0.0
  %309 = vmatpush1.msra.mxu0 %v275
  %310 = vmatprep.subr.mxu0 0.0
  %311 = vmatpush1.msra.mxu0 %v276
  %312 = vmatprep.subr.mxu0 0.0
  %313 = vmatpush1.msra.mxu0 %v277
  %314 = vmatprep.subr.mxu0 0.0
  %315 = vmatpush1.msra.mxu0 0.0
  %316 = vmatprep.subr.mxu0 0.0
  %317 = vmatpush1.msra.mxu0 0.0
  %318 = vmatprep.subr.mxu0 0.0
  %319 = vmatpush1.msra.mxu0 0.0
  %320 = vmatprep.subr.mxu0 0.0
  %321 = vmatpush1.msra.mxu0 0.0
  %322 = vmatprep.subr.mxu0 0.0
  %323 = vmatpush1.msra.mxu0 0.0
  %324 = vmatprep.subr.mxu0 0.0
  %325 = vmatpush1.msra.mxu0 0.0
  %326 = vmatprep.subr.mxu0 0.0
  %327 = vmatpush1.msra.mxu0 0.0
  %328 = vmatprep.subr.mxu0 0.0
  %329 = vmatpush1.msra.mxu0 0.0
  %330 = vmatprep.subr.mxu0 0.0
  %331 = vmatpush1.msra.mxu0 0.0
  %332 = vmatprep.subr.mxu0 0.0
  %333 = vmatpush1.msra.mxu0 0.0
  %334 = vmatprep.subr.mxu0 0.0
  %335 = vmatpush1.msra.mxu0 0.0
  %336 = vmatprep.subr.mxu0 0.0
  %337 = vmatpush1.msra.mxu0 0.0
  %338 = vmatprep.subr.mxu0 0.0
  %339 = vmatpush1.msra.mxu0 0.0
  %340 = vmatprep.subr.mxu0 0.0
  %341 = vmatpush1.msra.mxu0 0.0
  %342 = vmatprep.subr.mxu0 0.0
  %343 = vmatpush1.msra.mxu0 0.0
  %344 = vmatprep.subr.mxu0 0.0
  %345 = vmatpush1.msra.mxu0 0.0
  %346 = vmatprep.mubr.f32.mxu0 0.0
  %347 = vmatmul.mubr.f32.gmra.mrb[0].mxu0 %v261
  %v348 = vpop.f32.mrb[0].mxu0
  %v349 = vadd.f32 %v281, %v348
  %v350 = vpop.f32.mrb[0].mxu0
  %351 = vdwg.mxu0
  %v352 = vlaneseq
  %v353 = vshrl.u32 %v352, 7
  %v354 = vsub.s32 0, %v353
  %v355 = vrot.slane %v349, %v354
  %v356 = vlaneseq
  %v357 = vshrl.u32 %v356, 7
  %v358 = vsub.s32 1, %v357
  %v359 = vrot.slane %v349, %v358
  %v360 = vadd.f32 %v171, %v355
  %v361 = vadd.f32 %v172, %v359
  %v362 = vsel %vm133, %v360, 0.0
  %363 = vadd.xlane.f32.xlu0 %v362
  %v364 = vpop.xlane.xlu0 %363
  %v365 = vsel %vm133, %v361, 0.0
  %366 = vadd.xlane.f32.xlu0 %v365
  %v367 = vpop.xlane.xlu0 %366
  %v368 = vmul.f32 %v364, %v140
  %v369 = vmul.f32 %v367, %v140
  %v370 = vsub.f32 %v360, %v368
  %v371 = vsub.f32 %v361, %v369
  %v372 = vmul.f32 %v370, %v370
  %v373 = vmul.f32 %v371, %v371
  %v374 = vsel %vm133, %v372, 0.0
  %375 = vadd.xlane.f32.xlu0 %v374
  %v376 = vpop.xlane.xlu0 %375
  %v377 = vsel %vm133, %v373, 0.0
  %378 = vadd.xlane.f32.xlu0 %v377
  %v379 = vpop.xlane.xlu0 %378
  %v380 = vmul.f32 %v376, %v140
  %v381 = vmul.f32 %v379, %v140
  %v382 = vadd.f32 %v380, 1e-12
  %v383 = vadd.f32 %v381, 1e-12
  %v384 = vrsqrt.pop %v382
  %v385 = vrsqrt.pop %v383
  %v386 = vmul.f32 %v370, %v384
  %v387 = vmul.f32 %v371, %v385
  %v388 = vlaneseq
  %v389 = vshrl.u32 %v388, 7
  %v390 = vsub.s32 2, %v389
  %v391 = vrot.slane %v23, %v390
  %v392 = vmul.f32 %v386, %v391
  %v393 = vmul.f32 %v387, %v391
  %v394 = vlaneseq
  %v395 = vshrl.u32 %v394, 7
  %v396 = vsub.s32 3, %v395
  %v397 = vrot.slane %v23, %v396
  %v398 = vadd.f32 %v392, %v397
  %v399 = vadd.f32 %v393, %v397
  %v400 = vld [vmem:[%s4 + $0x8] sm:$0xff]
  %v401 = vld [vmem:[%s4 + $0x50] sm:$0xff]
  %v402 = vld [vmem:[%s4 + $0x98] sm:$0xff]
  %v403 = vld [vmem:[%s4 + $0xe0] sm:$0xff]
  %v404 = vlaneseq
  %v405 = vshrl.u32 %v404, 7
  %v406 = vsub.s32 6, %v405
  %v407 = vrot.slane %v23, %v406
  %v409 = vsel %vm133, %v398, 0
  %v412 = vsel %vm133, %v399, 0
  %414 = vmatprep.subr.mxu0 0.0
  %415 = vmatpush1.msra.mxu0 %v400
  %416 = vmatprep.subr.mxu0 0.0
  %417 = vmatpush1.msra.mxu0 %v401
  %418 = vmatprep.subr.mxu0 0.0
  %419 = vmatpush1.msra.mxu0 %v402
  %420 = vmatprep.subr.mxu0 0.0
  %421 = vmatpush1.msra.mxu0 %v403
  %422 = vmatprep.subr.mxu0 0.0
  %423 = vmatpush1.msra.mxu0 0.0
  %424 = vmatprep.subr.mxu0 0.0
  %425 = vmatpush1.msra.mxu0 0.0
  %426 = vmatprep.subr.mxu0 0.0
  %427 = vmatpush1.msra.mxu0 0.0
  %428 = vmatprep.subr.mxu0 0.0
  %429 = vmatpush1.msra.mxu0 0.0
  %430 = vmatprep.subr.mxu0 0.0
  %431 = vmatpush1.msra.mxu0 0.0
  %432 = vmatprep.subr.mxu0 0.0
  %433 = vmatpush1.msra.mxu0 0.0
  %434 = vmatprep.subr.mxu0 0.0
  %435 = vmatpush1.msra.mxu0 0.0
  %436 = vmatprep.subr.mxu0 0.0
  %437 = vmatpush1.msra.mxu0 0.0
  %438 = vmatprep.subr.mxu0 0.0
  %439 = vmatpush1.msra.mxu0 0.0
  %440 = vmatprep.subr.mxu0 0.0
  %441 = vmatpush1.msra.mxu0 0.0
  %442 = vmatprep.subr.mxu0 0.0
  %443 = vmatpush1.msra.mxu0 0.0
  %444 = vmatprep.subr.mxu0 0.0
  %445 = vmatpush1.msra.mxu0 0.0
  %446 = vmatprep.subr.mxu0 0.0
  %447 = vmatpush1.msra.mxu0 0.0
  %448 = vmatprep.subr.mxu0 0.0
  %449 = vmatpush1.msra.mxu0 0.0
  %450 = vmatprep.subr.mxu0 0.0
  %451 = vmatpush1.msra.mxu0 0.0
  %452 = vmatprep.subr.mxu0 0.0
  %453 = vmatpush1.msra.mxu0 0.0
  %454 = vmatprep.subr.mxu0 0.0
  %455 = vmatpush1.msra.mxu0 0.0
  %456 = vmatprep.subr.mxu0 0.0
  %457 = vmatpush1.msra.mxu0 0.0
  %458 = vmatprep.subr.mxu0 0.0
  %459 = vmatpush1.msra.mxu0 0.0
  %460 = vmatprep.subr.mxu0 0.0
  %461 = vmatpush1.msra.mxu0 0.0
  %462 = vmatprep.subr.mxu0 0.0
  %463 = vmatpush1.msra.mxu0 0.0
  %464 = vmatprep.subr.mxu0 0.0
  %465 = vmatpush1.msra.mxu0 0.0
  %466 = vmatprep.subr.mxu0 0.0
  %467 = vmatpush1.msra.mxu0 0.0
  %468 = vmatprep.subr.mxu0 0.0
  %469 = vmatpush1.msra.mxu0 0.0
  %470 = vmatprep.subr.mxu0 0.0
  %471 = vmatpush1.msra.mxu0 0.0
  %472 = vmatprep.subr.mxu0 0.0
  %473 = vmatpush1.msra.mxu0 0.0
  %474 = vmatprep.subr.mxu0 0.0
  %475 = vmatpush1.msra.mxu0 0.0
  %476 = vmatprep.subr.mxu0 0.0
  %477 = vmatpush1.msra.mxu0 0.0
  %478 = vmatprep.mubr.f32.mxu0 0.0
  %479 = vmatmul.mubr.f32.gmra.mrb[0].mxu0 %v409
  %v480 = vpop.f32.mrb[0].mxu0
  %v481 = vadd.f32 %v407, %v480
  %v482 = vpop.f32.mrb[0].mxu0
  %483 = vmatprep.mubr.f32.mxu0 0.0
  %484 = vmatmul.mubr.f32.gmra.mrb[0].mxu0 %v412
  %v485 = vpop.f32.mrb[0].mxu0
  %v486 = vadd.f32 %v407, %v485
  %v487 = vpop.f32.mrb[0].mxu0
  %488 = vdwg.mxu0
  %491 = vrot.lane.b32.xlu0 %v481, 120
  %v492 = vpop.permute.xlu0 %491
  %493 = vrot.lane.b32.xlu0 %v486, 120
  %v494 = vpop.permute.xlu0 %493
  %495 = vrot.lane.b32.xlu0 %v481, 112
  %v496 = vpop.permute.xlu0 %495
  %497 = vrot.lane.b32.xlu0 %v486, 112
  %v498 = vpop.permute.xlu0 %497
  %499 = vrot.lane.b32.xlu0 %v481, 104
  %v500 = vpop.permute.xlu0 %499
  %501 = vrot.lane.b32.xlu0 %v486, 104
  %v502 = vpop.permute.xlu0 %501
  %503 = vrot.lane.b32.xlu0 %v481, 96
  %v504 = vpop.permute.xlu0 %503
  %vm505 = vcmask 64512
  %v506 = vsel %vm505, %v481, 0
  %v508 = vsel %vm505, %v504, 0
  %510 = vmatprep.subr.mxu0 0.0
  %511 = vmatpush1.xpose.msra.mxu0 %v508
  %512 = vmatprep.subr.mxu0 0.0
  %513 = vmatpush1.xpose.msra.mxu0 0.0
  %514 = vmatprep.subr.mxu0 0.0
  %515 = vmatpush1.xpose.msra.mxu0 0.0
  %516 = vmatprep.subr.mxu0 0.0
  %517 = vmatpush1.xpose.msra.mxu0 0.0
  %518 = vmatprep.subr.mxu0 0.0
  %519 = vmatpush1.xpose.msra.mxu0 0.0
  %520 = vmatprep.subr.mxu0 0.0
  %521 = vmatpush1.xpose.msra.mxu0 0.0
  %522 = vmatprep.subr.mxu0 0.0
  %523 = vmatpush1.xpose.msra.mxu0 0.0
  %524 = vmatprep.subr.mxu0 0.0
  %525 = vmatpush1.xpose.msra.mxu0 0.0
  %526 = vmatprep.subr.mxu0 0.0
  %527 = vmatpush1.xpose.msra.mxu0 0.0
  %528 = vmatprep.subr.mxu0 0.0
  %529 = vmatpush1.xpose.msra.mxu0 0.0
  %530 = vmatprep.subr.mxu0 0.0
  %531 = vmatpush1.xpose.msra.mxu0 0.0
  %532 = vmatprep.subr.mxu0 0.0
  %533 = vmatpush1.xpose.msra.mxu0 0.0
  %534 = vmatprep.subr.mxu0 0.0
  %535 = vmatpush1.xpose.msra.mxu0 0.0
  %536 = vmatprep.subr.mxu0 0.0
  %537 = vmatpush1.xpose.msra.mxu0 0.0
  %538 = vmatprep.subr.mxu0 0.0
  %539 = vmatpush1.xpose.msra.mxu0 0.0
  %540 = vmatprep.subr.mxu0 0.0
  %541 = vmatpush1.xpose.msra.mxu0 0.0
  %542 = vmatprep.subr.mxu0 0.0
  %543 = vmatpush1.xpose.msra.mxu0 0.0
  %544 = vmatprep.subr.mxu0 0.0
  %545 = vmatpush1.xpose.msra.mxu0 0.0
  %546 = vmatprep.subr.mxu0 0.0
  %547 = vmatpush1.xpose.msra.mxu0 0.0
  %548 = vmatprep.subr.mxu0 0.0
  %549 = vmatpush1.xpose.msra.mxu0 0.0
  %550 = vmatprep.subr.mxu0 0.0
  %551 = vmatpush1.xpose.msra.mxu0 0.0
  %552 = vmatprep.subr.mxu0 0.0
  %553 = vmatpush1.xpose.msra.mxu0 0.0
  %554 = vmatprep.subr.mxu0 0.0
  %555 = vmatpush1.xpose.msra.mxu0 0.0
  %556 = vmatprep.subr.mxu0 0.0
  %557 = vmatpush1.xpose.msra.mxu0 0.0
  %558 = vmatprep.subr.mxu0 0.0
  %559 = vmatpush1.xpose.msra.mxu0 0.0
  %560 = vmatprep.subr.mxu0 0.0
  %561 = vmatpush1.xpose.msra.mxu0 0.0
  %562 = vmatprep.subr.mxu0 0.0
  %563 = vmatpush1.xpose.msra.mxu0 0.0
  %564 = vmatprep.subr.mxu0 0.0
  %565 = vmatpush1.xpose.msra.mxu0 0.0
  %566 = vmatprep.subr.mxu0 0.0
  %567 = vmatpush1.xpose.msra.mxu0 0.0
  %568 = vmatprep.subr.mxu0 0.0
  %569 = vmatpush1.xpose.msra.mxu0 0.0
  %570 = vmatprep.subr.mxu0 0.0
  %571 = vmatpush1.xpose.msra.mxu0 0.0
  %572 = vmatprep.subr.mxu0 0.0
  %573 = vmatpush1.xpose.msra.mxu0 0.0
  %574 = vmatprep.mubr.f32.mxu0 0.0
  %575 = vmatmul.mubr.f32.gmra.mrb[0].mxu0 %v506
  %v576 = vpop.f32.mrb[0].mxu0
  %v577 = vadd.f32 0.0, %v576
  %v578 = vpop.f32.mrb[0].mxu0
  %579 = vdwg.mxu0
  %580 = vrot.lane.b32.xlu0 %v486, 96
  %v581 = vpop.permute.xlu0 %580
  %v582 = vsel %vm505, %v486, 0
  %v584 = vsel %vm505, %v581, 0
  %586 = vmatprep.subr.mxu0 0.0
  %587 = vmatpush1.xpose.msra.mxu0 %v584
  %588 = vmatprep.subr.mxu0 0.0
  %589 = vmatpush1.xpose.msra.mxu0 0.0
  %590 = vmatprep.subr.mxu0 0.0
  %591 = vmatpush1.xpose.msra.mxu0 0.0
  %592 = vmatprep.subr.mxu0 0.0
  %593 = vmatpush1.xpose.msra.mxu0 0.0
  %594 = vmatprep.subr.mxu0 0.0
  %595 = vmatpush1.xpose.msra.mxu0 0.0
  %596 = vmatprep.subr.mxu0 0.0
  %597 = vmatpush1.xpose.msra.mxu0 0.0
  %598 = vmatprep.subr.mxu0 0.0
  %599 = vmatpush1.xpose.msra.mxu0 0.0
  %600 = vmatprep.subr.mxu0 0.0
  %601 = vmatpush1.xpose.msra.mxu0 0.0
  %602 = vmatprep.subr.mxu0 0.0
  %603 = vmatpush1.xpose.msra.mxu0 0.0
  %604 = vmatprep.subr.mxu0 0.0
  %605 = vmatpush1.xpose.msra.mxu0 0.0
  %606 = vmatprep.subr.mxu0 0.0
  %607 = vmatpush1.xpose.msra.mxu0 0.0
  %608 = vmatprep.subr.mxu0 0.0
  %609 = vmatpush1.xpose.msra.mxu0 0.0
  %610 = vmatprep.subr.mxu0 0.0
  %611 = vmatpush1.xpose.msra.mxu0 0.0
  %612 = vmatprep.subr.mxu0 0.0
  %613 = vmatpush1.xpose.msra.mxu0 0.0
  %614 = vmatprep.subr.mxu0 0.0
  %615 = vmatpush1.xpose.msra.mxu0 0.0
  %616 = vmatprep.subr.mxu0 0.0
  %617 = vmatpush1.xpose.msra.mxu0 0.0
  %618 = vmatprep.subr.mxu0 0.0
  %619 = vmatpush1.xpose.msra.mxu0 0.0
  %620 = vmatprep.subr.mxu0 0.0
  %621 = vmatpush1.xpose.msra.mxu0 0.0
  %622 = vmatprep.subr.mxu0 0.0
  %623 = vmatpush1.xpose.msra.mxu0 0.0
  %624 = vmatprep.subr.mxu0 0.0
  %625 = vmatpush1.xpose.msra.mxu0 0.0
  %626 = vmatprep.subr.mxu0 0.0
  %627 = vmatpush1.xpose.msra.mxu0 0.0
  %628 = vmatprep.subr.mxu0 0.0
  %629 = vmatpush1.xpose.msra.mxu0 0.0
  %630 = vmatprep.subr.mxu0 0.0
  %631 = vmatpush1.xpose.msra.mxu0 0.0
  %632 = vmatprep.subr.mxu0 0.0
  %633 = vmatpush1.xpose.msra.mxu0 0.0
  %634 = vmatprep.subr.mxu0 0.0
  %635 = vmatpush1.xpose.msra.mxu0 0.0
  %636 = vmatprep.subr.mxu0 0.0
  %637 = vmatpush1.xpose.msra.mxu0 0.0
  %638 = vmatprep.subr.mxu0 0.0
  %639 = vmatpush1.xpose.msra.mxu0 0.0
  %640 = vmatprep.subr.mxu0 0.0
  %641 = vmatpush1.xpose.msra.mxu0 0.0
  %642 = vmatprep.subr.mxu0 0.0
  %643 = vmatpush1.xpose.msra.mxu0 0.0
  %644 = vmatprep.subr.mxu0 0.0
  %645 = vmatpush1.xpose.msra.mxu0 0.0
  %646 = vmatprep.subr.mxu0 0.0
  %647 = vmatpush1.xpose.msra.mxu0 0.0
  %648 = vmatprep.subr.mxu0 0.0
  %649 = vmatpush1.xpose.msra.mxu0 0.0
  %650 = vmatprep.mubr.f32.mxu0 0.0
  %651 = vmatmul.mubr.f32.gmra.mrb[0].mxu0 %v582
  %v652 = vpop.f32.mrb[0].mxu0
  %v653 = vadd.f32 0.0, %v652
  %v654 = vpop.f32.mrb[0].mxu0
  %655 = vdwg.mxu0
  %656 = vrot.lane.b32.xlu0 %v492, 96
  %v657 = vpop.permute.xlu0 %656
  %v658 = vsel %vm505, %v492, 0
  %v660 = vsel %vm505, %v657, 0
  %662 = vmatprep.subr.mxu0 0.0
  %663 = vmatpush1.xpose.msra.mxu0 %v660
  %664 = vmatprep.subr.mxu0 0.0
  %665 = vmatpush1.xpose.msra.mxu0 0.0
  %666 = vmatprep.subr.mxu0 0.0
  %667 = vmatpush1.xpose.msra.mxu0 0.0
  %668 = vmatprep.subr.mxu0 0.0
  %669 = vmatpush1.xpose.msra.mxu0 0.0
  %670 = vmatprep.subr.mxu0 0.0
  %671 = vmatpush1.xpose.msra.mxu0 0.0
  %672 = vmatprep.subr.mxu0 0.0
  %673 = vmatpush1.xpose.msra.mxu0 0.0
  %674 = vmatprep.subr.mxu0 0.0
  %675 = vmatpush1.xpose.msra.mxu0 0.0
  %676 = vmatprep.subr.mxu0 0.0
  %677 = vmatpush1.xpose.msra.mxu0 0.0
  %678 = vmatprep.subr.mxu0 0.0
  %679 = vmatpush1.xpose.msra.mxu0 0.0
  %680 = vmatprep.subr.mxu0 0.0
  %681 = vmatpush1.xpose.msra.mxu0 0.0
  %682 = vmatprep.subr.mxu0 0.0
  %683 = vmatpush1.xpose.msra.mxu0 0.0
  %684 = vmatprep.subr.mxu0 0.0
  %685 = vmatpush1.xpose.msra.mxu0 0.0
  %686 = vmatprep.subr.mxu0 0.0
  %687 = vmatpush1.xpose.msra.mxu0 0.0
  %688 = vmatprep.subr.mxu0 0.0
  %689 = vmatpush1.xpose.msra.mxu0 0.0
  %690 = vmatprep.subr.mxu0 0.0
  %691 = vmatpush1.xpose.msra.mxu0 0.0
  %692 = vmatprep.subr.mxu0 0.0
  %693 = vmatpush1.xpose.msra.mxu0 0.0
  %694 = vmatprep.subr.mxu0 0.0
  %695 = vmatpush1.xpose.msra.mxu0 0.0
  %696 = vmatprep.subr.mxu0 0.0
  %697 = vmatpush1.xpose.msra.mxu0 0.0
  %698 = vmatprep.subr.mxu0 0.0
  %699 = vmatpush1.xpose.msra.mxu0 0.0
  %700 = vmatprep.subr.mxu0 0.0
  %701 = vmatpush1.xpose.msra.mxu0 0.0
  %702 = vmatprep.subr.mxu0 0.0
  %703 = vmatpush1.xpose.msra.mxu0 0.0
  %704 = vmatprep.subr.mxu0 0.0
  %705 = vmatpush1.xpose.msra.mxu0 0.0
  %706 = vmatprep.subr.mxu0 0.0
  %707 = vmatpush1.xpose.msra.mxu0 0.0
  %708 = vmatprep.subr.mxu0 0.0
  %709 = vmatpush1.xpose.msra.mxu0 0.0
  %710 = vmatprep.subr.mxu0 0.0
  %711 = vmatpush1.xpose.msra.mxu0 0.0
  %712 = vmatprep.subr.mxu0 0.0
  %713 = vmatpush1.xpose.msra.mxu0 0.0
  %714 = vmatprep.subr.mxu0 0.0
  %715 = vmatpush1.xpose.msra.mxu0 0.0
  %716 = vmatprep.subr.mxu0 0.0
  %717 = vmatpush1.xpose.msra.mxu0 0.0
  %718 = vmatprep.subr.mxu0 0.0
  %719 = vmatpush1.xpose.msra.mxu0 0.0
  %720 = vmatprep.subr.mxu0 0.0
  %721 = vmatpush1.xpose.msra.mxu0 0.0
  %722 = vmatprep.subr.mxu0 0.0
  %723 = vmatpush1.xpose.msra.mxu0 0.0
  %724 = vmatprep.subr.mxu0 0.0
  %725 = vmatpush1.xpose.msra.mxu0 0.0
  %726 = vmatprep.mubr.f32.mxu0 0.0
  %727 = vmatmul.mubr.f32.gmra.mrb[0].mxu0 %v658
  %v728 = vpop.f32.mrb[0].mxu0
  %v729 = vadd.f32 0.0, %v728
  %v730 = vpop.f32.mrb[0].mxu0
  %731 = vdwg.mxu0
  %732 = vrot.lane.b32.xlu0 %v494, 96
  %v733 = vpop.permute.xlu0 %732
  %v734 = vsel %vm505, %v494, 0
  %v736 = vsel %vm505, %v733, 0
  %738 = vmatprep.subr.mxu0 0.0
  %739 = vmatpush1.xpose.msra.mxu0 %v736
  %740 = vmatprep.subr.mxu0 0.0
  %741 = vmatpush1.xpose.msra.mxu0 0.0
  %742 = vmatprep.subr.mxu0 0.0
  %743 = vmatpush1.xpose.msra.mxu0 0.0
  %744 = vmatprep.subr.mxu0 0.0
  %745 = vmatpush1.xpose.msra.mxu0 0.0
  %746 = vmatprep.subr.mxu0 0.0
  %747 = vmatpush1.xpose.msra.mxu0 0.0
  %748 = vmatprep.subr.mxu0 0.0
  %749 = vmatpush1.xpose.msra.mxu0 0.0
  %750 = vmatprep.subr.mxu0 0.0
  %751 = vmatpush1.xpose.msra.mxu0 0.0
  %752 = vmatprep.subr.mxu0 0.0
  %753 = vmatpush1.xpose.msra.mxu0 0.0
  %754 = vmatprep.subr.mxu0 0.0
  %755 = vmatpush1.xpose.msra.mxu0 0.0
  %756 = vmatprep.subr.mxu0 0.0
  %757 = vmatpush1.xpose.msra.mxu0 0.0
  %758 = vmatprep.subr.mxu0 0.0
  %759 = vmatpush1.xpose.msra.mxu0 0.0
  %760 = vmatprep.subr.mxu0 0.0
  %761 = vmatpush1.xpose.msra.mxu0 0.0
  %762 = vmatprep.subr.mxu0 0.0
  %763 = vmatpush1.xpose.msra.mxu0 0.0
  %764 = vmatprep.subr.mxu0 0.0
  %765 = vmatpush1.xpose.msra.mxu0 0.0
  %766 = vmatprep.subr.mxu0 0.0
  %767 = vmatpush1.xpose.msra.mxu0 0.0
  %768 = vmatprep.subr.mxu0 0.0
  %769 = vmatpush1.xpose.msra.mxu0 0.0
  %770 = vmatprep.subr.mxu0 0.0
  %771 = vmatpush1.xpose.msra.mxu0 0.0
  %772 = vmatprep.subr.mxu0 0.0
  %773 = vmatpush1.xpose.msra.mxu0 0.0
  %774 = vmatprep.subr.mxu0 0.0
  %775 = vmatpush1.xpose.msra.mxu0 0.0
  %776 = vmatprep.subr.mxu0 0.0
  %777 = vmatpush1.xpose.msra.mxu0 0.0
  %778 = vmatprep.subr.mxu0 0.0
  %779 = vmatpush1.xpose.msra.mxu0 0.0
  %780 = vmatprep.subr.mxu0 0.0
  %781 = vmatpush1.xpose.msra.mxu0 0.0
  %782 = vmatprep.subr.mxu0 0.0
  %783 = vmatpush1.xpose.msra.mxu0 0.0
  %784 = vmatprep.subr.mxu0 0.0
  %785 = vmatpush1.xpose.msra.mxu0 0.0
  %786 = vmatprep.subr.mxu0 0.0
  %787 = vmatpush1.xpose.msra.mxu0 0.0
  %788 = vmatprep.subr.mxu0 0.0
  %789 = vmatpush1.xpose.msra.mxu0 0.0
  %790 = vmatprep.subr.mxu0 0.0
  %791 = vmatpush1.xpose.msra.mxu0 0.0
  %792 = vmatprep.subr.mxu0 0.0
  %793 = vmatpush1.xpose.msra.mxu0 0.0
  %794 = vmatprep.subr.mxu0 0.0
  %795 = vmatpush1.xpose.msra.mxu0 0.0
  %796 = vmatprep.subr.mxu0 0.0
  %797 = vmatpush1.xpose.msra.mxu0 0.0
  %798 = vmatprep.subr.mxu0 0.0
  %799 = vmatpush1.xpose.msra.mxu0 0.0
  %800 = vmatprep.subr.mxu0 0.0
  %801 = vmatpush1.xpose.msra.mxu0 0.0
  %802 = vmatprep.mubr.f32.mxu0 0.0
  %803 = vmatmul.mubr.f32.gmra.mrb[0].mxu0 %v734
  %v804 = vpop.f32.mrb[0].mxu0
  %v805 = vadd.f32 0.0, %v804
  %v806 = vpop.f32.mrb[0].mxu0
  %807 = vdwg.mxu0
  %808 = vrot.lane.b32.xlu0 %v496, 96
  %v809 = vpop.permute.xlu0 %808
  %v810 = vsel %vm505, %v496, 0
  %v812 = vsel %vm505, %v809, 0
  %814 = vmatprep.subr.mxu0 0.0
  %815 = vmatpush1.xpose.msra.mxu0 %v812
  %816 = vmatprep.subr.mxu0 0.0
  %817 = vmatpush1.xpose.msra.mxu0 0.0
  %818 = vmatprep.subr.mxu0 0.0
  %819 = vmatpush1.xpose.msra.mxu0 0.0
  %820 = vmatprep.subr.mxu0 0.0
  %821 = vmatpush1.xpose.msra.mxu0 0.0
  %822 = vmatprep.subr.mxu0 0.0
  %823 = vmatpush1.xpose.msra.mxu0 0.0
  %824 = vmatprep.subr.mxu0 0.0
  %825 = vmatpush1.xpose.msra.mxu0 0.0
  %826 = vmatprep.subr.mxu0 0.0
  %827 = vmatpush1.xpose.msra.mxu0 0.0
  %828 = vmatprep.subr.mxu0 0.0
  %829 = vmatpush1.xpose.msra.mxu0 0.0
  %830 = vmatprep.subr.mxu0 0.0
  %831 = vmatpush1.xpose.msra.mxu0 0.0
  %832 = vmatprep.subr.mxu0 0.0
  %833 = vmatpush1.xpose.msra.mxu0 0.0
  %834 = vmatprep.subr.mxu0 0.0
  %835 = vmatpush1.xpose.msra.mxu0 0.0
  %836 = vmatprep.subr.mxu0 0.0
  %837 = vmatpush1.xpose.msra.mxu0 0.0
  %838 = vmatprep.subr.mxu0 0.0
  %839 = vmatpush1.xpose.msra.mxu0 0.0
  %840 = vmatprep.subr.mxu0 0.0
  %841 = vmatpush1.xpose.msra.mxu0 0.0
  %842 = vmatprep.subr.mxu0 0.0
  %843 = vmatpush1.xpose.msra.mxu0 0.0
  %844 = vmatprep.subr.mxu0 0.0
  %845 = vmatpush1.xpose.msra.mxu0 0.0
  %846 = vmatprep.subr.mxu0 0.0
  %847 = vmatpush1.xpose.msra.mxu0 0.0
  %848 = vmatprep.subr.mxu0 0.0
  %849 = vmatpush1.xpose.msra.mxu0 0.0
  %850 = vmatprep.subr.mxu0 0.0
  %851 = vmatpush1.xpose.msra.mxu0 0.0
  %852 = vmatprep.subr.mxu0 0.0
  %853 = vmatpush1.xpose.msra.mxu0 0.0
  %854 = vmatprep.subr.mxu0 0.0
  %855 = vmatpush1.xpose.msra.mxu0 0.0
  %856 = vmatprep.subr.mxu0 0.0
  %857 = vmatpush1.xpose.msra.mxu0 0.0
  %858 = vmatprep.subr.mxu0 0.0
  %859 = vmatpush1.xpose.msra.mxu0 0.0
  %860 = vmatprep.subr.mxu0 0.0
  %861 = vmatpush1.xpose.msra.mxu0 0.0
  %862 = vmatprep.subr.mxu0 0.0
  %863 = vmatpush1.xpose.msra.mxu0 0.0
  %864 = vmatprep.subr.mxu0 0.0
  %865 = vmatpush1.xpose.msra.mxu0 0.0
  %866 = vmatprep.subr.mxu0 0.0
  %867 = vmatpush1.xpose.msra.mxu0 0.0
  %868 = vmatprep.subr.mxu0 0.0
  %869 = vmatpush1.xpose.msra.mxu0 0.0
  %870 = vmatprep.subr.mxu0 0.0
  %871 = vmatpush1.xpose.msra.mxu0 0.0
  %872 = vmatprep.subr.mxu0 0.0
  %873 = vmatpush1.xpose.msra.mxu0 0.0
  %874 = vmatprep.subr.mxu0 0.0
  %875 = vmatpush1.xpose.msra.mxu0 0.0
  %876 = vmatprep.subr.mxu0 0.0
  %877 = vmatpush1.xpose.msra.mxu0 0.0
  %878 = vmatprep.mubr.f32.mxu0 0.0
  %879 = vmatmul.mubr.f32.gmra.mrb[0].mxu0 %v810
  %v880 = vpop.f32.mrb[0].mxu0
  %v881 = vadd.f32 0.0, %v880
  %v882 = vpop.f32.mrb[0].mxu0
  %883 = vdwg.mxu0
  %884 = vrot.lane.b32.xlu0 %v498, 96
  %v885 = vpop.permute.xlu0 %884
  %v886 = vsel %vm505, %v498, 0
  %v888 = vsel %vm505, %v885, 0
  %890 = vmatprep.subr.mxu0 0.0
  %891 = vmatpush1.xpose.msra.mxu0 %v888
  %892 = vmatprep.subr.mxu0 0.0
  %893 = vmatpush1.xpose.msra.mxu0 0.0
  %894 = vmatprep.subr.mxu0 0.0
  %895 = vmatpush1.xpose.msra.mxu0 0.0
  %896 = vmatprep.subr.mxu0 0.0
  %897 = vmatpush1.xpose.msra.mxu0 0.0
  %898 = vmatprep.subr.mxu0 0.0
  %899 = vmatpush1.xpose.msra.mxu0 0.0
  %900 = vmatprep.subr.mxu0 0.0
  %901 = vmatpush1.xpose.msra.mxu0 0.0
  %902 = vmatprep.subr.mxu0 0.0
  %903 = vmatpush1.xpose.msra.mxu0 0.0
  %904 = vmatprep.subr.mxu0 0.0
  %905 = vmatpush1.xpose.msra.mxu0 0.0
  %906 = vmatprep.subr.mxu0 0.0
  %907 = vmatpush1.xpose.msra.mxu0 0.0
  %908 = vmatprep.subr.mxu0 0.0
  %909 = vmatpush1.xpose.msra.mxu0 0.0
  %910 = vmatprep.subr.mxu0 0.0
  %911 = vmatpush1.xpose.msra.mxu0 0.0
  %912 = vmatprep.subr.mxu0 0.0
  %913 = vmatpush1.xpose.msra.mxu0 0.0
  %914 = vmatprep.subr.mxu0 0.0
  %915 = vmatpush1.xpose.msra.mxu0 0.0
  %916 = vmatprep.subr.mxu0 0.0
  %917 = vmatpush1.xpose.msra.mxu0 0.0
  %918 = vmatprep.subr.mxu0 0.0
  %919 = vmatpush1.xpose.msra.mxu0 0.0
  %920 = vmatprep.subr.mxu0 0.0
  %921 = vmatpush1.xpose.msra.mxu0 0.0
  %922 = vmatprep.subr.mxu0 0.0
  %923 = vmatpush1.xpose.msra.mxu0 0.0
  %924 = vmatprep.subr.mxu0 0.0
  %925 = vmatpush1.xpose.msra.mxu0 0.0
  %926 = vmatprep.subr.mxu0 0.0
  %927 = vmatpush1.xpose.msra.mxu0 0.0
  %928 = vmatprep.subr.mxu0 0.0
  %929 = vmatpush1.xpose.msra.mxu0 0.0
  %930 = vmatprep.subr.mxu0 0.0
  %931 = vmatpush1.xpose.msra.mxu0 0.0
  %932 = vmatprep.subr.mxu0 0.0
  %933 = vmatpush1.xpose.msra.mxu0 0.0
  %934 = vmatprep.subr.mxu0 0.0
  %935 = vmatpush1.xpose.msra.mxu0 0.0
  %936 = vmatprep.subr.mxu0 0.0
  %937 = vmatpush1.xpose.msra.mxu0 0.0
  %938 = vmatprep.subr.mxu0 0.0
  %939 = vmatpush1.xpose.msra.mxu0 0.0
  %940 = vmatprep.subr.mxu0 0.0
  %941 = vmatpush1.xpose.msra.mxu0 0.0
  %942 = vmatprep.subr.mxu0 0.0
  %943 = vmatpush1.xpose.msra.mxu0 0.0
  %944 = vmatprep.subr.mxu0 0.0
  %945 = vmatpush1.xpose.msra.mxu0 0.0
  %946 = vmatprep.subr.mxu0 0.0
  %947 = vmatpush1.xpose.msra.mxu0 0.0
  %948 = vmatprep.subr.mxu0 0.0
  %949 = vmatpush1.xpose.msra.mxu0 0.0
  %950 = vmatprep.subr.mxu0 0.0
  %951 = vmatpush1.xpose.msra.mxu0 0.0
  %952 = vmatprep.subr.mxu0 0.0
  %953 = vmatpush1.xpose.msra.mxu0 0.0
  %954 = vmatprep.mubr.f32.mxu0 0.0
  %955 = vmatmul.mubr.f32.gmra.mrb[0].mxu0 %v886
  %v956 = vpop.f32.mrb[0].mxu0
  %v957 = vadd.f32 0.0, %v956
  %v958 = vpop.f32.mrb[0].mxu0
  %959 = vdwg.mxu0
  %960 = vrot.lane.b32.xlu0 %v500, 96
  %v961 = vpop.permute.xlu0 %960
  %v962 = vsel %vm505, %v500, 0
  %v964 = vsel %vm505, %v961, 0
  %966 = vmatprep.subr.mxu0 0.0
  %967 = vmatpush1.xpose.msra.mxu0 %v964
  %968 = vmatprep.subr.mxu0 0.0
  %969 = vmatpush1.xpose.msra.mxu0 0.0
  %970 = vmatprep.subr.mxu0 0.0
  %971 = vmatpush1.xpose.msra.mxu0 0.0
  %972 = vmatprep.subr.mxu0 0.0
  %973 = vmatpush1.xpose.msra.mxu0 0.0
  %974 = vmatprep.subr.mxu0 0.0
  %975 = vmatpush1.xpose.msra.mxu0 0.0
  %976 = vmatprep.subr.mxu0 0.0
  %977 = vmatpush1.xpose.msra.mxu0 0.0
  %978 = vmatprep.subr.mxu0 0.0
  %979 = vmatpush1.xpose.msra.mxu0 0.0
  %980 = vmatprep.subr.mxu0 0.0
  %981 = vmatpush1.xpose.msra.mxu0 0.0
  %982 = vmatprep.subr.mxu0 0.0
  %983 = vmatpush1.xpose.msra.mxu0 0.0
  %984 = vmatprep.subr.mxu0 0.0
  %985 = vmatpush1.xpose.msra.mxu0 0.0
  %986 = vmatprep.subr.mxu0 0.0
  %987 = vmatpush1.xpose.msra.mxu0 0.0
  %988 = vmatprep.subr.mxu0 0.0
  %989 = vmatpush1.xpose.msra.mxu0 0.0
  %990 = vmatprep.subr.mxu0 0.0
  %991 = vmatpush1.xpose.msra.mxu0 0.0
  %992 = vmatprep.subr.mxu0 0.0
  %993 = vmatpush1.xpose.msra.mxu0 0.0
  %994 = vmatprep.subr.mxu0 0.0
  %995 = vmatpush1.xpose.msra.mxu0 0.0
  %996 = vmatprep.subr.mxu0 0.0
  %997 = vmatpush1.xpose.msra.mxu0 0.0
  %998 = vmatprep.subr.mxu0 0.0
  %999 = vmatpush1.xpose.msra.mxu0 0.0
  %1000 = vmatprep.subr.mxu0 0.0
  %1001 = vmatpush1.xpose.msra.mxu0 0.0
  %1002 = vmatprep.subr.mxu0 0.0
  %1003 = vmatpush1.xpose.msra.mxu0 0.0
  %1004 = vmatprep.subr.mxu0 0.0
  %1005 = vmatpush1.xpose.msra.mxu0 0.0
  %1006 = vmatprep.subr.mxu0 0.0
  %1007 = vmatpush1.xpose.msra.mxu0 0.0
  %1008 = vmatprep.subr.mxu0 0.0
  %1009 = vmatpush1.xpose.msra.mxu0 0.0
  %1010 = vmatprep.subr.mxu0 0.0
  %1011 = vmatpush1.xpose.msra.mxu0 0.0
  %1012 = vmatprep.subr.mxu0 0.0
  %1013 = vmatpush1.xpose.msra.mxu0 0.0
  %1014 = vmatprep.subr.mxu0 0.0
  %1015 = vmatpush1.xpose.msra.mxu0 0.0
  %1016 = vmatprep.subr.mxu0 0.0
  %1017 = vmatpush1.xpose.msra.mxu0 0.0
  %1018 = vmatprep.subr.mxu0 0.0
  %1019 = vmatpush1.xpose.msra.mxu0 0.0
  %1020 = vmatprep.subr.mxu0 0.0
  %1021 = vmatpush1.xpose.msra.mxu0 0.0
  %1022 = vmatprep.subr.mxu0 0.0
  %1023 = vmatpush1.xpose.msra.mxu0 0.0
  %1024 = vmatprep.subr.mxu0 0.0
  %1025 = vmatpush1.xpose.msra.mxu0 0.0
  %1026 = vmatprep.subr.mxu0 0.0
  %1027 = vmatpush1.xpose.msra.mxu0 0.0
  %1028 = vmatprep.subr.mxu0 0.0
  %1029 = vmatpush1.xpose.msra.mxu0 0.0
  %1030 = vmatprep.mubr.f32.mxu0 0.0
  %1031 = vmatmul.mubr.f32.gmra.mrb[0].mxu0 %v962
  %v1032 = vpop.f32.mrb[0].mxu0
  %v1033 = vadd.f32 0.0, %v1032
  %v1034 = vpop.f32.mrb[0].mxu0
  %1035 = vdwg.mxu0
  %1036 = vrot.lane.b32.xlu0 %v502, 96
  %v1037 = vpop.permute.xlu0 %1036
  %v1038 = vsel %vm505, %v502, 0
  %v1040 = vsel %vm505, %v1037, 0
  %1042 = vmatprep.subr.mxu0 0.0
  %1043 = vmatpush1.xpose.msra.mxu0 %v1040
  %1044 = vmatprep.subr.mxu0 0.0
  %1045 = vmatpush1.xpose.msra.mxu0 0.0
  %1046 = vmatprep.subr.mxu0 0.0
  %1047 = vmatpush1.xpose.msra.mxu0 0.0
  %1048 = vmatprep.subr.mxu0 0.0
  %1049 = vmatpush1.xpose.msra.mxu0 0.0
  %1050 = vmatprep.subr.mxu0 0.0
  %1051 = vmatpush1.xpose.msra.mxu0 0.0
  %1052 = vmatprep.subr.mxu0 0.0
  %1053 = vmatpush1.xpose.msra.mxu0 0.0
  %1054 = vmatprep.subr.mxu0 0.0
  %1055 = vmatpush1.xpose.msra.mxu0 0.0
  %1056 = vmatprep.subr.mxu0 0.0
  %1057 = vmatpush1.xpose.msra.mxu0 0.0
  %1058 = vmatprep.subr.mxu0 0.0
  %1059 = vmatpush1.xpose.msra.mxu0 0.0
  %1060 = vmatprep.subr.mxu0 0.0
  %1061 = vmatpush1.xpose.msra.mxu0 0.0
  %1062 = vmatprep.subr.mxu0 0.0
  %1063 = vmatpush1.xpose.msra.mxu0 0.0
  %1064 = vmatprep.subr.mxu0 0.0
  %1065 = vmatpush1.xpose.msra.mxu0 0.0
  %1066 = vmatprep.subr.mxu0 0.0
  %1067 = vmatpush1.xpose.msra.mxu0 0.0
  %1068 = vmatprep.subr.mxu0 0.0
  %1069 = vmatpush1.xpose.msra.mxu0 0.0
  %1070 = vmatprep.subr.mxu0 0.0
  %1071 = vmatpush1.xpose.msra.mxu0 0.0
  %1072 = vmatprep.subr.mxu0 0.0
  %1073 = vmatpush1.xpose.msra.mxu0 0.0
  %1074 = vmatprep.subr.mxu0 0.0
  %1075 = vmatpush1.xpose.msra.mxu0 0.0
  %1076 = vmatprep.subr.mxu0 0.0
  %1077 = vmatpush1.xpose.msra.mxu0 0.0
  %1078 = vmatprep.subr.mxu0 0.0
  %1079 = vmatpush1.xpose.msra.mxu0 0.0
  %1080 = vmatprep.subr.mxu0 0.0
  %1081 = vmatpush1.xpose.msra.mxu0 0.0
  %1082 = vmatprep.subr.mxu0 0.0
  %1083 = vmatpush1.xpose.msra.mxu0 0.0
  %1084 = vmatprep.subr.mxu0 0.0
  %1085 = vmatpush1.xpose.msra.mxu0 0.0
  %1086 = vmatprep.subr.mxu0 0.0
  %1087 = vmatpush1.xpose.msra.mxu0 0.0
  %1088 = vmatprep.subr.mxu0 0.0
  %1089 = vmatpush1.xpose.msra.mxu0 0.0
  %1090 = vmatprep.subr.mxu0 0.0
  %1091 = vmatpush1.xpose.msra.mxu0 0.0
  %1092 = vmatprep.subr.mxu0 0.0
  %1093 = vmatpush1.xpose.msra.mxu0 0.0
  %1094 = vmatprep.subr.mxu0 0.0
  %1095 = vmatpush1.xpose.msra.mxu0 0.0
  %1096 = vmatprep.subr.mxu0 0.0
  %1097 = vmatpush1.xpose.msra.mxu0 0.0
  %1098 = vmatprep.subr.mxu0 0.0
  %1099 = vmatpush1.xpose.msra.mxu0 0.0
  %1100 = vmatprep.subr.mxu0 0.0
  %1101 = vmatpush1.xpose.msra.mxu0 0.0
  %1102 = vmatprep.subr.mxu0 0.0
  %1103 = vmatpush1.xpose.msra.mxu0 0.0
  %1104 = vmatprep.subr.mxu0 0.0
  %1105 = vmatpush1.xpose.msra.mxu0 0.0
  %1106 = vmatprep.mubr.f32.mxu0 0.0
  %1107 = vmatmul.mubr.f32.gmra.mrb[0].mxu0 %v1038
  %v1108 = vpop.f32.mrb[0].mxu0
  %v1109 = vadd.f32 0.0, %v1108
  %v1110 = vpop.f32.mrb[0].mxu0
  %1111 = vdwg.mxu0
  %v1112 = vmul.f32 %v577, 0.35355338
  %v1113 = vmul.f32 %v653, 0.35355338
  %v1114 = vmul.f32 %v729, 0.35355338
  %v1115 = vmul.f32 %v805, 0.35355338
  %v1116 = vmul.f32 %v881, 0.35355338
  %v1117 = vmul.f32 %v957, 0.35355338
  %v1118 = vmul.f32 %v1033, 0.35355338
  %v1119 = vmul.f32 %v1109, 0.35355338
  %v1120 = vsel %vm505, %v1112, -inf
  %1121 = vmax.xlane.f32.xlu0 %v1120
  %v1122 = vpop.xlane.xlu0 %1121
  %v1123 = vsel %vm505, %v1113, -inf
  %1124 = vmax.xlane.f32.xlu0 %v1123
  %v1125 = vpop.xlane.xlu0 %1124
  %v1126 = vsel %vm505, %v1114, -inf
  %1127 = vmax.xlane.f32.xlu0 %v1126
  %v1128 = vpop.xlane.xlu0 %1127
  %v1129 = vsel %vm505, %v1115, -inf
  %1130 = vmax.xlane.f32.xlu0 %v1129
  %v1131 = vpop.xlane.xlu0 %1130
  %v1132 = vsel %vm505, %v1116, -inf
  %1133 = vmax.xlane.f32.xlu0 %v1132
  %v1134 = vpop.xlane.xlu0 %1133
  %v1135 = vsel %vm505, %v1117, -inf
  %1136 = vmax.xlane.f32.xlu0 %v1135
  %v1137 = vpop.xlane.xlu0 %1136
  %v1138 = vsel %vm505, %v1118, -inf
  %1139 = vmax.xlane.f32.xlu0 %v1138
  %v1140 = vpop.xlane.xlu0 %1139
  %v1141 = vsel %vm505, %v1119, -inf
  %1142 = vmax.xlane.f32.xlu0 %v1141
  %v1143 = vpop.xlane.xlu0 %1142
  %v1144 = vsub.f32 %v1112, %v1122
  %v1145 = vsub.f32 %v1113, %v1125
  %v1146 = vsub.f32 %v1114, %v1128
  %v1147 = vsub.f32 %v1115, %v1131
  %v1148 = vsub.f32 %v1116, %v1134
  %v1149 = vsub.f32 %v1117, %v1137
  %v1150 = vsub.f32 %v1118, %v1140
  %v1151 = vsub.f32 %v1119, %v1143
  %v1152 = vmul.f32 %v1144, 1.442695
  %v1153 = vpow.pop %v1152
  %v1154 = vmul.f32 %v1145, 1.442695
  %v1155 = vpow.pop %v1154
  %v1156 = vmul.f32 %v1146, 1.442695
  %v1157 = vpow.pop %v1156
  %v1158 = vmul.f32 %v1147, 1.442695
  %v1159 = vpow.pop %v1158
  %v1160 = vmul.f32 %v1148, 1.442695
  %v1161 = vpow.pop %v1160
  %v1162 = vmul.f32 %v1149, 1.442695
  %v1163 = vpow.pop %v1162
  %v1164 = vmul.f32 %v1150, 1.442695
  %v1165 = vpow.pop %v1164
  %v1166 = vmul.f32 %v1151, 1.442695
  %v1167 = vpow.pop %v1166
  %v1168 = vsel %vm505, %v1153, 0.0
  %1169 = vadd.xlane.f32.xlu0 %v1168
  %v1170 = vpop.xlane.xlu0 %1169
  %v1171 = vsel %vm505, %v1155, 0.0
  %1172 = vadd.xlane.f32.xlu0 %v1171
  %v1173 = vpop.xlane.xlu0 %1172
  %v1174 = vsel %vm505, %v1157, 0.0
  %1175 = vadd.xlane.f32.xlu0 %v1174
  %v1176 = vpop.xlane.xlu0 %1175
  %v1177 = vsel %vm505, %v1159, 0.0
  %1178 = vadd.xlane.f32.xlu0 %v1177
  %v1179 = vpop.xlane.xlu0 %1178
  %v1180 = vsel %vm505, %v1161, 0.0
  %1181 = vadd.xlane.f32.xlu0 %v1180
  %v1182 = vpop.xlane.xlu0 %1181
  %v1183 = vsel %vm505, %v1163, 0.0
  %1184 = vadd.xlane.f32.xlu0 %v1183
  %v1185 = vpop.xlane.xlu0 %1184
  %v1186 = vsel %vm505, %v1165, 0.0
  %1187 = vadd.xlane.f32.xlu0 %v1186
  %v1188 = vpop.xlane.xlu0 %1187
  %v1189 = vsel %vm505, %v1167, 0.0
  %1190 = vadd.xlane.f32.xlu0 %v1189
  %v1191 = vpop.xlane.xlu0 %1190
  %v1192 = vrcp.pop %v1170
  %v1193 = vmul.f32 %v1153, %v1192
  %v1194 = vrcp.pop %v1173
  %v1195 = vmul.f32 %v1155, %v1194
  %v1196 = vrcp.pop %v1176
  %v1197 = vmul.f32 %v1157, %v1196
  %v1198 = vrcp.pop %v1179
  %v1199 = vmul.f32 %v1159, %v1198
  %v1200 = vrcp.pop %v1182
  %v1201 = vmul.f32 %v1161, %v1200
  %v1202 = vrcp.pop %v1185
  %v1203 = vmul.f32 %v1163, %v1202
  %v1204 = vrcp.pop %v1188
  %v1205 = vmul.f32 %v1165, %v1204
  %v1206 = vrcp.pop %v1191
  %v1207 = vmul.f32 %v1167, %v1206
  %1208 = vrot.lane.b32.xlu0 %v481, 64
  %v1209 = vpop.permute.xlu0 %1208
  %v1212 = vsel %vm505, %v1193, 0
  %1214 = vmatprep.subr.mxu0 0.0
  %1215 = vmatpush1.msra.mxu0 %v1209
  %1216 = vmatprep.subr.mxu0 0.0
  %1217 = vmatpush1.msra.mxu0 0.0
  %1218 = vmatprep.subr.mxu0 0.0
  %1219 = vmatpush1.msra.mxu0 0.0
  %1220 = vmatprep.subr.mxu0 0.0
  %1221 = vmatpush1.msra.mxu0 0.0
  %1222 = vmatprep.subr.mxu0 0.0
  %1223 = vmatpush1.msra.mxu0 0.0
  %1224 = vmatprep.subr.mxu0 0.0
  %1225 = vmatpush1.msra.mxu0 0.0
  %1226 = vmatprep.subr.mxu0 0.0
  %1227 = vmatpush1.msra.mxu0 0.0
  %1228 = vmatprep.subr.mxu0 0.0
  %1229 = vmatpush1.msra.mxu0 0.0
  %1230 = vmatprep.subr.mxu0 0.0
  %1231 = vmatpush1.msra.mxu0 0.0
  %1232 = vmatprep.subr.mxu0 0.0
  %1233 = vmatpush1.msra.mxu0 0.0
  %1234 = vmatprep.subr.mxu0 0.0
  %1235 = vmatpush1.msra.mxu0 0.0
  %1236 = vmatprep.subr.mxu0 0.0
  %1237 = vmatpush1.msra.mxu0 0.0
  %1238 = vmatprep.subr.mxu0 0.0
  %1239 = vmatpush1.msra.mxu0 0.0
  %1240 = vmatprep.subr.mxu0 0.0
  %1241 = vmatpush1.msra.mxu0 0.0
  %1242 = vmatprep.subr.mxu0 0.0
  %1243 = vmatpush1.msra.mxu0 0.0
  %1244 = vmatprep.subr.mxu0 0.0
  %1245 = vmatpush1.msra.mxu0 0.0
  %1246 = vmatprep.subr.mxu0 0.0
  %1247 = vmatpush1.msra.mxu0 0.0
  %1248 = vmatprep.subr.mxu0 0.0
  %1249 = vmatpush1.msra.mxu0 0.0
  %1250 = vmatprep.subr.mxu0 0.0
  %1251 = vmatpush1.msra.mxu0 0.0
  %1252 = vmatprep.subr.mxu0 0.0
  %1253 = vmatpush1.msra.mxu0 0.0
  %1254 = vmatprep.subr.mxu0 0.0
  %1255 = vmatpush1.msra.mxu0 0.0
  %1256 = vmatprep.subr.mxu0 0.0
  %1257 = vmatpush1.msra.mxu0 0.0
  %1258 = vmatprep.subr.mxu0 0.0
  %1259 = vmatpush1.msra.mxu0 0.0
  %1260 = vmatprep.subr.mxu0 0.0
  %1261 = vmatpush1.msra.mxu0 0.0
  %1262 = vmatprep.subr.mxu0 0.0
  %1263 = vmatpush1.msra.mxu0 0.0
  %1264 = vmatprep.subr.mxu0 0.0
  %1265 = vmatpush1.msra.mxu0 0.0
  %1266 = vmatprep.subr.mxu0 0.0
  %1267 = vmatpush1.msra.mxu0 0.0
  %1268 = vmatprep.subr.mxu0 0.0
  %1269 = vmatpush1.msra.mxu0 0.0
  %1270 = vmatprep.subr.mxu0 0.0
  %1271 = vmatpush1.msra.mxu0 0.0
  %1272 = vmatprep.subr.mxu0 0.0
  %1273 = vmatpush1.msra.mxu0 0.0
  %1274 = vmatprep.subr.mxu0 0.0
  %1275 = vmatpush1.msra.mxu0 0.0
  %1276 = vmatprep.subr.mxu0 0.0
  %1277 = vmatpush1.msra.mxu0 0.0
  %1278 = vmatprep.mubr.f32.mxu0 0.0
  %1279 = vmatmul.mubr.f32.gmra.mrb[0].mxu0 %v1212
  %v1280 = vpop.f32.mrb[0].mxu0
  %v1281 = vadd.f32 0.0, %v1280
  %v1282 = vpop.f32.mrb[0].mxu0
  %1283 = vdwg.mxu0
  %1284 = vrot.lane.b32.xlu0 %v486, 64
  %v1285 = vpop.permute.xlu0 %1284
  %v1288 = vsel %vm505, %v1195, 0
  %1290 = vmatprep.subr.mxu0 0.0
  %1291 = vmatpush1.msra.mxu0 %v1285
  %1292 = vmatprep.subr.mxu0 0.0
  %1293 = vmatpush1.msra.mxu0 0.0
  %1294 = vmatprep.subr.mxu0 0.0
  %1295 = vmatpush1.msra.mxu0 0.0
  %1296 = vmatprep.subr.mxu0 0.0
  %1297 = vmatpush1.msra.mxu0 0.0
  %1298 = vmatprep.subr.mxu0 0.0
  %1299 = vmatpush1.msra.mxu0 0.0
  %1300 = vmatprep.subr.mxu0 0.0
  %1301 = vmatpush1.msra.mxu0 0.0
  %1302 = vmatprep.subr.mxu0 0.0
  %1303 = vmatpush1.msra.mxu0 0.0
  %1304 = vmatprep.subr.mxu0 0.0
  %1305 = vmatpush1.msra.mxu0 0.0
  %1306 = vmatprep.subr.mxu0 0.0
  %1307 = vmatpush1.msra.mxu0 0.0
  %1308 = vmatprep.subr.mxu0 0.0
  %1309 = vmatpush1.msra.mxu0 0.0
  %1310 = vmatprep.subr.mxu0 0.0
  %1311 = vmatpush1.msra.mxu0 0.0
  %1312 = vmatprep.subr.mxu0 0.0
  %1313 = vmatpush1.msra.mxu0 0.0
  %1314 = vmatprep.subr.mxu0 0.0
  %1315 = vmatpush1.msra.mxu0 0.0
  %1316 = vmatprep.subr.mxu0 0.0
  %1317 = vmatpush1.msra.mxu0 0.0
  %1318 = vmatprep.subr.mxu0 0.0
  %1319 = vmatpush1.msra.mxu0 0.0
  %1320 = vmatprep.subr.mxu0 0.0
  %1321 = vmatpush1.msra.mxu0 0.0
  %1322 = vmatprep.subr.mxu0 0.0
  %1323 = vmatpush1.msra.mxu0 0.0
  %1324 = vmatprep.subr.mxu0 0.0
  %1325 = vmatpush1.msra.mxu0 0.0
  %1326 = vmatprep.subr.mxu0 0.0
  %1327 = vmatpush1.msra.mxu0 0.0
  %1328 = vmatprep.subr.mxu0 0.0
  %1329 = vmatpush1.msra.mxu0 0.0
  %1330 = vmatprep.subr.mxu0 0.0
  %1331 = vmatpush1.msra.mxu0 0.0
  %1332 = vmatprep.subr.mxu0 0.0
  %1333 = vmatpush1.msra.mxu0 0.0
  %1334 = vmatprep.subr.mxu0 0.0
  %1335 = vmatpush1.msra.mxu0 0.0
  %1336 = vmatprep.subr.mxu0 0.0
  %1337 = vmatpush1.msra.mxu0 0.0
  %1338 = vmatprep.subr.mxu0 0.0
  %1339 = vmatpush1.msra.mxu0 0.0
  %1340 = vmatprep.subr.mxu0 0.0
  %1341 = vmatpush1.msra.mxu0 0.0
  %1342 = vmatprep.subr.mxu0 0.0
  %1343 = vmatpush1.msra.mxu0 0.0
  %1344 = vmatprep.subr.mxu0 0.0
  %1345 = vmatpush1.msra.mxu0 0.0
  %1346 = vmatprep.subr.mxu0 0.0
  %1347 = vmatpush1.msra.mxu0 0.0
  %1348 = vmatprep.subr.mxu0 0.0
  %1349 = vmatpush1.msra.mxu0 0.0
  %1350 = vmatprep.subr.mxu0 0.0
  %1351 = vmatpush1.msra.mxu0 0.0
  %1352 = vmatprep.subr.mxu0 0.0
  %1353 = vmatpush1.msra.mxu0 0.0
  %1354 = vmatprep.mubr.f32.mxu0 0.0
  %1355 = vmatmul.mubr.f32.gmra.mrb[0].mxu0 %v1288
  %v1356 = vpop.f32.mrb[0].mxu0
  %v1357 = vadd.f32 0.0, %v1356
  %v1358 = vpop.f32.mrb[0].mxu0
  %1359 = vdwg.mxu0
  %1360 = vrot.lane.b32.xlu0 %v492, 64
  %v1361 = vpop.permute.xlu0 %1360
  %v1364 = vsel %vm505, %v1197, 0
  %1366 = vmatprep.subr.mxu0 0.0
  %1367 = vmatpush1.msra.mxu0 %v1361
  %1368 = vmatprep.subr.mxu0 0.0
  %1369 = vmatpush1.msra.mxu0 0.0
  %1370 = vmatprep.subr.mxu0 0.0
  %1371 = vmatpush1.msra.mxu0 0.0
  %1372 = vmatprep.subr.mxu0 0.0
  %1373 = vmatpush1.msra.mxu0 0.0
  %1374 = vmatprep.subr.mxu0 0.0
  %1375 = vmatpush1.msra.mxu0 0.0
  %1376 = vmatprep.subr.mxu0 0.0
  %1377 = vmatpush1.msra.mxu0 0.0
  %1378 = vmatprep.subr.mxu0 0.0
  %1379 = vmatpush1.msra.mxu0 0.0
  %1380 = vmatprep.subr.mxu0 0.0
  %1381 = vmatpush1.msra.mxu0 0.0
  %1382 = vmatprep.subr.mxu0 0.0
  %1383 = vmatpush1.msra.mxu0 0.0
  %1384 = vmatprep.subr.mxu0 0.0
  %1385 = vmatpush1.msra.mxu0 0.0
  %1386 = vmatprep.subr.mxu0 0.0
  %1387 = vmatpush1.msra.mxu0 0.0
  %1388 = vmatprep.subr.mxu0 0.0
  %1389 = vmatpush1.msra.mxu0 0.0
  %1390 = vmatprep.subr.mxu0 0.0
  %1391 = vmatpush1.msra.mxu0 0.0
  %1392 = vmatprep.subr.mxu0 0.0
  %1393 = vmatpush1.msra.mxu0 0.0
  %1394 = vmatprep.subr.mxu0 0.0
  %1395 = vmatpush1.msra.mxu0 0.0
  %1396 = vmatprep.subr.mxu0 0.0
  %1397 = vmatpush1.msra.mxu0 0.0
  %1398 = vmatprep.subr.mxu0 0.0
  %1399 = vmatpush1.msra.mxu0 0.0
  %1400 = vmatprep.subr.mxu0 0.0
  %1401 = vmatpush1.msra.mxu0 0.0
  %1402 = vmatprep.subr.mxu0 0.0
  %1403 = vmatpush1.msra.mxu0 0.0
  %1404 = vmatprep.subr.mxu0 0.0
  %1405 = vmatpush1.msra.mxu0 0.0
  %1406 = vmatprep.subr.mxu0 0.0
  %1407 = vmatpush1.msra.mxu0 0.0
  %1408 = vmatprep.subr.mxu0 0.0
  %1409 = vmatpush1.msra.mxu0 0.0
  %1410 = vmatprep.subr.mxu0 0.0
  %1411 = vmatpush1.msra.mxu0 0.0
  %1412 = vmatprep.subr.mxu0 0.0
  %1413 = vmatpush1.msra.mxu0 0.0
  %1414 = vmatprep.subr.mxu0 0.0
  %1415 = vmatpush1.msra.mxu0 0.0
  %1416 = vmatprep.subr.mxu0 0.0
  %1417 = vmatpush1.msra.mxu0 0.0
  %1418 = vmatprep.subr.mxu0 0.0
  %1419 = vmatpush1.msra.mxu0 0.0
  %1420 = vmatprep.subr.mxu0 0.0
  %1421 = vmatpush1.msra.mxu0 0.0
  %1422 = vmatprep.subr.mxu0 0.0
  %1423 = vmatpush1.msra.mxu0 0.0
  %1424 = vmatprep.subr.mxu0 0.0
  %1425 = vmatpush1.msra.mxu0 0.0
  %1426 = vmatprep.subr.mxu0 0.0
  %1427 = vmatpush1.msra.mxu0 0.0
  %1428 = vmatprep.subr.mxu0 0.0
  %1429 = vmatpush1.msra.mxu0 0.0
  %1430 = vmatprep.mubr.f32.mxu0 0.0
  %1431 = vmatmul.mubr.f32.gmra.mrb[0].mxu0 %v1364
  %v1432 = vpop.f32.mrb[0].mxu0
  %v1433 = vadd.f32 0.0, %v1432
  %v1434 = vpop.f32.mrb[0].mxu0
  %1435 = vdwg.mxu0
  %1436 = vrot.lane.b32.xlu0 %v494, 64
  %v1437 = vpop.permute.xlu0 %1436
  %v1440 = vsel %vm505, %v1199, 0
  %1442 = vmatprep.subr.mxu0 0.0
  %1443 = vmatpush1.msra.mxu0 %v1437
  %1444 = vmatprep.subr.mxu0 0.0
  %1445 = vmatpush1.msra.mxu0 0.0
  %1446 = vmatprep.subr.mxu0 0.0
  %1447 = vmatpush1.msra.mxu0 0.0
  %1448 = vmatprep.subr.mxu0 0.0
  %1449 = vmatpush1.msra.mxu0 0.0
  %1450 = vmatprep.subr.mxu0 0.0
  %1451 = vmatpush1.msra.mxu0 0.0
  %1452 = vmatprep.subr.mxu0 0.0
  %1453 = vmatpush1.msra.mxu0 0.0
  %1454 = vmatprep.subr.mxu0 0.0
  %1455 = vmatpush1.msra.mxu0 0.0
  %1456 = vmatprep.subr.mxu0 0.0
  %1457 = vmatpush1.msra.mxu0 0.0
  %1458 = vmatprep.subr.mxu0 0.0
  %1459 = vmatpush1.msra.mxu0 0.0
  %1460 = vmatprep.subr.mxu0 0.0
  %1461 = vmatpush1.msra.mxu0 0.0
  %1462 = vmatprep.subr.mxu0 0.0
  %1463 = vmatpush1.msra.mxu0 0.0
  %1464 = vmatprep.subr.mxu0 0.0
  %1465 = vmatpush1.msra.mxu0 0.0
  %1466 = vmatprep.subr.mxu0 0.0
  %1467 = vmatpush1.msra.mxu0 0.0
  %1468 = vmatprep.subr.mxu0 0.0
  %1469 = vmatpush1.msra.mxu0 0.0
  %1470 = vmatprep.subr.mxu0 0.0
  %1471 = vmatpush1.msra.mxu0 0.0
  %1472 = vmatprep.subr.mxu0 0.0
  %1473 = vmatpush1.msra.mxu0 0.0
  %1474 = vmatprep.subr.mxu0 0.0
  %1475 = vmatpush1.msra.mxu0 0.0
  %1476 = vmatprep.subr.mxu0 0.0
  %1477 = vmatpush1.msra.mxu0 0.0
  %1478 = vmatprep.subr.mxu0 0.0
  %1479 = vmatpush1.msra.mxu0 0.0
  %1480 = vmatprep.subr.mxu0 0.0
  %1481 = vmatpush1.msra.mxu0 0.0
  %1482 = vmatprep.subr.mxu0 0.0
  %1483 = vmatpush1.msra.mxu0 0.0
  %1484 = vmatprep.subr.mxu0 0.0
  %1485 = vmatpush1.msra.mxu0 0.0
  %1486 = vmatprep.subr.mxu0 0.0
  %1487 = vmatpush1.msra.mxu0 0.0
  %1488 = vmatprep.subr.mxu0 0.0
  %1489 = vmatpush1.msra.mxu0 0.0
  %1490 = vmatprep.subr.mxu0 0.0
  %1491 = vmatpush1.msra.mxu0 0.0
  %1492 = vmatprep.subr.mxu0 0.0
  %1493 = vmatpush1.msra.mxu0 0.0
  %1494 = vmatprep.subr.mxu0 0.0
  %1495 = vmatpush1.msra.mxu0 0.0
  %1496 = vmatprep.subr.mxu0 0.0
  %1497 = vmatpush1.msra.mxu0 0.0
  %1498 = vmatprep.subr.mxu0 0.0
  %1499 = vmatpush1.msra.mxu0 0.0
  %1500 = vmatprep.subr.mxu0 0.0
  %1501 = vmatpush1.msra.mxu0 0.0
  %1502 = vmatprep.subr.mxu0 0.0
  %1503 = vmatpush1.msra.mxu0 0.0
  %1504 = vmatprep.subr.mxu0 0.0
  %1505 = vmatpush1.msra.mxu0 0.0
  %1506 = vmatprep.mubr.f32.mxu0 0.0
  %1507 = vmatmul.mubr.f32.gmra.mrb[0].mxu0 %v1440
  %v1508 = vpop.f32.mrb[0].mxu0
  %v1509 = vadd.f32 0.0, %v1508
  %v1510 = vpop.f32.mrb[0].mxu0
  %1511 = vdwg.mxu0
  %1512 = vrot.lane.b32.xlu0 %v496, 64
  %v1513 = vpop.permute.xlu0 %1512
  %v1516 = vsel %vm505, %v1201, 0
  %1518 = vmatprep.subr.mxu0 0.0
  %1519 = vmatpush1.msra.mxu0 %v1513
  %1520 = vmatprep.subr.mxu0 0.0
  %1521 = vmatpush1.msra.mxu0 0.0
  %1522 = vmatprep.subr.mxu0 0.0
  %1523 = vmatpush1.msra.mxu0 0.0
  %1524 = vmatprep.subr.mxu0 0.0
  %1525 = vmatpush1.msra.mxu0 0.0
  %1526 = vmatprep.subr.mxu0 0.0
  %1527 = vmatpush1.msra.mxu0 0.0
  %1528 = vmatprep.subr.mxu0 0.0
  %1529 = vmatpush1.msra.mxu0 0.0
  %1530 = vmatprep.subr.mxu0 0.0
  %1531 = vmatpush1.msra.mxu0 0.0
  %1532 = vmatprep.subr.mxu0 0.0
  %1533 = vmatpush1.msra.mxu0 0.0
  %1534 = vmatprep.subr.mxu0 0.0
  %1535 = vmatpush1.msra.mxu0 0.0
  %1536 = vmatprep.subr.mxu0 0.0
  %1537 = vmatpush1.msra.mxu0 0.0
  %1538 = vmatprep.subr.mxu0 0.0
  %1539 = vmatpush1.msra.mxu0 0.0
  %1540 = vmatprep.subr.mxu0 0.0
  %1541 = vmatpush1.msra.mxu0 0.0
  %1542 = vmatprep.subr.mxu0 0.0
  %1543 = vmatpush1.msra.mxu0 0.0
  %1544 = vmatprep.subr.mxu0 0.0
  %1545 = vmatpush1.msra.mxu0 0.0
  %1546 = vmatprep.subr.mxu0 0.0
  %1547 = vmatpush1.msra.mxu0 0.0
  %1548 = vmatprep.subr.mxu0 0.0
  %1549 = vmatpush1.msra.mxu0 0.0
  %1550 = vmatprep.subr.mxu0 0.0
  %1551 = vmatpush1.msra.mxu0 0.0
  %1552 = vmatprep.subr.mxu0 0.0
  %1553 = vmatpush1.msra.mxu0 0.0
  %1554 = vmatprep.subr.mxu0 0.0
  %1555 = vmatpush1.msra.mxu0 0.0
  %1556 = vmatprep.subr.mxu0 0.0
  %1557 = vmatpush1.msra.mxu0 0.0
  %1558 = vmatprep.subr.mxu0 0.0
  %1559 = vmatpush1.msra.mxu0 0.0
  %1560 = vmatprep.subr.mxu0 0.0
  %1561 = vmatpush1.msra.mxu0 0.0
  %1562 = vmatprep.subr.mxu0 0.0
  %1563 = vmatpush1.msra.mxu0 0.0
  %1564 = vmatprep.subr.mxu0 0.0
  %1565 = vmatpush1.msra.mxu0 0.0
  %1566 = vmatprep.subr.mxu0 0.0
  %1567 = vmatpush1.msra.mxu0 0.0
  %1568 = vmatprep.subr.mxu0 0.0
  %1569 = vmatpush1.msra.mxu0 0.0
  %1570 = vmatprep.subr.mxu0 0.0
  %1571 = vmatpush1.msra.mxu0 0.0
  %1572 = vmatprep.subr.mxu0 0.0
  %1573 = vmatpush1.msra.mxu0 0.0
  %1574 = vmatprep.subr.mxu0 0.0
  %1575 = vmatpush1.msra.mxu0 0.0
  %1576 = vmatprep.subr.mxu0 0.0
  %1577 = vmatpush1.msra.mxu0 0.0
  %1578 = vmatprep.subr.mxu0 0.0
  %1579 = vmatpush1.msra.mxu0 0.0
  %1580 = vmatprep.subr.mxu0 0.0
  %1581 = vmatpush1.msra.mxu0 0.0
  %1582 = vmatprep.mubr.f32.mxu0 0.0
  %1583 = vmatmul.mubr.f32.gmra.mrb[0].mxu0 %v1516
  %v1584 = vpop.f32.mrb[0].mxu0
  %v1585 = vadd.f32 0.0, %v1584
  %v1586 = vpop.f32.mrb[0].mxu0
  %1587 = vdwg.mxu0
  %1588 = vrot.lane.b32.xlu0 %v498, 64
  %v1589 = vpop.permute.xlu0 %1588
  %v1592 = vsel %vm505, %v1203, 0
  %1594 = vmatprep.subr.mxu0 0.0
  %1595 = vmatpush1.msra.mxu0 %v1589
  %1596 = vmatprep.subr.mxu0 0.0
  %1597 = vmatpush1.msra.mxu0 0.0
  %1598 = vmatprep.subr.mxu0 0.0
  %1599 = vmatpush1.msra.mxu0 0.0
  %1600 = vmatprep.subr.mxu0 0.0
  %1601 = vmatpush1.msra.mxu0 0.0
  %1602 = vmatprep.subr.mxu0 0.0
  %1603 = vmatpush1.msra.mxu0 0.0
  %1604 = vmatprep.subr.mxu0 0.0
  %1605 = vmatpush1.msra.mxu0 0.0
  %1606 = vmatprep.subr.mxu0 0.0
  %1607 = vmatpush1.msra.mxu0 0.0
  %1608 = vmatprep.subr.mxu0 0.0
  %1609 = vmatpush1.msra.mxu0 0.0
  %1610 = vmatprep.subr.mxu0 0.0
  %1611 = vmatpush1.msra.mxu0 0.0
  %1612 = vmatprep.subr.mxu0 0.0
  %1613 = vmatpush1.msra.mxu0 0.0
  %1614 = vmatprep.subr.mxu0 0.0
  %1615 = vmatpush1.msra.mxu0 0.0
  %1616 = vmatprep.subr.mxu0 0.0
  %1617 = vmatpush1.msra.mxu0 0.0
  %1618 = vmatprep.subr.mxu0 0.0
  %1619 = vmatpush1.msra.mxu0 0.0
  %1620 = vmatprep.subr.mxu0 0.0
  %1621 = vmatpush1.msra.mxu0 0.0
  %1622 = vmatprep.subr.mxu0 0.0
  %1623 = vmatpush1.msra.mxu0 0.0
  %1624 = vmatprep.subr.mxu0 0.0
  %1625 = vmatpush1.msra.mxu0 0.0
  %1626 = vmatprep.subr.mxu0 0.0
  %1627 = vmatpush1.msra.mxu0 0.0
  %1628 = vmatprep.subr.mxu0 0.0
  %1629 = vmatpush1.msra.mxu0 0.0
  %1630 = vmatprep.subr.mxu0 0.0
  %1631 = vmatpush1.msra.mxu0 0.0
  %1632 = vmatprep.subr.mxu0 0.0
  %1633 = vmatpush1.msra.mxu0 0.0
  %1634 = vmatprep.subr.mxu0 0.0
  %1635 = vmatpush1.msra.mxu0 0.0
  %1636 = vmatprep.subr.mxu0 0.0
  %1637 = vmatpush1.msra.mxu0 0.0
  %1638 = vmatprep.subr.mxu0 0.0
  %1639 = vmatpush1.msra.mxu0 0.0
  %1640 = vmatprep.subr.mxu0 0.0
  %1641 = vmatpush1.msra.mxu0 0.0
  %1642 = vmatprep.subr.mxu0 0.0
  %1643 = vmatpush1.msra.mxu0 0.0
  %1644 = vmatprep.subr.mxu0 0.0
  %1645 = vmatpush1.msra.mxu0 0.0
  %1646 = vmatprep.subr.mxu0 0.0
  %1647 = vmatpush1.msra.mxu0 0.0
  %1648 = vmatprep.subr.mxu0 0.0
  %1649 = vmatpush1.msra.mxu0 0.0
  %1650 = vmatprep.subr.mxu0 0.0
  %1651 = vmatpush1.msra.mxu0 0.0
  %1652 = vmatprep.subr.mxu0 0.0
  %1653 = vmatpush1.msra.mxu0 0.0
  %1654 = vmatprep.subr.mxu0 0.0
  %1655 = vmatpush1.msra.mxu0 0.0
  %1656 = vmatprep.subr.mxu0 0.0
  %1657 = vmatpush1.msra.mxu0 0.0
  %1658 = vmatprep.mubr.f32.mxu0 0.0
  %1659 = vmatmul.mubr.f32.gmra.mrb[0].mxu0 %v1592
  %v1660 = vpop.f32.mrb[0].mxu0
  %v1661 = vadd.f32 0.0, %v1660
  %v1662 = vpop.f32.mrb[0].mxu0
  %1663 = vdwg.mxu0
  %1664 = vrot.lane.b32.xlu0 %v500, 64
  %v1665 = vpop.permute.xlu0 %1664
  %v1668 = vsel %vm505, %v1205, 0
  %1670 = vmatprep.subr.mxu0 0.0
  %1671 = vmatpush1.msra.mxu0 %v1665
  %1672 = vmatprep.subr.mxu0 0.0
  %1673 = vmatpush1.msra.mxu0 0.0
  %1674 = vmatprep.subr.mxu0 0.0
  %1675 = vmatpush1.msra.mxu0 0.0
  %1676 = vmatprep.subr.mxu0 0.0
  %1677 = vmatpush1.msra.mxu0 0.0
  %1678 = vmatprep.subr.mxu0 0.0
  %1679 = vmatpush1.msra.mxu0 0.0
  %1680 = vmatprep.subr.mxu0 0.0
  %1681 = vmatpush1.msra.mxu0 0.0
  %1682 = vmatprep.subr.mxu0 0.0
  %1683 = vmatpush1.msra.mxu0 0.0
  %1684 = vmatprep.subr.mxu0 0.0
  %1685 = vmatpush1.msra.mxu0 0.0
  %1686 = vmatprep.subr.mxu0 0.0
  %1687 = vmatpush1.msra.mxu0 0.0
  %1688 = vmatprep.subr.mxu0 0.0
  %1689 = vmatpush1.msra.mxu0 0.0
  %1690 = vmatprep.subr.mxu0 0.0
  %1691 = vmatpush1.msra.mxu0 0.0
  %1692 = vmatprep.subr.mxu0 0.0
  %1693 = vmatpush1.msra.mxu0 0.0
  %1694 = vmatprep.subr.mxu0 0.0
  %1695 = vmatpush1.msra.mxu0 0.0
  %1696 = vmatprep.subr.mxu0 0.0
  %1697 = vmatpush1.msra.mxu0 0.0
  %1698 = vmatprep.subr.mxu0 0.0
  %1699 = vmatpush1.msra.mxu0 0.0
  %1700 = vmatprep.subr.mxu0 0.0
  %1701 = vmatpush1.msra.mxu0 0.0
  %1702 = vmatprep.subr.mxu0 0.0
  %1703 = vmatpush1.msra.mxu0 0.0
  %1704 = vmatprep.subr.mxu0 0.0
  %1705 = vmatpush1.msra.mxu0 0.0
  %1706 = vmatprep.subr.mxu0 0.0
  %1707 = vmatpush1.msra.mxu0 0.0
  %1708 = vmatprep.subr.mxu0 0.0
  %1709 = vmatpush1.msra.mxu0 0.0
  %1710 = vmatprep.subr.mxu0 0.0
  %1711 = vmatpush1.msra.mxu0 0.0
  %1712 = vmatprep.subr.mxu0 0.0
  %1713 = vmatpush1.msra.mxu0 0.0
  %1714 = vmatprep.subr.mxu0 0.0
  %1715 = vmatpush1.msra.mxu0 0.0
  %1716 = vmatprep.subr.mxu0 0.0
  %1717 = vmatpush1.msra.mxu0 0.0
  %1718 = vmatprep.subr.mxu0 0.0
  %1719 = vmatpush1.msra.mxu0 0.0
  %1720 = vmatprep.subr.mxu0 0.0
  %1721 = vmatpush1.msra.mxu0 0.0
  %1722 = vmatprep.subr.mxu0 0.0
  %1723 = vmatpush1.msra.mxu0 0.0
  %1724 = vmatprep.subr.mxu0 0.0
  %1725 = vmatpush1.msra.mxu0 0.0
  %1726 = vmatprep.subr.mxu0 0.0
  %1727 = vmatpush1.msra.mxu0 0.0
  %1728 = vmatprep.subr.mxu0 0.0
  %1729 = vmatpush1.msra.mxu0 0.0
  %1730 = vmatprep.subr.mxu0 0.0
  %1731 = vmatpush1.msra.mxu0 0.0
  %1732 = vmatprep.subr.mxu0 0.0
  %1733 = vmatpush1.msra.mxu0 0.0
  %1734 = vmatprep.mubr.f32.mxu0 0.0
  %1735 = vmatmul.mubr.f32.gmra.mrb[0].mxu0 %v1668
  %v1736 = vpop.f32.mrb[0].mxu0
  %v1737 = vadd.f32 0.0, %v1736
  %v1738 = vpop.f32.mrb[0].mxu0
  %1739 = vdwg.mxu0
  %1740 = vrot.lane.b32.xlu0 %v502, 64
  %v1741 = vpop.permute.xlu0 %1740
  %v1744 = vsel %vm505, %v1207, 0
  %1746 = vmatprep.subr.mxu0 0.0
  %1747 = vmatpush1.msra.mxu0 %v1741
  %1748 = vmatprep.subr.mxu0 0.0
  %1749 = vmatpush1.msra.mxu0 0.0
  %1750 = vmatprep.subr.mxu0 0.0
  %1751 = vmatpush1.msra.mxu0 0.0
  %1752 = vmatprep.subr.mxu0 0.0
  %1753 = vmatpush1.msra.mxu0 0.0
  %1754 = vmatprep.subr.mxu0 0.0
  %1755 = vmatpush1.msra.mxu0 0.0
  %1756 = vmatprep.subr.mxu0 0.0
  %1757 = vmatpush1.msra.mxu0 0.0
  %1758 = vmatprep.subr.mxu0 0.0
  %1759 = vmatpush1.msra.mxu0 0.0
  %1760 = vmatprep.subr.mxu0 0.0
  %1761 = vmatpush1.msra.mxu0 0.0
  %1762 = vmatprep.subr.mxu0 0.0
  %1763 = vmatpush1.msra.mxu0 0.0
  %1764 = vmatprep.subr.mxu0 0.0
  %1765 = vmatpush1.msra.mxu0 0.0
  %1766 = vmatprep.subr.mxu0 0.0
  %1767 = vmatpush1.msra.mxu0 0.0
  %1768 = vmatprep.subr.mxu0 0.0
  %1769 = vmatpush1.msra.mxu0 0.0
  %1770 = vmatprep.subr.mxu0 0.0
  %1771 = vmatpush1.msra.mxu0 0.0
  %1772 = vmatprep.subr.mxu0 0.0
  %1773 = vmatpush1.msra.mxu0 0.0
  %1774 = vmatprep.subr.mxu0 0.0
  %1775 = vmatpush1.msra.mxu0 0.0
  %1776 = vmatprep.subr.mxu0 0.0
  %1777 = vmatpush1.msra.mxu0 0.0
  %1778 = vmatprep.subr.mxu0 0.0
  %1779 = vmatpush1.msra.mxu0 0.0
  %1780 = vmatprep.subr.mxu0 0.0
  %1781 = vmatpush1.msra.mxu0 0.0
  %1782 = vmatprep.subr.mxu0 0.0
  %1783 = vmatpush1.msra.mxu0 0.0
  %1784 = vmatprep.subr.mxu0 0.0
  %1785 = vmatpush1.msra.mxu0 0.0
  %1786 = vmatprep.subr.mxu0 0.0
  %1787 = vmatpush1.msra.mxu0 0.0
  %1788 = vmatprep.subr.mxu0 0.0
  %1789 = vmatpush1.msra.mxu0 0.0
  %1790 = vmatprep.subr.mxu0 0.0
  %1791 = vmatpush1.msra.mxu0 0.0
  %1792 = vmatprep.subr.mxu0 0.0
  %1793 = vmatpush1.msra.mxu0 0.0
  %1794 = vmatprep.subr.mxu0 0.0
  %1795 = vmatpush1.msra.mxu0 0.0
  %1796 = vmatprep.subr.mxu0 0.0
  %1797 = vmatpush1.msra.mxu0 0.0
  %1798 = vmatprep.subr.mxu0 0.0
  %1799 = vmatpush1.msra.mxu0 0.0
  %1800 = vmatprep.subr.mxu0 0.0
  %1801 = vmatpush1.msra.mxu0 0.0
  %1802 = vmatprep.subr.mxu0 0.0
  %1803 = vmatpush1.msra.mxu0 0.0
  %1804 = vmatprep.subr.mxu0 0.0
  %1805 = vmatpush1.msra.mxu0 0.0
  %1806 = vmatprep.subr.mxu0 0.0
  %1807 = vmatpush1.msra.mxu0 0.0
  %1808 = vmatprep.subr.mxu0 0.0
  %1809 = vmatpush1.msra.mxu0 0.0
  %1810 = vmatprep.mubr.f32.mxu0 0.0
  %1811 = vmatmul.mubr.f32.gmra.mrb[0].mxu0 %v1744
  %v1812 = vpop.f32.mrb[0].mxu0
  %v1813 = vadd.f32 0.0, %v1812
  %v1814 = vpop.f32.mrb[0].mxu0
  %1815 = vdwg.mxu0
  %1818 = vrot.lane.b32.xlu0 %v1433, 8
  %v1819 = vpop.permute.xlu0 %1818
  %1820 = vrot.lane.b32.xlu0 %v1509, 8
  %v1821 = vpop.permute.xlu0 %1820
  %1826 = vrot.lane.b32.xlu0 %v1585, 16
  %v1827 = vpop.permute.xlu0 %1826
  %1828 = vrot.lane.b32.xlu0 %v1661, 16
  %v1829 = vpop.permute.xlu0 %1828
  %1834 = vrot.lane.b32.xlu0 %v1737, 24
  %v1835 = vpop.permute.xlu0 %1834
  %1836 = vrot.lane.b32.xlu0 %v1813, 24
  %v1837 = vpop.permute.xlu0 %1836
  %v1840 = vsel %vm505, %v1281, %v1819
  %v1841 = vsel %vm505, %v1357, %v1821
  %vm1842 = vcmask 130048
  %v1843 = vsel %vm1842, %v1840, %v1827
  %v1844 = vsel %vm1842, %v1841, %v1829
  %vm1845 = vcmask 195584
  %v1846 = vsel %vm1845, %v1843, %v1835
  %v1847 = vsel %vm1845, %v1844, %v1837
  %v1848 = vld [vmem:[%s4 + $0x10] sm:$0xff]
  %v1849 = vld [vmem:[%s4 + $0x58] sm:$0xff]
  %v1850 = vld [vmem:[%s4 + $0xa0] sm:$0xff]
  %v1851 = vld [vmem:[%s4 + $0xe8] sm:$0xff]
  %v1852 = vlaneseq
  %v1853 = vshrl.u32 %v1852, 7
  %v1854 = vsub.s32 7, %v1853
  %v1855 = vrot.slane %v23, %v1854
  %v1857 = vsel %vm133, %v1846, 0
  %v1860 = vsel %vm133, %v1847, 0
  %1862 = vmatprep.subr.mxu0 0.0
  %1863 = vmatpush1.msra.mxu0 %v1848
  %1864 = vmatprep.subr.mxu0 0.0
  %1865 = vmatpush1.msra.mxu0 %v1849
  %1866 = vmatprep.subr.mxu0 0.0
  %1867 = vmatpush1.msra.mxu0 %v1850
  %1868 = vmatprep.subr.mxu0 0.0
  %1869 = vmatpush1.msra.mxu0 %v1851
  %1870 = vmatprep.subr.mxu0 0.0
  %1871 = vmatpush1.msra.mxu0 0.0
  %1872 = vmatprep.subr.mxu0 0.0
  %1873 = vmatpush1.msra.mxu0 0.0
  %1874 = vmatprep.subr.mxu0 0.0
  %1875 = vmatpush1.msra.mxu0 0.0
  %1876 = vmatprep.subr.mxu0 0.0
  %1877 = vmatpush1.msra.mxu0 0.0
  %1878 = vmatprep.subr.mxu0 0.0
  %1879 = vmatpush1.msra.mxu0 0.0
  %1880 = vmatprep.subr.mxu0 0.0
  %1881 = vmatpush1.msra.mxu0 0.0
  %1882 = vmatprep.subr.mxu0 0.0
  %1883 = vmatpush1.msra.mxu0 0.0
  %1884 = vmatprep.subr.mxu0 0.0
  %1885 = vmatpush1.msra.mxu0 0.0
  %1886 = vmatprep.subr.mxu0 0.0
  %1887 = vmatpush1.msra.mxu0 0.0
  %1888 = vmatprep.subr.mxu0 0.0
  %1889 = vmatpush1.msra.mxu0 0.0
  %1890 = vmatprep.subr.mxu0 0.0
  %1891 = vmatpush1.msra.mxu0 0.0
  %1892 = vmatprep.subr.mxu0 0.0
  %1893 = vmatpush1.msra.mxu0 0.0
  %1894 = vmatprep.subr.mxu0 0.0
  %1895 = vmatpush1.msra.mxu0 0.0
  %1896 = vmatprep.subr.mxu0 0.0
  %1897 = vmatpush1.msra.mxu0 0.0
  %1898 = vmatprep.subr.mxu0 0.0
  %1899 = vmatpush1.msra.mxu0 0.0
  %1900 = vmatprep.subr.mxu0 0.0
  %1901 = vmatpush1.msra.mxu0 0.0
  %1902 = vmatprep.subr.mxu0 0.0
  %1903 = vmatpush1.msra.mxu0 0.0
  %1904 = vmatprep.subr.mxu0 0.0
  %1905 = vmatpush1.msra.mxu0 0.0
  %1906 = vmatprep.subr.mxu0 0.0
  %1907 = vmatpush1.msra.mxu0 0.0
  %1908 = vmatprep.subr.mxu0 0.0
  %1909 = vmatpush1.msra.mxu0 0.0
  %1910 = vmatprep.subr.mxu0 0.0
  %1911 = vmatpush1.msra.mxu0 0.0
  %1912 = vmatprep.subr.mxu0 0.0
  %1913 = vmatpush1.msra.mxu0 0.0
  %1914 = vmatprep.subr.mxu0 0.0
  %1915 = vmatpush1.msra.mxu0 0.0
  %1916 = vmatprep.subr.mxu0 0.0
  %1917 = vmatpush1.msra.mxu0 0.0
  %1918 = vmatprep.subr.mxu0 0.0
  %1919 = vmatpush1.msra.mxu0 0.0
  %1920 = vmatprep.subr.mxu0 0.0
  %1921 = vmatpush1.msra.mxu0 0.0
  %1922 = vmatprep.subr.mxu0 0.0
  %1923 = vmatpush1.msra.mxu0 0.0
  %1924 = vmatprep.subr.mxu0 0.0
  %1925 = vmatpush1.msra.mxu0 0.0
  %1926 = vmatprep.mubr.f32.mxu0 0.0
  %1927 = vmatmul.mubr.f32.gmra.mrb[0].mxu0 %v1857
  %v1928 = vpop.f32.mrb[0].mxu0
  %v1929 = vadd.f32 %v1855, %v1928
  %v1930 = vpop.f32.mrb[0].mxu0
  %1931 = vmatprep.mubr.f32.mxu0 0.0
  %1932 = vmatmul.mubr.f32.gmra.mrb[0].mxu0 %v1860
  %v1933 = vpop.f32.mrb[0].mxu0
  %v1934 = vadd.f32 %v1855, %v1933
  %v1935 = vpop.f32.mrb[0].mxu0
  %1936 = vdwg.mxu0
  %v1937 = vadd.f32 %v1929, %v398
  %v1938 = vadd.f32 %v1934, %v399
  %v1939 = vsel %vm133, %v1937, 0.0
  %1940 = vadd.xlane.f32.xlu0 %v1939
  %v1941 = vpop.xlane.xlu0 %1940
  %v1942 = vsel %vm133, %v1938, 0.0
  %1943 = vadd.xlane.f32.xlu0 %v1942
  %v1944 = vpop.xlane.xlu0 %1943
  %v1945 = vmul.f32 %v1941, %v140
  %v1946 = vmul.f32 %v1944, %v140
  %v1947 = vsub.f32 %v1937, %v1945
  %v1948 = vsub.f32 %v1938, %v1946
  %v1949 = vmul.f32 %v1947, %v1947
  %v1950 = vmul.f32 %v1948, %v1948
  %v1951 = vsel %vm133, %v1949, 0.0
  %1952 = vadd.xlane.f32.xlu0 %v1951
  %v1953 = vpop.xlane.xlu0 %1952
  %v1954 = vsel %vm133, %v1950, 0.0
  %1955 = vadd.xlane.f32.xlu0 %v1954
  %v1956 = vpop.xlane.xlu0 %1955
  %v1957 = vmul.f32 %v1953, %v140
  %v1958 = vmul.f32 %v1956, %v140
  %v1959 = vadd.f32 %v1957, 1e-12
  %v1960 = vadd.f32 %v1958, 1e-12
  %v1961 = vrsqrt.pop %v1959
  %v1962 = vrsqrt.pop %v1960
  %v1963 = vmul.f32 %v1947, %v1961
  %v1964 = vmul.f32 %v1948, %v1962
  %v1965 = vlaneseq
  %v1966 = vshrl.u32 %v1965, 7
  %v1967 = vsub.s32 0, %v1966
  %v1968 = vrot.slane %v24, %v1967
  %v1969 = vmul.f32 %v1963, %v1968
  %v1970 = vmul.f32 %v1964, %v1968
  %v1971 = vlaneseq
  %v1972 = vshrl.u32 %v1971, 7
  %v1973 = vsub.s32 1, %v1972
  %v1974 = vrot.slane %v24, %v1973
  %v1975 = vadd.f32 %v1969, %v1974
  %v1976 = vadd.f32 %v1970, %v1974
  %v1977 = vld [vmem:[%s4 + $0x18] sm:$0xff]
  %v1978 = vld [vmem:[%s4 + $0x60] sm:$0xff]
  %v1979 = vld [vmem:[%s4 + $0xa8] sm:$0xff]
  %v1980 = vld [vmem:[%s4 + $0xf0] sm:$0xff]
  %v1981 = vlaneseq
  %v1982 = vshrl.u32 %v1981, 7
  %v1983 = vsub.s32 2, %v1982
  %v1984 = vrot.slane %v24, %v1983
  %v1986 = vsel %vm133, %v1975, 0
  %v1989 = vsel %vm133, %v1976, 0
  %1991 = vmatprep.subr.mxu0 0.0
  %1992 = vmatpush1.msra.mxu0 %v1977
  %1993 = vmatprep.subr.mxu0 0.0
  %1994 = vmatpush1.msra.mxu0 %v1978
  %1995 = vmatprep.subr.mxu0 0.0
  %1996 = vmatpush1.msra.mxu0 %v1979
  %1997 = vmatprep.subr.mxu0 0.0
  %1998 = vmatpush1.msra.mxu0 %v1980
  %1999 = vmatprep.subr.mxu0 0.0
  %2000 = vmatpush1.msra.mxu0 0.0
  %2001 = vmatprep.subr.mxu0 0.0
  %2002 = vmatpush1.msra.mxu0 0.0
  %2003 = vmatprep.subr.mxu0 0.0
  %2004 = vmatpush1.msra.mxu0 0.0
  %2005 = vmatprep.subr.mxu0 0.0
  %2006 = vmatpush1.msra.mxu0 0.0
  %2007 = vmatprep.subr.mxu0 0.0
  %2008 = vmatpush1.msra.mxu0 0.0
  %2009 = vmatprep.subr.mxu0 0.0
  %2010 = vmatpush1.msra.mxu0 0.0
  %2011 = vmatprep.subr.mxu0 0.0
  %2012 = vmatpush1.msra.mxu0 0.0
  %2013 = vmatprep.subr.mxu0 0.0
  %2014 = vmatpush1.msra.mxu0 0.0
  %2015 = vmatprep.subr.mxu0 0.0
  %2016 = vmatpush1.msra.mxu0 0.0
  %2017 = vmatprep.subr.mxu0 0.0
  %2018 = vmatpush1.msra.mxu0 0.0
  %2019 = vmatprep.subr.mxu0 0.0
  %2020 = vmatpush1.msra.mxu0 0.0
  %2021 = vmatprep.subr.mxu0 0.0
  %2022 = vmatpush1.msra.mxu0 0.0
  %2023 = vmatprep.subr.mxu0 0.0
  %2024 = vmatpush1.msra.mxu0 0.0
  %2025 = vmatprep.subr.mxu0 0.0
  %2026 = vmatpush1.msra.mxu0 0.0
  %2027 = vmatprep.subr.mxu0 0.0
  %2028 = vmatpush1.msra.mxu0 0.0
  %2029 = vmatprep.subr.mxu0 0.0
  %2030 = vmatpush1.msra.mxu0 0.0
  %2031 = vmatprep.subr.mxu0 0.0
  %2032 = vmatpush1.msra.mxu0 0.0
  %2033 = vmatprep.subr.mxu0 0.0
  %2034 = vmatpush1.msra.mxu0 0.0
  %2035 = vmatprep.subr.mxu0 0.0
  %2036 = vmatpush1.msra.mxu0 0.0
  %2037 = vmatprep.subr.mxu0 0.0
  %2038 = vmatpush1.msra.mxu0 0.0
  %2039 = vmatprep.subr.mxu0 0.0
  %2040 = vmatpush1.msra.mxu0 0.0
  %2041 = vmatprep.subr.mxu0 0.0
  %2042 = vmatpush1.msra.mxu0 0.0
  %2043 = vmatprep.subr.mxu0 0.0
  %2044 = vmatpush1.msra.mxu0 0.0
  %2045 = vmatprep.subr.mxu0 0.0
  %2046 = vmatpush1.msra.mxu0 0.0
  %2047 = vmatprep.subr.mxu0 0.0
  %2048 = vmatpush1.msra.mxu0 0.0
  %2049 = vmatprep.subr.mxu0 0.0
  %2050 = vmatpush1.msra.mxu0 0.0
  %2051 = vmatprep.subr.mxu0 0.0
  %2052 = vmatpush1.msra.mxu0 0.0
  %2053 = vmatprep.subr.mxu0 0.0
  %2054 = vmatpush1.msra.mxu0 0.0
  %2055 = vmatprep.mubr.f32.mxu0 0.0
  %2056 = vmatmul.mubr.f32.gmra.mrb[0].mxu0 %v1986
  %v2057 = vpop.f32.mrb[0].mxu0
  %v2058 = vadd.f32 %v1984, %v2057
  %v2059 = vpop.f32.mrb[0].mxu0
  %2060 = vmatprep.mubr.f32.mxu0 0.0
  %2061 = vmatmul.mubr.f32.gmra.mrb[0].mxu0 %v1989
  %v2062 = vpop.f32.mrb[0].mxu0
  %v2063 = vadd.f32 %v1984, %v2062
  %v2064 = vpop.f32.mrb[0].mxu0
  %2065 = vdwg.mxu0
  %v2066 = vmul.f32 %v2058, 0.5
  %v2067 = vmul.f32 %v2063, 0.5
  %v2068 = vmul.f32 %v2058, 0.044715
  %v2069 = vmul.f32 %v2063, 0.044715
  %v2070 = vmul.f32 %v2068, %v2058
  %v2071 = vmul.f32 %v2069, %v2063
  %v2072 = vmul.f32 %v2070, %v2058
  %v2073 = vmul.f32 %v2071, %v2063
  %v2074 = vadd.f32 %v2058, %v2072
  %v2075 = vadd.f32 %v2063, %v2073
  %v2076 = vmul.f32 %v2074, 0.7978846
  %v2077 = vmul.f32 %v2075, 0.7978846
  %v2078 = vtanh.pop %v2076
  %v2079 = vtanh.pop %v2077
  %v2080 = vadd.f32 %v2078, 1.0
  %v2081 = vadd.f32 %v2079, 1.0
  %v2082 = vmul.f32 %v2066, %v2080
  %v2083 = vmul.f32 %v2067, %v2081
  %v2084 = vld [vmem:[%s5 + $0x80] sm:$0xff]
  %v2085 = vld [vmem:[%s5 + $0x88] sm:$0xff]
  %v2086 = vld [vmem:[%s5 + $0x90] sm:$0xff]
  %v2087 = vld [vmem:[%s5 + $0x98] sm:$0xff]
  %v2088 = vld [vmem:[%s5 + $0xa0] sm:$0xff]
  %v2089 = vld [vmem:[%s5 + $0xa8] sm:$0xff]
  %v2090 = vld [vmem:[%s5 + $0xb0] sm:$0xff]
  %v2091 = vld [vmem:[%s5 + $0xb8] sm:$0xff]
  %v2092 = vld [vmem:[%s5 + $0xc0] sm:$0xff]
  %v2093 = vld [vmem:[%s5 + $0xc8] sm:$0xff]
  %v2094 = vld [vmem:[%s5 + $0xd0] sm:$0xff]
  %v2095 = vld [vmem:[%s5 + $0xd8] sm:$0xff]
  %v2096 = vld [vmem:[%s5 + $0xe0] sm:$0xff]
  %v2097 = vld [vmem:[%s5 + $0xe8] sm:$0xff]
  %v2098 = vld [vmem:[%s5 + $0xf0] sm:$0xff]
  %v2099 = vld [vmem:[%s5 + $0xf8] sm:$0xff]
  %v2100 = vlaneseq
  %v2101 = vshrl.u32 %v2100, 7
  %v2102 = vsub.s32 3, %v2101
  %v2103 = vrot.slane %v24, %v2102
  %2104 = vmatprep.subr.mxu0 0.0
  %2105 = vmatpush1.msra.mxu0 %v2084
  %2106 = vmatprep.subr.mxu0 0.0
  %2107 = vmatpush1.msra.mxu0 %v2085
  %2108 = vmatprep.subr.mxu0 0.0
  %2109 = vmatpush1.msra.mxu0 %v2086
  %2110 = vmatprep.subr.mxu0 0.0
  %2111 = vmatpush1.msra.mxu0 %v2087
  %2112 = vmatprep.subr.mxu0 0.0
  %2113 = vmatpush1.msra.mxu0 %v2088
  %2114 = vmatprep.subr.mxu0 0.0
  %2115 = vmatpush1.msra.mxu0 %v2089
  %2116 = vmatprep.subr.mxu0 0.0
  %2117 = vmatpush1.msra.mxu0 %v2090
  %2118 = vmatprep.subr.mxu0 0.0
  %2119 = vmatpush1.msra.mxu0 %v2091
  %2120 = vmatprep.subr.mxu0 0.0
  %2121 = vmatpush1.msra.mxu0 %v2092
  %2122 = vmatprep.subr.mxu0 0.0
  %2123 = vmatpush1.msra.mxu0 %v2093
  %2124 = vmatprep.subr.mxu0 0.0
  %2125 = vmatpush1.msra.mxu0 %v2094
  %2126 = vmatprep.subr.mxu0 0.0
  %2127 = vmatpush1.msra.mxu0 %v2095
  %2128 = vmatprep.subr.mxu0 0.0
  %2129 = vmatpush1.msra.mxu0 %v2096
  %2130 = vmatprep.subr.mxu0 0.0
  %2131 = vmatpush1.msra.mxu0 %v2097
  %2132 = vmatprep.subr.mxu0 0.0
  %2133 = vmatpush1.msra.mxu0 %v2098
  %2134 = vmatprep.subr.mxu0 0.0
  %2135 = vmatpush1.msra.mxu0 %v2099
  %2136 = vmatprep.subr.mxu0 0.0
  %2137 = vmatpush1.msra.mxu0 0.0
  %2138 = vmatprep.subr.mxu0 0.0
  %2139 = vmatpush1.msra.mxu0 0.0
  %2140 = vmatprep.subr.mxu0 0.0
  %2141 = vmatpush1.msra.mxu0 0.0
  %2142 = vmatprep.subr.mxu0 0.0
  %2143 = vmatpush1.msra.mxu0 0.0
  %2144 = vmatprep.subr.mxu0 0.0
  %2145 = vmatpush1.msra.mxu0 0.0
  %2146 = vmatprep.subr.mxu0 0.0
  %2147 = vmatpush1.msra.mxu0 0.0
  %2148 = vmatprep.subr.mxu0 0.0
  %2149 = vmatpush1.msra.mxu0 0.0
  %2150 = vmatprep.subr.mxu0 0.0
  %2151 = vmatpush1.msra.mxu0 0.0
  %2152 = vmatprep.subr.mxu0 0.0
  %2153 = vmatpush1.msra.mxu0 0.0
  %2154 = vmatprep.subr.mxu0 0.0
  %2155 = vmatpush1.msra.mxu0 0.0
  %2156 = vmatprep.subr.mxu0 0.0
  %2157 = vmatpush1.msra.mxu0 0.0
  %2158 = vmatprep.subr.mxu0 0.0
  %2159 = vmatpush1.msra.mxu0 0.0
  %2160 = vmatprep.subr.mxu0 0.0
  %2161 = vmatpush1.msra.mxu0 0.0
  %2162 = vmatprep.subr.mxu0 0.0
  %2163 = vmatpush1.msra.mxu0 0.0
  %2164 = vmatprep.subr.mxu0 0.0
  %2165 = vmatpush1.msra.mxu0 0.0
  %2166 = vmatprep.subr.mxu0 0.0
  %2167 = vmatpush1.msra.mxu0 0.0
  %2168 = vmatprep.mubr.f32.mxu0 0.0
  %2169 = vmatmul.mubr.f32.gmra.mrb[0].mxu0 %v2082
  %v2170 = vpop.f32.mrb[0].mxu0
  %v2171 = vadd.f32 %v2103, %v2170
  %v2172 = vpop.f32.mrb[0].mxu0
  %2173 = vmatprep.mubr.f32.mxu0 0.0
  %2174 = vmatmul.mubr.f32.gmra.mrb[0].mxu0 %v2083
  %v2175 = vpop.f32.mrb[0].mxu0
  %v2176 = vadd.f32 %v2103, %v2175
  %v2177 = vpop.f32.mrb[0].mxu0
  %2178 = vdwg.mxu0
  %v2179 = vadd.f32 %v2171, %v1975
  %v2180 = vadd.f32 %v2176, %v1976
  %v2181 = vsel %vm133, %v2179, 0.0
  %2182 = vadd.xlane.f32.xlu0 %v2181
  %v2183 = vpop.xlane.xlu0 %2182
  %v2184 = vsel %vm133, %v2180, 0.0
  %2185 = vadd.xlane.f32.xlu0 %v2184
  %v2186 = vpop.xlane.xlu0 %2185
  %v2187 = vmul.f32 %v2183, %v140
  %v2188 = vmul.f32 %v2186, %v140
  %v2189 = vsub.f32 %v2179, %v2187
  %v2190 = vsub.f32 %v2180, %v2188
  %v2191 = vmul.f32 %v2189, %v2189
  %v2192 = vmul.f32 %v2190, %v2190
  %v2193 = vsel %vm133, %v2191, 0.0
  %2194 = vadd.xlane.f32.xlu0 %v2193
  %v2195 = vpop.xlane.xlu0 %2194
  %v2196 = vsel %vm133, %v2192, 0.0
  %2197 = vadd.xlane.f32.xlu0 %v2196
  %v2198 = vpop.xlane.xlu0 %2197
  %v2199 = vmul.f32 %v2195, %v140
  %v2200 = vmul.f32 %v2198, %v140
  %v2201 = vadd.f32 %v2199, 1e-12
  %v2202 = vadd.f32 %v2200, 1e-12
  %v2203 = vrsqrt.pop %v2201
  %v2204 = vrsqrt.pop %v2202
  %v2205 = vmul.f32 %v2189, %v2203
  %v2206 = vmul.f32 %v2190, %v2204
  %v2207 = vlaneseq
  %v2208 = vshrl.u32 %v2207, 7
  %v2209 = vsub.s32 4, %v2208
  %v2210 = vrot.slane %v24, %v2209
  %v2211 = vmul.f32 %v2205, %v2210
  %v2212 = vmul.f32 %v2206, %v2210
  %v2213 = vlaneseq
  %v2214 = vshrl.u32 %v2213, 7
  %v2215 = vsub.s32 5, %v2214
  %v2216 = vrot.slane %v24, %v2215
  %v2217 = vadd.f32 %v2211, %v2216
  %v2218 = vadd.f32 %v2212, %v2216
  %v2219 = vld [vmem:[%s4 + $0x20] sm:$0xff]
  %v2220 = vld [vmem:[%s4 + $0x68] sm:$0xff]
  %v2221 = vld [vmem:[%s4 + $0xb0] sm:$0xff]
  %v2222 = vld [vmem:[%s4 + $0xf8] sm:$0xff]
  %v2223 = vlaneseq
  %v2224 = vshrl.u32 %v2223, 7
  %v2225 = vsub.s32 6, %v2224
  %v2226 = vrot.slane %v24, %v2225
  %v2228 = vsel %vm133, %v2217, 0
  %v2231 = vsel %vm133, %v2218, 0
  %2233 = vmatprep.subr.mxu0 0.0
  %2234 = vmatpush1.msra.mxu0 %v2219
  %2235 = vmatprep.subr.mxu0 0.0
  %2236 = vmatpush1.msra.mxu0 %v2220
  %2237 = vmatprep.subr.mxu0 0.0
  %2238 = vmatpush1.msra.mxu0 %v2221
  %2239 = vmatprep.subr.mxu0 0.0
  %2240 = vmatpush1.msra.mxu0 %v2222
  %2241 = vmatprep.subr.mxu0 0.0
  %2242 = vmatpush1.msra.mxu0 0.0
  %2243 = vmatprep.subr.mxu0 0.0
  %2244 = vmatpush1.msra.mxu0 0.0
  %2245 = vmatprep.subr.mxu0 0.0
  %2246 = vmatpush1.msra.mxu0 0.0
  %2247 = vmatprep.subr.mxu0 0.0
  %2248 = vmatpush1.msra.mxu0 0.0
  %2249 = vmatprep.subr.mxu0 0.0
  %2250 = vmatpush1.msra.mxu0 0.0
  %2251 = vmatprep.subr.mxu0 0.0
  %2252 = vmatpush1.msra.mxu0 0.0
  %2253 = vmatprep.subr.mxu0 0.0
  %2254 = vmatpush1.msra.mxu0 0.0
  %2255 = vmatprep.subr.mxu0 0.0
  %2256 = vmatpush1.msra.mxu0 0.0
  %2257 = vmatprep.subr.mxu0 0.0
  %2258 = vmatpush1.msra.mxu0 0.0
  %2259 = vmatprep.subr.mxu0 0.0
  %2260 = vmatpush1.msra.mxu0 0.0
  %2261 = vmatprep.subr.mxu0 0.0
  %2262 = vmatpush1.msra.mxu0 0.0
  %2263 = vmatprep.subr.mxu0 0.0
  %2264 = vmatpush1.msra.mxu0 0.0
  %2265 = vmatprep.subr.mxu0 0.0
  %2266 = vmatpush1.msra.mxu0 0.0
  %2267 = vmatprep.subr.mxu0 0.0
  %2268 = vmatpush1.msra.mxu0 0.0
  %2269 = vmatprep.subr.mxu0 0.0
  %2270 = vmatpush1.msra.mxu0 0.0
  %2271 = vmatprep.subr.mxu0 0.0
  %2272 = vmatpush1.msra.mxu0 0.0
  %2273 = vmatprep.subr.mxu0 0.0
  %2274 = vmatpush1.msra.mxu0 0.0
  %2275 = vmatprep.subr.mxu0 0.0
  %2276 = vmatpush1.msra.mxu0 0.0
  %2277 = vmatprep.subr.mxu0 0.0
  %2278 = vmatpush1.msra.mxu0 0.0
  %2279 = vmatprep.subr.mxu0 0.0
  %2280 = vmatpush1.msra.mxu0 0.0
  %2281 = vmatprep.subr.mxu0 0.0
  %2282 = vmatpush1.msra.mxu0 0.0
  %2283 = vmatprep.subr.mxu0 0.0
  %2284 = vmatpush1.msra.mxu0 0.0
  %2285 = vmatprep.subr.mxu0 0.0
  %2286 = vmatpush1.msra.mxu0 0.0
  %2287 = vmatprep.subr.mxu0 0.0
  %2288 = vmatpush1.msra.mxu0 0.0
  %2289 = vmatprep.subr.mxu0 0.0
  %2290 = vmatpush1.msra.mxu0 0.0
  %2291 = vmatprep.subr.mxu0 0.0
  %2292 = vmatpush1.msra.mxu0 0.0
  %2293 = vmatprep.subr.mxu0 0.0
  %2294 = vmatpush1.msra.mxu0 0.0
  %2295 = vmatprep.subr.mxu0 0.0
  %2296 = vmatpush1.msra.mxu0 0.0
  %2297 = vmatprep.mubr.f32.mxu0 0.0
  %2298 = vmatmul.mubr.f32.gmra.mrb[0].mxu0 %v2228
  %v2299 = vpop.f32.mrb[0].mxu0
  %v2300 = vadd.f32 %v2226, %v2299
  %v2301 = vpop.f32.mrb[0].mxu0
  %2302 = vmatprep.mubr.f32.mxu0 0.0
  %2303 = vmatmul.mubr.f32.gmra.mrb[0].mxu0 %v2231
  %v2304 = vpop.f32.mrb[0].mxu0
  %v2305 = vadd.f32 %v2226, %v2304
  %v2306 = vpop.f32.mrb[0].mxu0
  %2307 = vdwg.mxu0
  %2310 = vrot.lane.b32.xlu0 %v2300, 120
  %v2311 = vpop.permute.xlu0 %2310
  %2312 = vrot.lane.b32.xlu0 %v2305, 120
  %v2313 = vpop.permute.xlu0 %2312
  %2314 = vrot.lane.b32.xlu0 %v2300, 112
  %v2315 = vpop.permute.xlu0 %2314
  %2316 = vrot.lane.b32.xlu0 %v2305, 112
  %v2317 = vpop.permute.xlu0 %2316
  %2318 = vrot.lane.b32.xlu0 %v2300, 104
  %v2319 = vpop.permute.xlu0 %2318
  %2320 = vrot.lane.b32.xlu0 %v2305, 104
  %v2321 = vpop.permute.xlu0 %2320
  %2322 = vrot.lane.b32.xlu0 %v2300, 96
  %v2323 = vpop.permute.xlu0 %2322
  %v2324 = vsel %vm505, %v2300, 0
  %v2326 = vsel %vm505, %v2323, 0
  %2328 = vmatprep.subr.mxu0 0.0
  %2329 = vmatpush1.xpose.msra.mxu0 %v2326
  %2330 = vmatprep.subr.mxu0 0.0
  %2331 = vmatpush1.xpose.msra.mxu0 0.0
  %2332 = vmatprep.subr.mxu0 0.0
  %2333 = vmatpush1.xpose.msra.mxu0 0.0
  %2334 = vmatprep.subr.mxu0 0.0
  %2335 = vmatpush1.xpose.msra.mxu0 0.0
  %2336 = vmatprep.subr.mxu0 0.0
  %2337 = vmatpush1.xpose.msra.mxu0 0.0
  %2338 = vmatprep.subr.mxu0 0.0
  %2339 = vmatpush1.xpose.msra.mxu0 0.0
  %2340 = vmatprep.subr.mxu0 0.0
  %2341 = vmatpush1.xpose.msra.mxu0 0.0
  %2342 = vmatprep.subr.mxu0 0.0
  %2343 = vmatpush1.xpose.msra.mxu0 0.0
  %2344 = vmatprep.subr.mxu0 0.0
  %2345 = vmatpush1.xpose.msra.mxu0 0.0
  %2346 = vmatprep.subr.mxu0 0.0
  %2347 = vmatpush1.xpose.msra.mxu0 0.0
  %2348 = vmatprep.subr.mxu0 0.0
  %2349 = vmatpush1.xpose.msra.mxu0 0.0
  %2350 = vmatprep.subr.mxu0 0.0
  %2351 = vmatpush1.xpose.msra.mxu0 0.0
  %2352 = vmatprep.subr.mxu0 0.0
  %2353 = vmatpush1.xpose.msra.mxu0 0.0
  %2354 = vmatprep.subr.mxu0 0.0
  %2355 = vmatpush1.xpose.msra.mxu0 0.0
  %2356 = vmatprep.subr.mxu0 0.0
  %2357 = vmatpush1.xpose.msra.mxu0 0.0
  %2358 = vmatprep.subr.mxu0 0.0
  %2359 = vmatpush1.xpose.msra.mxu0 0.0
  %2360 = vmatprep.subr.mxu0 0.0
  %2361 = vmatpush1.xpose.msra.mxu0 0.0
  %2362 = vmatprep.subr.mxu0 0.0
  %2363 = vmatpush1.xpose.msra.mxu0 0.0
  %2364 = vmatprep.subr.mxu0 0.0
  %2365 = vmatpush1.xpose.msra.mxu0 0.0
  %2366 = vmatprep.subr.mxu0 0.0
  %2367 = vmatpush1.xpose.msra.mxu0 0.0
  %2368 = vmatprep.subr.mxu0 0.0
  %2369 = vmatpush1.xpose.msra.mxu0 0.0
  %2370 = vmatprep.subr.mxu0 0.0
  %2371 = vmatpush1.xpose.msra.mxu0 0.0
  %2372 = vmatprep.subr.mxu0 0.0
  %2373 = vmatpush1.xpose.msra.mxu0 0.0
  %2374 = vmatprep.subr.mxu0 0.0
  %2375 = vmatpush1.xpose.msra.mxu0 0.0
  %2376 = vmatprep.subr.mxu0 0.0
  %2377 = vmatpush1.xpose.msra.mxu0 0.0
  %2378 = vmatprep.subr.mxu0 0.0
  %2379 = vmatpush1.xpose.msra.mxu0 0.0
  %2380 = vmatprep.subr.mxu0 0.0
  %2381 = vmatpush1.xpose.msra.mxu0 0.0
  %2382 = vmatprep.subr.mxu0 0.0
  %2383 = vmatpush1.xpose.msra.mxu0 0.0
  %2384 = vmatprep.subr.mxu0 0.0
  %2385 = vmatpush1.xpose.msra.mxu0 0.0
  %2386 = vmatprep.subr.mxu0 0.0
  %2387 = vmatpush1.xpose.msra.mxu0 0.0
  %2388 = vmatprep.subr.mxu0 0.0
  %2389 = vmatpush1.xpose.msra.mxu0 0.0
  %2390 = vmatprep.subr.mxu0 0.0
  %2391 = vmatpush1.xpose.msra.mxu0 0.0
  %2392 = vmatprep.mubr.f32.mxu0 0.0
  %2393 = vmatmul.mubr.f32.gmra.mrb[0].mxu0 %v2324
  %v2394 = vpop.f32.mrb[0].mxu0
  %v2395 = vadd.f32 0.0, %v2394
  %v2396 = vpop.f32.mrb[0].mxu0
  %2397 = vdwg.mxu0
  %2398 = vrot.lane.b32.xlu0 %v2305, 96
  %v2399 = vpop.permute.xlu0 %2398
  %v2400 = vsel %vm505, %v2305, 0
  %v2402 = vsel %vm505, %v2399, 0
  %2404 = vmatprep.subr.mxu0 0.0
  %2405 = vmatpush1.xpose.msra.mxu0 %v2402
  %2406 = vmatprep.subr.mxu0 0.0
  %2407 = vmatpush1.xpose.msra.mxu0 0.0
  %2408 = vmatprep.subr.mxu0 0.0
  %2409 = vmatpush1.xpose.msra.mxu0 0.0
  %2410 = vmatprep.subr.mxu0 0.0
  %2411 = vmatpush1.xpose.msra.mxu0 0.0
  %2412 = vmatprep.subr.mxu0 0.0
  %2413 = vmatpush1.xpose.msra.mxu0 0.0
  %2414 = vmatprep.subr.mxu0 0.0
  %2415 = vmatpush1.xpose.msra.mxu0 0.0
  %2416 = vmatprep.subr.mxu0 0.0
  %2417 = vmatpush1.xpose.msra.mxu0 0.0
  %2418 = vmatprep.subr.mxu0 0.0
  %2419 = vmatpush1.xpose.msra.mxu0 0.0
  %2420 = vmatprep.subr.mxu0 0.0
  %2421 = vmatpush1.xpose.msra.mxu0 0.0
  %2422 = vmatprep.subr.mxu0 0.0
  %2423 = vmatpush1.xpose.msra.mxu0 0.0
  %2424 = vmatprep.subr.mxu0 0.0
  %2425 = vmatpush1.xpose.msra.mxu0 0.0
  %2426 = vmatprep.subr.mxu0 0.0
  %2427 = vmatpush1.xpose.msra.mxu0 0.0
  %2428 = vmatprep.subr.mxu0 0.0
  %2429 = vmatpush1.xpose.msra.mxu0 0.0
  %2430 = vmatprep.subr.mxu0 0.0
  %2431 = vmatpush1.xpose.msra.mxu0 0.0
  %2432 = vmatprep.subr.mxu0 0.0
  %2433 = vmatpush1.xpose.msra.mxu0 0.0
  %2434 = vmatprep.subr.mxu0 0.0
  %2435 = vmatpush1.xpose.msra.mxu0 0.0
  %2436 = vmatprep.subr.mxu0 0.0
  %2437 = vmatpush1.xpose.msra.mxu0 0.0
  %2438 = vmatprep.subr.mxu0 0.0
  %2439 = vmatpush1.xpose.msra.mxu0 0.0
  %2440 = vmatprep.subr.mxu0 0.0
  %2441 = vmatpush1.xpose.msra.mxu0 0.0
  %2442 = vmatprep.subr.mxu0 0.0
  %2443 = vmatpush1.xpose.msra.mxu0 0.0
  %2444 = vmatprep.subr.mxu0 0.0
  %2445 = vmatpush1.xpose.msra.mxu0 0.0
  %2446 = vmatprep.subr.mxu0 0.0
  %2447 = vmatpush1.xpose.msra.mxu0 0.0
  %2448 = vmatprep.subr.mxu0 0.0
  %2449 = vmatpush1.xpose.msra.mxu0 0.0
  %2450 = vmatprep.subr.mxu0 0.0
  %2451 = vmatpush1.xpose.msra.mxu0 0.0
  %2452 = vmatprep.subr.mxu0 0.0
  %2453 = vmatpush1.xpose.msra.mxu0 0.0
  %2454 = vmatprep.subr.mxu0 0.0
  %2455 = vmatpush1.xpose.msra.mxu0 0.0
  %2456 = vmatprep.subr.mxu0 0.0
  %2457 = vmatpush1.xpose.msra.mxu0 0.0
  %2458 = vmatprep.subr.mxu0 0.0
  %2459 = vmatpush1.xpose.msra.mxu0 0.0
  %2460 = vmatprep.subr.mxu0 0.0
  %2461 = vmatpush1.xpose.msra.mxu0 0.0
  %2462 = vmatprep.subr.mxu0 0.0
  %2463 = vmatpush1.xpose.msra.mxu0 0.0
  %2464 = vmatprep.subr.mxu0 0.0
  %2465 = vmatpush1.xpose.msra.mxu0 0.0
  %2466 = vmatprep.subr.mxu0 0.0
  %2467 = vmatpush1.xpose.msra.mxu0 0.0
  %2468 = vmatprep.mubr.f32.mxu0 0.0
  %2469 = vmatmul.mubr.f32.gmra.mrb[0].mxu0 %v2400
  %v2470 = vpop.f32.mrb[0].mxu0
  %v2471 = vadd.f32 0.0, %v2470
  %v2472 = vpop.f32.mrb[0].mxu0
  %2473 = vdwg.mxu0
  %2474 = vrot.lane.b32.xlu0 %v2311, 96
  %v2475 = vpop.permute.xlu0 %2474
  %v2476 = vsel %vm505, %v2311, 0
  %v2478 = vsel %vm505, %v2475, 0
  %2480 = vmatprep.subr.mxu0 0.0
  %2481 = vmatpush1.xpose.msra.mxu0 %v2478
  %2482 = vmatprep.subr.mxu0 0.0
  %2483 = vmatpush1.xpose.msra.mxu0 0.0
  %2484 = vmatprep.subr.mxu0 0.0
  %2485 = vmatpush1.xpose.msra.mxu0 0.0
  %2486 = vmatprep.subr.mxu0 0.0
  %2487 = vmatpush1.xpose.msra.mxu0 0.0
  %2488 = vmatprep.subr.mxu0 0.0
  %2489 = vmatpush1.xpose.msra.mxu0 0.0
  %2490 = vmatprep.subr.mxu0 0.0
  %2491 = vmatpush1.xpose.msra.mxu0 0.0
  %2492 = vmatprep.subr.mxu0 0.0
  %2493 = vmatpush1.xpose.msra.mxu0 0.0
  %2494 = vmatprep.subr.mxu0 0.0
  %2495 = vmatpush1.xpose.msra.mxu0 0.0
  %2496 = vmatprep.subr.mxu0 0.0
  %2497 = vmatpush1.xpose.msra.mxu0 0.0
  %2498 = vmatprep.subr.mxu0 0.0
  %2499 = vmatpush1.xpose.msra.mxu0 0.0
  %2500 = vmatprep.subr.mxu0 0.0
  %2501 = vmatpush1.xpose.msra.mxu0 0.0
  %2502 = vmatprep.subr.mxu0 0.0
  %2503 = vmatpush1.xpose.msra.mxu0 0.0
  %2504 = vmatprep.subr.mxu0 0.0
  %2505 = vmatpush1.xpose.msra.mxu0 0.0
  %2506 = vmatprep.subr.mxu0 0.0
  %2507 = vmatpush1.xpose.msra.mxu0 0.0
  %2508 = vmatprep.subr.mxu0 0.0
  %2509 = vmatpush1.xpose.msra.mxu0 0.0
  %2510 = vmatprep.subr.mxu0 0.0
  %2511 = vmatpush1.xpose.msra.mxu0 0.0
  %2512 = vmatprep.subr.mxu0 0.0
  %2513 = vmatpush1.xpose.msra.mxu0 0.0
  %2514 = vmatprep.subr.mxu0 0.0
  %2515 = vmatpush1.xpose.msra.mxu0 0.0
  %2516 = vmatprep.subr.mxu0 0.0
  %2517 = vmatpush1.xpose.msra.mxu0 0.0
  %2518 = vmatprep.subr.mxu0 0.0
  %2519 = vmatpush1.xpose.msra.mxu0 0.0
  %2520 = vmatprep.subr.mxu0 0.0
  %2521 = vmatpush1.xpose.msra.mxu0 0.0
  %2522 = vmatprep.subr.mxu0 0.0
  %2523 = vmatpush1.xpose.msra.mxu0 0.0
  %2524 = vmatprep.subr.mxu0 0.0
  %2525 = vmatpush1.xpose.msra.mxu0 0.0
  %2526 = vmatprep.subr.mxu0 0.0
  %2527 = vmatpush1.xpose.msra.mxu0 0.0
  %2528 = vmatprep.subr.mxu0 0.0
  %2529 = vmatpush1.xpose.msra.mxu0 0.0
  %2530 = vmatprep.subr.mxu0 0.0
  %2531 = vmatpush1.xpose.msra.mxu0 0.0
  %2532 = vmatprep.subr.mxu0 0.0
  %2533 = vmatpush1.xpose.msra.mxu0 0.0
  %2534 = vmatprep.subr.mxu0 0.0
  %2535 = vmatpush1.xpose.msra.mxu0 0.0
  %2536 = vmatprep.subr.mxu0 0.0
  %2537 = vmatpush1.xpose.msra.mxu0 0.0
  %2538 = vmatprep.subr.mxu0 0.0
  %2539 = vmatpush1.xpose.msra.mxu0 0.0
  %2540 = vmatprep.subr.mxu0 0.0
  %2541 = vmatpush1.xpose.msra.mxu0 0.0
  %2542 = vmatprep.subr.mxu0 0.0
  %2543 = vmatpush1.xpose.msra.mxu0 0.0
  %2544 = vmatprep.mubr.f32.mxu0 0.0
  %2545 = vmatmul.mubr.f32.gmra.mrb[0].mxu0 %v2476
  %v2546 = vpop.f32.mrb[0].mxu0
  %v2547 = vadd.f32 0.0, %v2546
  %v2548 = vpop.f32.mrb[0].mxu0
  %2549 = vdwg.mxu0
  %2550 = vrot.lane.b32.xlu0 %v2313, 96
  %v2551 = vpop.permute.xlu0 %2550
  %v2552 = vsel %vm505, %v2313, 0
  %v2554 = vsel %vm505, %v2551, 0
  %2556 = vmatprep.subr.mxu0 0.0
  %2557 = vmatpush1.xpose.msra.mxu0 %v2554
  %2558 = vmatprep.subr.mxu0 0.0
  %2559 = vmatpush1.xpose.msra.mxu0 0.0
  %2560 = vmatprep.subr.mxu0 0.0
  %2561 = vmatpush1.xpose.msra.mxu0 0.0
  %2562 = vmatprep.subr.mxu0 0.0
  %2563 = vmatpush1.xpose.msra.mxu0 0.0
  %2564 = vmatprep.subr.mxu0 0.0
  %2565 = vmatpush1.xpose.msra.mxu0 0.0
  %2566 = vmatprep.subr.mxu0 0.0
  %2567 = vmatpush1.xpose.msra.mxu0 0.0
  %2568 = vmatprep.subr.mxu0 0.0
  %2569 = vmatpush1.xpose.msra.mxu0 0.0
  %2570 = vmatprep.subr.mxu0 0.0
  %2571 = vmatpush1.xpose.msra.mxu0 0.0
  %2572 = vmatprep.subr.mxu0 0.0
  %2573 = vmatpush1.xpose.msra.mxu0 0.0
  %2574 = vmatprep.subr.mxu0 0.0
  %2575 = vmatpush1.xpose.msra.mxu0 0.0
  %2576 = vmatprep.subr.mxu0 0.0
  %2577 = vmatpush1.xpose.msra.mxu0 0.0
  %2578 = vmatprep.subr.mxu0 0.0
  %2579 = vmatpush1.xpose.msra.mxu0 0.0
  %2580 = vmatprep.subr.mxu0 0.0
  %2581 = vmatpush1.xpose.msra.mxu0 0.0
  %2582 = vmatprep.subr.mxu0 0.0
  %2583 = vmatpush1.xpose.msra.mxu0 0.0
  %2584 = vmatprep.subr.mxu0 0.0
  %2585 = vmatpush1.xpose.msra.mxu0 0.0
  %2586 = vmatprep.subr.mxu0 0.0
  %2587 = vmatpush1.xpose.msra.mxu0 0.0
  %2588 = vmatprep.subr.mxu0 0.0
  %2589 = vmatpush1.xpose.msra.mxu0 0.0
  %2590 = vmatprep.subr.mxu0 0.0
  %2591 = vmatpush1.xpose.msra.mxu0 0.0
  %2592 = vmatprep.subr.mxu0 0.0
  %2593 = vmatpush1.xpose.msra.mxu0 0.0
  %2594 = vmatprep.subr.mxu0 0.0
  %2595 = vmatpush1.xpose.msra.mxu0 0.0
  %2596 = vmatprep.subr.mxu0 0.0
  %2597 = vmatpush1.xpose.msra.mxu0 0.0
  %2598 = vmatprep.subr.mxu0 0.0
  %2599 = vmatpush1.xpose.msra.mxu0 0.0
  %2600 = vmatprep.subr.mxu0 0.0
  %2601 = vmatpush1.xpose.msra.mxu0 0.0
  %2602 = vmatprep.subr.mxu0 0.0
  %2603 = vmatpush1.xpose.msra.mxu0 0.0
  %2604 = vmatprep.subr.mxu0 0.0
  %2605 = vmatpush1.xpose.msra.mxu0 0.0
  %2606 = vmatprep.subr.mxu0 0.0
  %2607 = vmatpush1.xpose.msra.mxu0 0.0
  %2608 = vmatprep.subr.mxu0 0.0
  %2609 = vmatpush1.xpose.msra.mxu0 0.0
  %2610 = vmatprep.subr.mxu0 0.0
  %2611 = vmatpush1.xpose.msra.mxu0 0.0
  %2612 = vmatprep.subr.mxu0 0.0
  %2613 = vmatpush1.xpose.msra.mxu0 0.0
  %2614 = vmatprep.subr.mxu0 0.0
  %2615 = vmatpush1.xpose.msra.mxu0 0.0
  %2616 = vmatprep.subr.mxu0 0.0
  %2617 = vmatpush1.xpose.msra.mxu0 0.0
  %2618 = vmatprep.subr.mxu0 0.0
  %2619 = vmatpush1.xpose.msra.mxu0 0.0
  %2620 = vmatprep.mubr.f32.mxu0 0.0
  %2621 = vmatmul.mubr.f32.gmra.mrb[0].mxu0 %v2552
  %v2622 = vpop.f32.mrb[0].mxu0
  %v2623 = vadd.f32 0.0, %v2622
  %v2624 = vpop.f32.mrb[0].mxu0
  %2625 = vdwg.mxu0
  %2626 = vrot.lane.b32.xlu0 %v2315, 96
  %v2627 = vpop.permute.xlu0 %2626
  %v2628 = vsel %vm505, %v2315, 0
  %v2630 = vsel %vm505, %v2627, 0
  %2632 = vmatprep.subr.mxu0 0.0
  %2633 = vmatpush1.xpose.msra.mxu0 %v2630
  %2634 = vmatprep.subr.mxu0 0.0
  %2635 = vmatpush1.xpose.msra.mxu0 0.0
  %2636 = vmatprep.subr.mxu0 0.0
  %2637 = vmatpush1.xpose.msra.mxu0 0.0
  %2638 = vmatprep.subr.mxu0 0.0
  %2639 = vmatpush1.xpose.msra.mxu0 0.0
  %2640 = vmatprep.subr.mxu0 0.0
  %2641 = vmatpush1.xpose.msra.mxu0 0.0
  %2642 = vmatprep.subr.mxu0 0.0
  %2643 = vmatpush1.xpose.msra.mxu0 0.0
  %2644 = vmatprep.subr.mxu0 0.0
  %2645 = vmatpush1.xpose.msra.mxu0 0.0
  %2646 = vmatprep.subr.mxu0 0.0
  %2647 = vmatpush1.xpose.msra.mxu0 0.0
  %2648 = vmatprep.subr.mxu0 0.0
  %2649 = vmatpush1.xpose.msra.mxu0 0.0
  %2650 = vmatprep.subr.mxu0 0.0
  %2651 = vmatpush1.xpose.msra.mxu0 0.0
  %2652 = vmatprep.subr.mxu0 0.0
  %2653 = vmatpush1.xpose.msra.mxu0 0.0
  %2654 = vmatprep.subr.mxu0 0.0
  %2655 = vmatpush1.xpose.msra.mxu0 0.0
  %2656 = vmatprep.subr.mxu0 0.0
  %2657 = vmatpush1.xpose.msra.mxu0 0.0
  %2658 = vmatprep.subr.mxu0 0.0
  %2659 = vmatpush1.xpose.msra.mxu0 0.0
  %2660 = vmatprep.subr.mxu0 0.0
  %2661 = vmatpush1.xpose.msra.mxu0 0.0
  %2662 = vmatprep.subr.mxu0 0.0
  %2663 = vmatpush1.xpose.msra.mxu0 0.0
  %2664 = vmatprep.subr.mxu0 0.0
  %2665 = vmatpush1.xpose.msra.mxu0 0.0
  %2666 = vmatprep.subr.mxu0 0.0
  %2667 = vmatpush1.xpose.msra.mxu0 0.0
  %2668 = vmatprep.subr.mxu0 0.0
  %2669 = vmatpush1.xpose.msra.mxu0 0.0
  %2670 = vmatprep.subr.mxu0 0.0
  %2671 = vmatpush1.xpose.msra.mxu0 0.0
  %2672 = vmatprep.subr.mxu0 0.0
  %2673 = vmatpush1.xpose.msra.mxu0 0.0
  %2674 = vmatprep.subr.mxu0 0.0
  %2675 = vmatpush1.xpose.msra.mxu0 0.0
  %2676 = vmatprep.subr.mxu0 0.0
  %2677 = vmatpush1.xpose.msra.mxu0 0.0
  %2678 = vmatprep.subr.mxu0 0.0
  %2679 = vmatpush1.xpose.msra.mxu0 0.0
  %2680 = vmatprep.subr.mxu0 0.0
  %2681 = vmatpush1.xpose.msra.mxu0 0.0
  %2682 = vmatprep.subr.mxu0 0.0
  %2683 = vmatpush1.xpose.msra.mxu0 0.0
  %2684 = vmatprep.subr.mxu0 0.0
  %2685 = vmatpush1.xpose.msra.mxu0 0.0
  %2686 = vmatprep.subr.mxu0 0.0
  %2687 = vmatpush1.xpose.msra.mxu0 0.0
  %2688 = vmatprep.subr.mxu0 0.0
  %2689 = vmatpush1.xpose.msra.mxu0 0.0
  %2690 = vmatprep.subr.mxu0 0.0
  %2691 = vmatpush1.xpose.msra.mxu0 0.0
  %2692 = vmatprep.subr.mxu0 0.0
  %2693 = vmatpush1.xpose.msra.mxu0 0.0
  %2694 = vmatprep.subr.mxu0 0.0
  %2695 = vmatpush1.xpose.msra.mxu0 0.0
  %2696 = vmatprep.mubr.f32.mxu0 0.0
  %2697 = vmatmul.mubr.f32.gmra.mrb[0].mxu0 %v2628
  %v2698 = vpop.f32.mrb[0].mxu0
  %v2699 = vadd.f32 0.0, %v2698
  %v2700 = vpop.f32.mrb[0].mxu0
  %2701 = vdwg.mxu0
  %2702 = vrot.lane.b32.xlu0 %v2317, 96
  %v2703 = vpop.permute.xlu0 %2702
  %v2704 = vsel %vm505, %v2317, 0
  %v2706 = vsel %vm505, %v2703, 0
  %2708 = vmatprep.subr.mxu0 0.0
  %2709 = vmatpush1.xpose.msra.mxu0 %v2706
  %2710 = vmatprep.subr.mxu0 0.0
  %2711 = vmatpush1.xpose.msra.mxu0 0.0
  %2712 = vmatprep.subr.mxu0 0.0
  %2713 = vmatpush1.xpose.msra.mxu0 0.0
  %2714 = vmatprep.subr.mxu0 0.0
  %2715 = vmatpush1.xpose.msra.mxu0 0.0
  %2716 = vmatprep.subr.mxu0 0.0
  %2717 = vmatpush1.xpose.msra.mxu0 0.0
  %2718 = vmatprep.subr.mxu0 0.0
  %2719 = vmatpush1.xpose.msra.mxu0 0.0
  %2720 = vmatprep.subr.mxu0 0.0
  %2721 = vmatpush1.xpose.msra.mxu0 0.0
  %2722 = vmatprep.subr.mxu0 0.0
  %2723 = vmatpush1.xpose.msra.mxu0 0.0
  %2724 = vmatprep.subr.mxu0 0.0
  %2725 = vmatpush1.xpose.msra.mxu0 0.0
  %2726 = vmatprep.subr.mxu0 0.0
  %2727 = vmatpush1.xpose.msra.mxu0 0.0
  %2728 = vmatprep.subr.mxu0 0.0
  %2729 = vmatpush1.xpose.msra.mxu0 0.0
  %2730 = vmatprep.subr.mxu0 0.0
  %2731 = vmatpush1.xpose.msra.mxu0 0.0
  %2732 = vmatprep.subr.mxu0 0.0
  %2733 = vmatpush1.xpose.msra.mxu0 0.0
  %2734 = vmatprep.subr.mxu0 0.0
  %2735 = vmatpush1.xpose.msra.mxu0 0.0
  %2736 = vmatprep.subr.mxu0 0.0
  %2737 = vmatpush1.xpose.msra.mxu0 0.0
  %2738 = vmatprep.subr.mxu0 0.0
  %2739 = vmatpush1.xpose.msra.mxu0 0.0
  %2740 = vmatprep.subr.mxu0 0.0
  %2741 = vmatpush1.xpose.msra.mxu0 0.0
  %2742 = vmatprep.subr.mxu0 0.0
  %2743 = vmatpush1.xpose.msra.mxu0 0.0
  %2744 = vmatprep.subr.mxu0 0.0
  %2745 = vmatpush1.xpose.msra.mxu0 0.0
  %2746 = vmatprep.subr.mxu0 0.0
  %2747 = vmatpush1.xpose.msra.mxu0 0.0
  %2748 = vmatprep.subr.mxu0 0.0
  %2749 = vmatpush1.xpose.msra.mxu0 0.0
  %2750 = vmatprep.subr.mxu0 0.0
  %2751 = vmatpush1.xpose.msra.mxu0 0.0
  %2752 = vmatprep.subr.mxu0 0.0
  %2753 = vmatpush1.xpose.msra.mxu0 0.0
  %2754 = vmatprep.subr.mxu0 0.0
  %2755 = vmatpush1.xpose.msra.mxu0 0.0
  %2756 = vmatprep.subr.mxu0 0.0
  %2757 = vmatpush1.xpose.msra.mxu0 0.0
  %2758 = vmatprep.subr.mxu0 0.0
  %2759 = vmatpush1.xpose.msra.mxu0 0.0
  %2760 = vmatprep.subr.mxu0 0.0
  %2761 = vmatpush1.xpose.msra.mxu0 0.0
  %2762 = vmatprep.subr.mxu0 0.0
  %2763 = vmatpush1.xpose.msra.mxu0 0.0
  %2764 = vmatprep.subr.mxu0 0.0
  %2765 = vmatpush1.xpose.msra.mxu0 0.0
  %2766 = vmatprep.subr.mxu0 0.0
  %2767 = vmatpush1.xpose.msra.mxu0 0.0
  %2768 = vmatprep.subr.mxu0 0.0
  %2769 = vmatpush1.xpose.msra.mxu0 0.0
  %2770 = vmatprep.subr.mxu0 0.0
  %2771 = vmatpush1.xpose.msra.mxu0 0.0
  %2772 = vmatprep.mubr.f32.mxu0 0.0
  %2773 = vmatmul.mubr.f32.gmra.mrb[0].mxu0 %v2704
  %v2774 = vpop.f32.mrb[0].mxu0
  %v2775 = vadd.f32 0.0, %v2774
  %v2776 = vpop.f32.mrb[0].mxu0
  %2777 = vdwg.mxu0
  %2778 = vrot.lane.b32.xlu0 %v2319, 96
  %v2779 = vpop.permute.xlu0 %2778
  %v2780 = vsel %vm505, %v2319, 0
  %v2782 = vsel %vm505, %v2779, 0
  %2784 = vmatprep.subr.mxu0 0.0
  %2785 = vmatpush1.xpose.msra.mxu0 %v2782
  %2786 = vmatprep.subr.mxu0 0.0
  %2787 = vmatpush1.xpose.msra.mxu0 0.0
  %2788 = vmatprep.subr.mxu0 0.0
  %2789 = vmatpush1.xpose.msra.mxu0 0.0
  %2790 = vmatprep.subr.mxu0 0.0
  %2791 = vmatpush1.xpose.msra.mxu0 0.0
  %2792 = vmatprep.subr.mxu0 0.0
  %2793 = vmatpush1.xpose.msra.mxu0 0.0
  %2794 = vmatprep.subr.mxu0 0.0
  %2795 = vmatpush1.xpose.msra.mxu0 0.0
  %2796 = vmatprep.subr.mxu0 0.0
  %2797 = vmatpush1.xpose.msra.mxu0 0.0
  %2798 = vmatprep.subr.mxu0 0.0
  %2799 = vmatpush1.xpose.msra.mxu0 0.0
  %2800 = vmatprep.subr.mxu0 0.0
  %2801 = vmatpush1.xpose.msra.mxu0 0.0
  %2802 = vmatprep.subr.mxu0 0.0
  %2803 = vmatpush1.xpose.msra.mxu0 0.0
  %2804 = vmatprep.subr.mxu0 0.0
  %2805 = vmatpush1.xpose.msra.mxu0 0.0
  %2806 = vmatprep.subr.mxu0 0.0
  %2807 = vmatpush1.xpose.msra.mxu0 0.0
  %2808 = vmatprep.subr.mxu0 0.0
  %2809 = vmatpush1.xpose.msra.mxu0 0.0
  %2810 = vmatprep.subr.mxu0 0.0
  %2811 = vmatpush1.xpose.msra.mxu0 0.0
  %2812 = vmatprep.subr.mxu0 0.0
  %2813 = vmatpush1.xpose.msra.mxu0 0.0
  %2814 = vmatprep.subr.mxu0 0.0
  %2815 = vmatpush1.xpose.msra.mxu0 0.0
  %2816 = vmatprep.subr.mxu0 0.0
  %2817 = vmatpush1.xpose.msra.mxu0 0.0
  %2818 = vmatprep.subr.mxu0 0.0
  %2819 = vmatpush1.xpose.msra.mxu0 0.0
  %2820 = vmatprep.subr.mxu0 0.0
  %2821 = vmatpush1.xpose.msra.mxu0 0.0
  %2822 = vmatprep.subr.mxu0 0.0
  %2823 = vmatpush1.xpose.msra.mxu0 0.0
  %2824 = vmatprep.subr.mxu0 0.0
  %2825 = vmatpush1.xpose.msra.mxu0 0.0
  %2826 = vmatprep.subr.mxu0 0.0
  %2827 = vmatpush1.xpose.msra.mxu0 0.0
  %2828 = vmatprep.subr.mxu0 0.0
  %2829 = vmatpush1.xpose.msra.mxu0 0.0
  %2830 = vmatprep.subr.mxu0 0.0
  %2831 = vmatpush1.xpose.msra.mxu0 0.0
  %2832 = vmatprep.subr.mxu0 0.0
  %2833 = vmatpush1.xpose.msra.mxu0 0.0
  %2834 = vmatprep.subr.mxu0 0.0
  %2835 = vmatpush1.xpose.msra.mxu0 0.0
  %2836 = vmatprep.subr.mxu0 0.0
  %2837 = vmatpush1.xpose.msra.mxu0 0.0
  %2838 = vmatprep.subr.mxu0 0.0
  %2839 = vmatpush1.xpose.msra.mxu0 0.0
  %2840 = vmatprep.subr.mxu0 0.0
  %2841 = vmatpush1.xpose.msra.mxu0 0.0
  %2842 = vmatprep.subr.mxu0 0.0
  %2843 = vmatpush1.xpose.msra.mxu0 0.0
  %2844 = vmatprep.subr.mxu0 0.0
  %2845 = vmatpush1.xpose.msra.mxu0 0.0
  %2846 = vmatprep.subr.mxu0 0.0
  %2847 = vmatpush1.xpose.msra.mxu0 0.0
  %2848 = vmatprep.mubr.f32.mxu0 0.0
  %2849 = vmatmul.mubr.f32.gmra.mrb[0].mxu0 %v2780
  %v2850 = vpop.f32.mrb[0].mxu0
  %v2851 = vadd.f32 0.0, %v2850
  %v2852 = vpop.f32.mrb[0].mxu0
  %2853 = vdwg.mxu0
  %2854 = vrot.lane.b32.xlu0 %v2321, 96
  %v2855 = vpop.permute.xlu0 %2854
  %v2856 = vsel %vm505, %v2321, 0
  %v2858 = vsel %vm505, %v2855, 0
  %2860 = vmatprep.subr.mxu0 0.0
  %2861 = vmatpush1.xpose.msra.mxu0 %v2858
  %2862 = vmatprep.subr.mxu0 0.0
  %2863 = vmatpush1.xpose.msra.mxu0 0.0
  %2864 = vmatprep.subr.mxu0 0.0
  %2865 = vmatpush1.xpose.msra.mxu0 0.0
  %2866 = vmatprep.subr.mxu0 0.0
  %2867 = vmatpush1.xpose.msra.mxu0 0.0
  %2868 = vmatprep.subr.mxu0 0.0
  %2869 = vmatpush1.xpose.msra.mxu0 0.0
  %2870 = vmatprep.subr.mxu0 0.0
  %2871 = vmatpush1.xpose.msra.mxu0 0.0
  %2872 = vmatprep.subr.mxu0 0.0
  %2873 = vmatpush1.xpose.msra.mxu0 0.0
  %2874 = vmatprep.subr.mxu0 0.0
  %2875 = vmatpush1.xpose.msra.mxu0 0.0
  %2876 = vmatprep.subr.mxu0 0.0
  %2877 = vmatpush1.xpose.msra.mxu0 0.0
  %2878 = vmatprep.subr.mxu0 0.0
  %2879 = vmatpush1.xpose.msra.mxu0 0.0
  %2880 = vmatprep.subr.mxu0 0.0
  %2881 = vmatpush1.xpose.msra.mxu0 0.0
  %2882 = vmatprep.subr.mxu0 0.0
  %2883 = vmatpush1.xpose.msra.mxu0 0.0
  %2884 = vmatprep.subr.mxu0 0.0
  %2885 = vmatpush1.xpose.msra.mxu0 0.0
  %2886 = vmatprep.subr.mxu0 0.0
  %2887 = vmatpush1.xpose.msra.mxu0 0.0
  %2888 = vmatprep.subr.mxu0 0.0
  %2889 = vmatpush1.xpose.msra.mxu0 0.0
  %2890 = vmatprep.subr.mxu0 0.0
  %2891 = vmatpush1.xpose.msra.mxu0 0.0
  %2892 = vmatprep.subr.mxu0 0.0
  %2893 = vmatpush1.xpose.msra.mxu0 0.0
  %2894 = vmatprep.subr.mxu0 0.0
  %2895 = vmatpush1.xpose.msra.mxu0 0.0
  %2896 = vmatprep.subr.mxu0 0.0
  %2897 = vmatpush1.xpose.msra.mxu0 0.0
  %2898 = vmatprep.subr.mxu0 0.0
  %2899 = vmatpush1.xpose.msra.mxu0 0.0
  %2900 = vmatprep.subr.mxu0 0.0
  %2901 = vmatpush1.xpose.msra.mxu0 0.0
  %2902 = vmatprep.subr.mxu0 0.0
  %2903 = vmatpush1.xpose.msra.mxu0 0.0
  %2904 = vmatprep.subr.mxu0 0.0
  %2905 = vmatpush1.xpose.msra.mxu0 0.0
  %2906 = vmatprep.subr.mxu0 0.0
  %2907 = vmatpush1.xpose.msra.mxu0 0.0
  %2908 = vmatprep.subr.mxu0 0.0
  %2909 = vmatpush1.xpose.msra.mxu0 0.0
  %2910 = vmatprep.subr.mxu0 0.0
  %2911 = vmatpush1.xpose.msra.mxu0 0.0
  %2912 = vmatprep.subr.mxu0 0.0
  %2913 = vmatpush1.xpose.msra.mxu0 0.0
  %2914 = vmatprep.subr.mxu0 0.0
  %2915 = vmatpush1.xpose.msra.mxu0 0.0
  %2916 = vmatprep.subr.mxu0 0.0
  %2917 = vmatpush1.xpose.msra.mxu0 0.0
  %2918 = vmatprep.subr.mxu0 0.0
  %2919 = vmatpush1.xpose.msra.mxu0 0.0
  %2920 = vmatprep.subr.mxu0 0.0
  %2921 = vmatpush1.xpose.msra.mxu0 0.0
  %2922 = vmatprep.subr.mxu0 0.0
  %2923 = vmatpush1.xpose.msra.mxu0 0.0
  %2924 = vmatprep.mubr.f32.mxu0 0.0
  %2925 = vmatmul.mubr.f32.gmra.mrb[0].mxu0 %v2856
  %v2926 = vpop.f32.mrb[0].mxu0
  %v2927 = vadd.f32 0.0, %v2926
  %v2928 = vpop.f32.mrb[0].mxu0
  %2929 = vdwg.mxu0
  %v2930 = vmul.f32 %v2395, 0.35355338
  %v2931 = vmul.f32 %v2471, 0.35355338
  %v2932 = vmul.f32 %v2547, 0.35355338
  %v2933 = vmul.f32 %v2623, 0.35355338
  %v2934 = vmul.f32 %v2699, 0.35355338
  %v2935 = vmul.f32 %v2775, 0.35355338
  %v2936 = vmul.f32 %v2851, 0.35355338
  %v2937 = vmul.f32 %v2927, 0.35355338
  %v2938 = vsel %vm505, %v2930, -inf
  %2939 = vmax.xlane.f32.xlu0 %v2938
  %v2940 = vpop.xlane.xlu0 %2939
  %v2941 = vsel %vm505, %v2931, -inf
  %2942 = vmax.xlane.f32.xlu0 %v2941
  %v2943 = vpop.xlane.xlu0 %2942
  %v2944 = vsel %vm505, %v2932, -inf
  %2945 = vmax.xlane.f32.xlu0 %v2944
  %v2946 = vpop.xlane.xlu0 %2945
  %v2947 = vsel %vm505, %v2933, -inf
  %2948 = vmax.xlane.f32.xlu0 %v2947
  %v2949 = vpop.xlane.xlu0 %2948
  %v2950 = vsel %vm505, %v2934, -inf
  %2951 = vmax.xlane.f32.xlu0 %v2950
  %v2952 = vpop.xlane.xlu0 %2951
  %v2953 = vsel %vm505, %v2935, -inf
  %2954 = vmax.xlane.f32.xlu0 %v2953
  %v2955 = vpop.xlane.xlu0 %2954
  %v2956 = vsel %vm505, %v2936, -inf
  %2957 = vmax.xlane.f32.xlu0 %v2956
  %v2958 = vpop.xlane.xlu0 %2957
  %v2959 = vsel %vm505, %v2937, -inf
  %2960 = vmax.xlane.f32.xlu0 %v2959
  %v2961 = vpop.xlane.xlu0 %2960
  %v2962 = vsub.f32 %v2930, %v2940
  %v2963 = vsub.f32 %v2931, %v2943
  %v2964 = vsub.f32 %v2932, %v2946
  %v2965 = vsub.f32 %v2933, %v2949
  %v2966 = vsub.f32 %v2934, %v2952
  %v2967 = vsub.f32 %v2935, %v2955
  %v2968 = vsub.f32 %v2936, %v2958
  %v2969 = vsub.f32 %v2937, %v2961
  %v2970 = vmul.f32 %v2962, 1.442695
  %v2971 = vpow.pop %v2970
  %v2972 = vmul.f32 %v2963, 1.442695
  %v2973 = vpow.pop %v2972
  %v2974 = vmul.f32 %v2964, 1.442695
  %v2975 = vpow.pop %v2974
  %v2976 = vmul.f32 %v2965, 1.442695
  %v2977 = vpow.pop %v2976
  %v2978 = vmul.f32 %v2966, 1.442695
  %v2979 = vpow.pop %v2978
  %v2980 = vmul.f32 %v2967, 1.442695
  %v2981 = vpow.pop %v2980
  %v2982 = vmul.f32 %v2968, 1.442695
  %v2983 = vpow.pop %v2982
  %v2984 = vmul.f32 %v2969, 1.442695
  %v2985 = vpow.pop %v2984
  %v2986 = vsel %vm505, %v2971, 0.0
  %2987 = vadd.xlane.f32.xlu0 %v2986
  %v2988 = vpop.xlane.xlu0 %2987
  %v2989 = vsel %vm505, %v2973, 0.0
  %2990 = vadd.xlane.f32.xlu0 %v2989
  %v2991 = vpop.xlane.xlu0 %2990
  %v2992 = vsel %vm505, %v2975, 0.0
  %2993 = vadd.xlane.f32.xlu0 %v2992
  %v2994 = vpop.xlane.xlu0 %2993
  %v2995 = vsel %vm505, %v2977, 0.0
  %2996 = vadd.xlane.f32.xlu0 %v2995
  %v2997 = vpop.xlane.xlu0 %2996
  %v2998 = vsel %vm505, %v2979, 0.0
  %2999 = vadd.xlane.f32.xlu0 %v2998
  %v3000 = vpop.xlane.xlu0 %2999
  %v3001 = vsel %vm505, %v2981, 0.0
  %3002 = vadd.xlane.f32.xlu0 %v3001
  %v3003 = vpop.xlane.xlu0 %3002
  %v3004 = vsel %vm505, %v2983, 0.0
  %3005 = vadd.xlane.f32.xlu0 %v3004
  %v3006 = vpop.xlane.xlu0 %3005
  %v3007 = vsel %vm505, %v2985, 0.0
  %3008 = vadd.xlane.f32.xlu0 %v3007
  %v3009 = vpop.xlane.xlu0 %3008
  %v3010 = vrcp.pop %v2988
  %v3011 = vmul.f32 %v2971, %v3010
  %v3012 = vrcp.pop %v2991
  %v3013 = vmul.f32 %v2973, %v3012
  %v3014 = vrcp.pop %v2994
  %v3015 = vmul.f32 %v2975, %v3014
  %v3016 = vrcp.pop %v2997
  %v3017 = vmul.f32 %v2977, %v3016
  %v3018 = vrcp.pop %v3000
  %v3019 = vmul.f32 %v2979, %v3018
  %v3020 = vrcp.pop %v3003
  %v3021 = vmul.f32 %v2981, %v3020
  %v3022 = vrcp.pop %v3006
  %v3023 = vmul.f32 %v2983, %v3022
  %v3024 = vrcp.pop %v3009
  %v3025 = vmul.f32 %v2985, %v3024
  %3026 = vrot.lane.b32.xlu0 %v2300, 64
  %v3027 = vpop.permute.xlu0 %3026
  %v3030 = vsel %vm505, %v3011, 0
  %3032 = vmatprep.subr.mxu0 0.0
  %3033 = vmatpush1.msra.mxu0 %v3027
  %3034 = vmatprep.subr.mxu0 0.0
  %3035 = vmatpush1.msra.mxu0 0.0
  %3036 = vmatprep.subr.mxu0 0.0
  %3037 = vmatpush1.msra.mxu0 0.0
  %3038 = vmatprep.subr.mxu0 0.0
  %3039 = vmatpush1.msra.mxu0 0.0
  %3040 = vmatprep.subr.mxu0 0.0
  %3041 = vmatpush1.msra.mxu0 0.0
  %3042 = vmatprep.subr.mxu0 0.0
  %3043 = vmatpush1.msra.mxu0 0.0
  %3044 = vmatprep.subr.mxu0 0.0
  %3045 = vmatpush1.msra.mxu0 0.0
  %3046 = vmatprep.subr.mxu0 0.0
  %3047 = vmatpush1.msra.mxu0 0.0
  %3048 = vmatprep.subr.mxu0 0.0
  %3049 = vmatpush1.msra.mxu0 0.0
  %3050 = vmatprep.subr.mxu0 0.0
  %3051 = vmatpush1.msra.mxu0 0.0
  %3052 = vmatprep.subr.mxu0 0.0
  %3053 = vmatpush1.msra.mxu0 0.0
  %3054 = vmatprep.subr.mxu0 0.0
  %3055 = vmatpush1.msra.mxu0 0.0
  %3056 = vmatprep.subr.mxu0 0.0
  %3057 = vmatpush1.msra.mxu0 0.0
  %3058 = vmatprep.subr.mxu0 0.0
  %3059 = vmatpush1.msra.mxu0 0.0
  %3060 = vmatprep.subr.mxu0 0.0
  %3061 = vmatpush1.msra.mxu0 0.0
  %3062 = vmatprep.subr.mxu0 0.0
  %3063 = vmatpush1.msra.mxu0 0.0
  %3064 = vmatprep.subr.mxu0 0.0
  %3065 = vmatpush1.msra.mxu0 0.0
  %3066 = vmatprep.subr.mxu0 0.0
  %3067 = vmatpush1.msra.mxu0 0.0
  %3068 = vmatprep.subr.mxu0 0.0
  %3069 = vmatpush1.msra.mxu0 0.0
  %3070 = vmatprep.subr.mxu0 0.0
  %3071 = vmatpush1.msra.mxu0 0.0
  %3072 = vmatprep.subr.mxu0 0.0
  %3073 = vmatpush1.msra.mxu0 0.0
  %3074 = vmatprep.subr.mxu0 0.0
  %3075 = vmatpush1.msra.mxu0 0.0
  %3076 = vmatprep.subr.mxu0 0.0
  %3077 = vmatpush1.msra.mxu0 0.0
  %3078 = vmatprep.subr.mxu0 0.0
  %3079 = vmatpush1.msra.mxu0 0.0
  %3080 = vmatprep.subr.mxu0 0.0
  %3081 = vmatpush1.msra.mxu0 0.0
  %3082 = vmatprep.subr.mxu0 0.0
  %3083 = vmatpush1.msra.mxu0 0.0
  %3084 = vmatprep.subr.mxu0 0.0
  %3085 = vmatpush1.msra.mxu0 0.0
  %3086 = vmatprep.subr.mxu0 0.0
  %3087 = vmatpush1.msra.mxu0 0.0
  %3088 = vmatprep.subr.mxu0 0.0
  %3089 = vmatpush1.msra.mxu0 0.0
  %3090 = vmatprep.subr.mxu0 0.0
  %3091 = vmatpush1.msra.mxu0 0.0
  %3092 = vmatprep.subr.mxu0 0.0
  %3093 = vmatpush1.msra.mxu0 0.0
  %3094 = vmatprep.subr.mxu0 0.0
  %3095 = vmatpush1.msra.mxu0 0.0
  %3096 = vmatprep.mubr.f32.mxu0 0.0
  %3097 = vmatmul.mubr.f32.gmra.mrb[0].mxu0 %v3030
  %v3098 = vpop.f32.mrb[0].mxu0
  %v3099 = vadd.f32 0.0, %v3098
  %v3100 = vpop.f32.mrb[0].mxu0
  %3101 = vdwg.mxu0
  %3102 = vrot.lane.b32.xlu0 %v2305, 64
  %v3103 = vpop.permute.xlu0 %3102
  %v3106 = vsel %vm505, %v3013, 0
  %3108 = vmatprep.subr.mxu0 0.0
  %3109 = vmatpush1.msra.mxu0 %v3103
  %3110 = vmatprep.subr.mxu0 0.0
  %3111 = vmatpush1.msra.mxu0 0.0
  %3112 = vmatprep.subr.mxu0 0.0
  %3113 = vmatpush1.msra.mxu0 0.0
  %3114 = vmatprep.subr.mxu0 0.0
  %3115 = vmatpush1.msra.mxu0 0.0
  %3116 = vmatprep.subr.mxu0 0.0
  %3117 = vmatpush1.msra.mxu0 0.0
  %3118 = vmatprep.subr.mxu0 0.0
  %3119 = vmatpush1.msra.mxu0 0.0
  %3120 = vmatprep.subr.mxu0 0.0
  %3121 = vmatpush1.msra.mxu0 0.0
  %3122 = vmatprep.subr.mxu0 0.0
  %3123 = vmatpush1.msra.mxu0 0.0
  %3124 = vmatprep.subr.mxu0 0.0
  %3125 = vmatpush1.msra.mxu0 0.0
  %3126 = vmatprep.subr.mxu0 0.0
  %3127 = vmatpush1.msra.mxu0 0.0
  %3128 = vmatprep.subr.mxu0 0.0
  %3129 = vmatpush1.msra.mxu0 0.0
  %3130 = vmatprep.subr.mxu0 0.0
  %3131 = vmatpush1.msra.mxu0 0.0
  %3132 = vmatprep.subr.mxu0 0.0
  %3133 = vmatpush1.msra.mxu0 0.0
  %3134 = vmatprep.subr.mxu0 0.0
  %3135 = vmatpush1.msra.mxu0 0.0
  %3136 = vmatprep.subr.mxu0 0.0
  %3137 = vmatpush1.msra.mxu0 0.0
  %3138 = vmatprep.subr.mxu0 0.0
  %3139 = vmatpush1.msra.mxu0 0.0
  %3140 = vmatprep.subr.mxu0 0.0
  %3141 = vmatpush1.msra.mxu0 0.0
  %3142 = vmatprep.subr.mxu0 0.0
  %3143 = vmatpush1.msra.mxu0 0.0
  %3144 = vmatprep.subr.mxu0 0.0
  %3145 = vmatpush1.msra.mxu0 0.0
  %3146 = vmatprep.subr.mxu0 0.0
  %3147 = vmatpush1.msra.mxu0 0.0
  %3148 = vmatprep.subr.mxu0 0.0
  %3149 = vmatpush1.msra.mxu0 0.0
  %3150 = vmatprep.subr.mxu0 0.0
  %3151 = vmatpush1.msra.mxu0 0.0
  %3152 = vmatprep.subr.mxu0 0.0
  %3153 = vmatpush1.msra.mxu0 0.0
  %3154 = vmatprep.subr.mxu0 0.0
  %3155 = vmatpush1.msra.mxu0 0.0
  %3156 = vmatprep.subr.mxu0 0.0
  %3157 = vmatpush1.msra.mxu0 0.0
  %3158 = vmatprep.subr.mxu0 0.0
  %3159 = vmatpush1.msra.mxu0 0.0
  %3160 = vmatprep.subr.mxu0 0.0
  %3161 = vmatpush1.msra.mxu0 0.0
  %3162 = vmatprep.subr.mxu0 0.0
  %3163 = vmatpush1.msra.mxu0 0.0
  %3164 = vmatprep.subr.mxu0 0.0
  %3165 = vmatpush1.msra.mxu0 0.0
  %3166 = vmatprep.subr.mxu0 0.0
  %3167 = vmatpush1.msra.mxu0 0.0
  %3168 = vmatprep.subr.mxu0 0.0
  %3169 = vmatpush1.msra.mxu0 0.0
  %3170 = vmatprep.subr.mxu0 0.0
  %3171 = vmatpush1.msra.mxu0 0.0
  %3172 = vmatprep.mubr.f32.mxu0 0.0
  %3173 = vmatmul.mubr.f32.gmra.mrb[0].mxu0 %v3106
  %v3174 = vpop.f32.mrb[0].mxu0
  %v3175 = vadd.f32 0.0, %v3174
  %v3176 = vpop.f32.mrb[0].mxu0
  %3177 = vdwg.mxu0
  %3178 = vrot.lane.b32.xlu0 %v2311, 64
  %v3179 = vpop.permute.xlu0 %3178
  %v3182 = vsel %vm505, %v3015, 0
  %3184 = vmatprep.subr.mxu0 0.0
  %3185 = vmatpush1.msra.mxu0 %v3179
  %3186 = vmatprep.subr.mxu0 0.0
  %3187 = vmatpush1.msra.mxu0 0.0
  %3188 = vmatprep.subr.mxu0 0.0
  %3189 = vmatpush1.msra.mxu0 0.0
  %3190 = vmatprep.subr.mxu0 0.0
  %3191 = vmatpush1.msra.mxu0 0.0
  %3192 = vmatprep.subr.mxu0 0.0
  %3193 = vmatpush1.msra.mxu0 0.0
  %3194 = vmatprep.subr.mxu0 0.0
  %3195 = vmatpush1.msra.mxu0 0.0
  %3196 = vmatprep.subr.mxu0 0.0
  %3197 = vmatpush1.msra.mxu0 0.0
  %3198 = vmatprep.subr.mxu0 0.0
  %3199 = vmatpush1.msra.mxu0 0.0
  %3200 = vmatprep.subr.mxu0 0.0
  %3201 = vmatpush1.msra.mxu0 0.0
  %3202 = vmatprep.subr.mxu0 0.0
  %3203 = vmatpush1.msra.mxu0 0.0
  %3204 = vmatprep.subr.mxu0 0.0
  %3205 = vmatpush1.msra.mxu0 0.0
  %3206 = vmatprep.subr.mxu0 0.0
  %3207 = vmatpush1.msra.mxu0 0.0
  %3208 = vmatprep.subr.mxu0 0.0
  %3209 = vmatpush1.msra.mxu0 0.0
  %3210 = vmatprep.subr.mxu0 0.0
  %3211 = vmatpush1.msra.mxu0 0.0
  %3212 = vmatprep.subr.mxu0 0.0
  %3213 = vmatpush1.msra.mxu0 0.0
  %3214 = vmatprep.subr.mxu0 0.0
  %3215 = vmatpush1.msra.mxu0 0.0
  %3216 = vmatprep.subr.mxu0 0.0
  %3217 = vmatpush1.msra.mxu0 0.0
  %3218 = vmatprep.subr.mxu0 0.0
  %3219 = vmatpush1.msra.mxu0 0.0
  %3220 = vmatprep.subr.mxu0 0.0
  %3221 = vmatpush1.msra.mxu0 0.0
  %3222 = vmatprep.subr.mxu0 0.0
  %3223 = vmatpush1.msra.mxu0 0.0
  %3224 = vmatprep.subr.mxu0 0.0
  %3225 = vmatpush1.msra.mxu0 0.0
  %3226 = vmatprep.subr.mxu0 0.0
  %3227 = vmatpush1.msra.mxu0 0.0
  %3228 = vmatprep.subr.mxu0 0.0
  %3229 = vmatpush1.msra.mxu0 0.0
  %3230 = vmatprep.subr.mxu0 0.0
  %3231 = vmatpush1.msra.mxu0 0.0
  %3232 = vmatprep.subr.mxu0 0.0
  %3233 = vmatpush1.msra.mxu0 0.0
  %3234 = vmatprep.subr.mxu0 0.0
  %3235 = vmatpush1.msra.mxu0 0.0
  %3236 = vmatprep.subr.mxu0 0.0
  %3237 = vmatpush1.msra.mxu0 0.0
  %3238 = vmatprep.subr.mxu0 0.0
  %3239 = vmatpush1.msra.mxu0 0.0
  %3240 = vmatprep.subr.mxu0 0.0
  %3241 = vmatpush1.msra.mxu0 0.0
  %3242 = vmatprep.subr.mxu0 0.0
  %3243 = vmatpush1.msra.mxu0 0.0
  %3244 = vmatprep.subr.mxu0 0.0
  %3245 = vmatpush1.msra.mxu0 0.0
  %3246 = vmatprep.subr.mxu0 0.0
  %3247 = vmatpush1.msra.mxu0 0.0
  %3248 = vmatprep.mubr.f32.mxu0 0.0
  %3249 = vmatmul.mubr.f32.gmra.mrb[0].mxu0 %v3182
  %v3250 = vpop.f32.mrb[0].mxu0
  %v3251 = vadd.f32 0.0, %v3250
  %v3252 = vpop.f32.mrb[0].mxu0
  %3253 = vdwg.mxu0
  %3254 = vrot.lane.b32.xlu0 %v2313, 64
  %v3255 = vpop.permute.xlu0 %3254
  %v3258 = vsel %vm505, %v3017, 0
  %3260 = vmatprep.subr.mxu0 0.0
  %3261 = vmatpush1.msra.mxu0 %v3255
  %3262 = vmatprep.subr.mxu0 0.0
  %3263 = vmatpush1.msra.mxu0 0.0
  %3264 = vmatprep.subr.mxu0 0.0
  %3265 = vmatpush1.msra.mxu0 0.0
  %3266 = vmatprep.subr.mxu0 0.0
  %3267 = vmatpush1.msra.mxu0 0.0
  %3268 = vmatprep.subr.mxu0 0.0
  %3269 = vmatpush1.msra.mxu0 0.0
  %3270 = vmatprep.subr.mxu0 0.0
  %3271 = vmatpush1.msra.mxu0 0.0
  %3272 = vmatprep.subr.mxu0 0.0
  %3273 = vmatpush1.msra.mxu0 0.0
  %3274 = vmatprep.subr.mxu0 0.0
  %3275 = vmatpush1.msra.mxu0 0.0
  %3276 = vmatprep.subr.mxu0 0.0
  %3277 = vmatpush1.msra.mxu0 0.0
  %3278 = vmatprep.subr.mxu0 0.0
  %3279 = vmatpush1.msra.mxu0 0.0
  %3280 = vmatprep.subr.mxu0 0.0
  %3281 = vmatpush1.msra.mxu0 0.0
  %3282 = vmatprep.subr.mxu0 0.0
  %3283 = vmatpush1.msra.mxu0 0.0
  %3284 = vmatprep.subr.mxu0 0.0
  %3285 = vmatpush1.msra.mxu0 0.0
  %3286 = vmatprep.subr.mxu0 0.0
  %3287 = vmatpush1.msra.mxu0 0.0
  %3288 = vmatprep.subr.mxu0 0.0
  %3289 = vmatpush1.msra.mxu0 0.0
  %3290 = vmatprep.subr.mxu0 0.0
  %3291 = vmatpush1.msra.mxu0 0.0
  %3292 = vmatprep.subr.mxu0 0.0
  %3293 = vmatpush1.msra.mxu0 0.0
  %3294 = vmatprep.subr.mxu0 0.0
  %3295 = vmatpush1.msra.mxu0 0.0
  %3296 = vmatprep.subr.mxu0 0.0
  %3297 = vmatpush1.msra.mxu0 0.0
  %3298 = vmatprep.subr.mxu0 0.0
  %3299 = vmatpush1.msra.mxu0 0.0
  %3300 = vmatprep.subr.mxu0 0.0
  %3301 = vmatpush1.msra.mxu0 0.0
  %3302 = vmatprep.subr.mxu0 0.0
  %3303 = vmatpush1.msra.mxu0 0.0
  %3304 = vmatprep.subr.mxu0 0.0
  %3305 = vmatpush1.msra.mxu0 0.0
  %3306 = vmatprep.subr.mxu0 0.0
  %3307 = vmatpush1.msra.mxu0 0.0
  %3308 = vmatprep.subr.mxu0 0.0
  %3309 = vmatpush1.msra.mxu0 0.0
  %3310 = vmatprep.subr.mxu0 0.0
  %3311 = vmatpush1.msra.mxu0 0.0
  %3312 = vmatprep.subr.mxu0 0.0
  %3313 = vmatpush1.msra.mxu0 0.0
  %3314 = vmatprep.subr.mxu0 0.0
  %3315 = vmatpush1.msra.mxu0 0.0
  %3316 = vmatprep.subr.mxu0 0.0
  %3317 = vmatpush1.msra.mxu0 0.0
  %3318 = vmatprep.subr.mxu0 0.0
  %3319 = vmatpush1.msra.mxu0 0.0
  %3320 = vmatprep.subr.mxu0 0.0
  %3321 = vmatpush1.msra.mxu0 0.0
  %3322 = vmatprep.subr.mxu0 0.0
  %3323 = vmatpush1.msra.mxu0 0.0
  %3324 = vmatprep.mubr.f32.mxu0 0.0
  %3325 = vmatmul.mubr.f32.gmra.mrb[0].mxu0 %v3258
  %v3326 = vpop.f32.mrb[0].mxu0
  %v3327 = vadd.f32 0.0, %v3326
  %v3328 = vpop.f32.mrb[0].mxu0
  %3329 = vdwg.mxu0
  %3330 = vrot.lane.b32.xlu0 %v2315, 64
  %v3331 = vpop.permute.xlu0 %3330
  %v3334 = vsel %vm505, %v3019, 0
  %3336 = vmatprep.subr.mxu0 0.0
  %3337 = vmatpush1.msra.mxu0 %v3331
  %3338 = vmatprep.subr.mxu0 0.0
  %3339 = vmatpush1.msra.mxu0 0.0
  %3340 = vmatprep.subr.mxu0 0.0
  %3341 = vmatpush1.msra.mxu0 0.0
  %3342 = vmatprep.subr.mxu0 0.0
  %3343 = vmatpush1.msra.mxu0 0.0
  %3344 = vmatprep.subr.mxu0 0.0
  %3345 = vmatpush1.msra.mxu0 0.0
  %3346 = vmatprep.subr.mxu0 0.0
  %3347 = vmatpush1.msra.mxu0 0.0
  %3348 = vmatprep.subr.mxu0 0.0
  %3349 = vmatpush1.msra.mxu0 0.0
  %3350 = vmatprep.subr.mxu0 0.0
  %3351 = vmatpush1.msra.mxu0 0.0
  %3352 = vmatprep.subr.mxu0 0.0
  %3353 = vmatpush1.msra.mxu0 0.0
  %3354 = vmatprep.subr.mxu0 0.0
  %3355 = vmatpush1.msra.mxu0 0.0
  %3356 = vmatprep.subr.mxu0 0.0
  %3357 = vmatpush1.msra.mxu0 0.0
  %3358 = vmatprep.subr.mxu0 0.0
  %3359 = vmatpush1.msra.mxu0 0.0
  %3360 = vmatprep.subr.mxu0 0.0
  %3361 = vmatpush1.msra.mxu0 0.0
  %3362 = vmatprep.subr.mxu0 0.0
  %3363 = vmatpush1.msra.mxu0 0.0
  %3364 = vmatprep.subr.mxu0 0.0
  %3365 = vmatpush1.msra.mxu0 0.0
  %3366 = vmatprep.subr.mxu0 0.0
  %3367 = vmatpush1.msra.mxu0 0.0
  %3368 = vmatprep.subr.mxu0 0.0
  %3369 = vmatpush1.msra.mxu0 0.0
  %3370 = vmatprep.subr.mxu0 0.0
  %3371 = vmatpush1.msra.mxu0 0.0
  %3372 = vmatprep.subr.mxu0 0.0
  %3373 = vmatpush1.msra.mxu0 0.0
  %3374 = vmatprep.subr.mxu0 0.0
  %3375 = vmatpush1.msra.mxu0 0.0
  %3376 = vmatprep.subr.mxu0 0.0
  %3377 = vmatpush1.msra.mxu0 0.0
  %3378 = vmatprep.subr.mxu0 0.0
  %3379 = vmatpush1.msra.mxu0 0.0
  %3380 = vmatprep.subr.mxu0 0.0
  %3381 = vmatpush1.msra.mxu0 0.0
  %3382 = vmatprep.subr.mxu0 0.0
  %3383 = vmatpush1.msra.mxu0 0.0
  %3384 = vmatprep.subr.mxu0 0.0
  %3385 = vmatpush1.msra.mxu0 0.0
  %3386 = vmatprep.subr.mxu0 0.0
  %3387 = vmatpush1.msra.mxu0 0.0
  %3388 = vmatprep.subr.mxu0 0.0
  %3389 = vmatpush1.msra.mxu0 0.0
  %3390 = vmatprep.subr.mxu0 0.0
  %3391 = vmatpush1.msra.mxu0 0.0
  %3392 = vmatprep.subr.mxu0 0.0
  %3393 = vmatpush1.msra.mxu0 0.0
  %3394 = vmatprep.subr.mxu0 0.0
  %3395 = vmatpush1.msra.mxu0 0.0
  %3396 = vmatprep.subr.mxu0 0.0
  %3397 = vmatpush1.msra.mxu0 0.0
  %3398 = vmatprep.subr.mxu0 0.0
  %3399 = vmatpush1.msra.mxu0 0.0
  %3400 = vmatprep.mubr.f32.mxu0 0.0
  %3401 = vmatmul.mubr.f32.gmra.mrb[0].mxu0 %v3334
  %v3402 = vpop.f32.mrb[0].mxu0
  %v3403 = vadd.f32 0.0, %v3402
  %v3404 = vpop.f32.mrb[0].mxu0
  %3405 = vdwg.mxu0
  %3406 = vrot.lane.b32.xlu0 %v2317, 64
  %v3407 = vpop.permute.xlu0 %3406
  %v3410 = vsel %vm505, %v3021, 0
  %3412 = vmatprep.subr.mxu0 0.0
  %3413 = vmatpush1.msra.mxu0 %v3407
  %3414 = vmatprep.subr.mxu0 0.0
  %3415 = vmatpush1.msra.mxu0 0.0
  %3416 = vmatprep.subr.mxu0 0.0
  %3417 = vmatpush1.msra.mxu0 0.0
  %3418 = vmatprep.subr.mxu0 0.0
  %3419 = vmatpush1.msra.mxu0 0.0
  %3420 = vmatprep.subr.mxu0 0.0
  %3421 = vmatpush1.msra.mxu0 0.0
  %3422 = vmatprep.subr.mxu0 0.0
  %3423 = vmatpush1.msra.mxu0 0.0
  %3424 = vmatprep.subr.mxu0 0.0
  %3425 = vmatpush1.msra.mxu0 0.0
  %3426 = vmatprep.subr.mxu0 0.0
  %3427 = vmatpush1.msra.mxu0 0.0
  %3428 = vmatprep.subr.mxu0 0.0
  %3429 = vmatpush1.msra.mxu0 0.0
  %3430 = vmatprep.subr.mxu0 0.0
  %3431 = vmatpush1.msra.mxu0 0.0
  %3432 = vmatprep.subr.mxu0 0.0
  %3433 = vmatpush1.msra.mxu0 0.0
  %3434 = vmatprep.subr.mxu0 0.0
  %3435 = vmatpush1.msra.mxu0 0.0
  %3436 = vmatprep.subr.mxu0 0.0
  %3437 = vmatpush1.msra.mxu0 0.0
  %3438 = vmatprep.subr.mxu0 0.0
  %3439 = vmatpush1.msra.mxu0 0.0
  %3440 = vmatprep.subr.mxu0 0.0
  %3441 = vmatpush1.msra.mxu0 0.0
  %3442 = vmatprep.subr.mxu0 0.0
  %3443 = vmatpush1.msra.mxu0 0.0
  %3444 = vmatprep.subr.mxu0 0.0
  %3445 = vmatpush1.msra.mxu0 0.0
  %3446 = vmatprep.subr.mxu0 0.0
  %3447 = vmatpush1.msra.mxu0 0.0
  %3448 = vmatprep.subr.mxu0 0.0
  %3449 = vmatpush1.msra.mxu0 0.0
  %3450 = vmatprep.subr.mxu0 0.0
  %3451 = vmatpush1.msra.mxu0 0.0
  %3452 = vmatprep.subr.mxu0 0.0
  %3453 = vmatpush1.msra.mxu0 0.0
  %3454 = vmatprep.subr.mxu0 0.0
  %3455 = vmatpush1.msra.mxu0 0.0
  %3456 = vmatprep.subr.mxu0 0.0
  %3457 = vmatpush1.msra.mxu0 0.0
  %3458 = vmatprep.subr.mxu0 0.0
  %3459 = vmatpush1.msra.mxu0 0.0
  %3460 = vmatprep.subr.mxu0 0.0
  %3461 = vmatpush1.msra.mxu0 0.0
  %3462 = vmatprep.subr.mxu0 0.0
  %3463 = vmatpush1.msra.mxu0 0.0
  %3464 = vmatprep.subr.mxu0 0.0
  %3465 = vmatpush1.msra.mxu0 0.0
  %3466 = vmatprep.subr.mxu0 0.0
  %3467 = vmatpush1.msra.mxu0 0.0
  %3468 = vmatprep.subr.mxu0 0.0
  %3469 = vmatpush1.msra.mxu0 0.0
  %3470 = vmatprep.subr.mxu0 0.0
  %3471 = vmatpush1.msra.mxu0 0.0
  %3472 = vmatprep.subr.mxu0 0.0
  %3473 = vmatpush1.msra.mxu0 0.0
  %3474 = vmatprep.subr.mxu0 0.0
  %3475 = vmatpush1.msra.mxu0 0.0
  %3476 = vmatprep.mubr.f32.mxu0 0.0
  %3477 = vmatmul.mubr.f32.gmra.mrb[0].mxu0 %v3410
  %v3478 = vpop.f32.mrb[0].mxu0
  %v3479 = vadd.f32 0.0, %v3478
  %v3480 = vpop.f32.mrb[0].mxu0
  %3481 = vdwg.mxu0
  %3482 = vrot.lane.b32.xlu0 %v2319, 64
  %v3483 = vpop.permute.xlu0 %3482
  %v3486 = vsel %vm505, %v3023, 0
  %3488 = vmatprep.subr.mxu0 0.0
  %3489 = vmatpush1.msra.mxu0 %v3483
  %3490 = vmatprep.subr.mxu0 0.0
  %3491 = vmatpush1.msra.mxu0 0.0
  %3492 = vmatprep.subr.mxu0 0.0
  %3493 = vmatpush1.msra.mxu0 0.0
  %3494 = vmatprep.subr.mxu0 0.0
  %3495 = vmatpush1.msra.mxu0 0.0
  %3496 = vmatprep.subr.mxu0 0.0
  %3497 = vmatpush1.msra.mxu0 0.0
  %3498 = vmatprep.subr.mxu0 0.0
  %3499 = vmatpush1.msra.mxu0 0.0
  %3500 = vmatprep.subr.mxu0 0.0
  %3501 = vmatpush1.msra.mxu0 0.0
  %3502 = vmatprep.subr.mxu0 0.0
  %3503 = vmatpush1.msra.mxu0 0.0
  %3504 = vmatprep.subr.mxu0 0.0
  %3505 = vmatpush1.msra.mxu0 0.0
  %3506 = vmatprep.subr.mxu0 0.0
  %3507 = vmatpush1.msra.mxu0 0.0
  %3508 = vmatprep.subr.mxu0 0.0
  %3509 = vmatpush1.msra.mxu0 0.0
  %3510 = vmatprep.subr.mxu0 0.0
  %3511 = vmatpush1.msra.mxu0 0.0
  %3512 = vmatprep.subr.mxu0 0.0
  %3513 = vmatpush1.msra.mxu0 0.0
  %3514 = vmatprep.subr.mxu0 0.0
  %3515 = vmatpush1.msra.mxu0 0.0
  %3516 = vmatprep.subr.mxu0 0.0
  %3517 = vmatpush1.msra.mxu0 0.0
  %3518 = vmatprep.subr.mxu0 0.0
  %3519 = vmatpush1.msra.mxu0 0.0
  %3520 = vmatprep.subr.mxu0 0.0
  %3521 = vmatpush1.msra.mxu0 0.0
  %3522 = vmatprep.subr.mxu0 0.0
  %3523 = vmatpush1.msra.mxu0 0.0
  %3524 = vmatprep.subr.mxu0 0.0
  %3525 = vmatpush1.msra.mxu0 0.0
  %3526 = vmatprep.subr.mxu0 0.0
  %3527 = vmatpush1.msra.mxu0 0.0
  %3528 = vmatprep.subr.mxu0 0.0
  %3529 = vmatpush1.msra.mxu0 0.0
  %3530 = vmatprep.subr.mxu0 0.0
  %3531 = vmatpush1.msra.mxu0 0.0
  %3532 = vmatprep.subr.mxu0 0.0
  %3533 = vmatpush1.msra.mxu0 0.0
  %3534 = vmatprep.subr.mxu0 0.0
  %3535 = vmatpush1.msra.mxu0 0.0
  %3536 = vmatprep.subr.mxu0 0.0
  %3537 = vmatpush1.msra.mxu0 0.0
  %3538 = vmatprep.subr.mxu0 0.0
  %3539 = vmatpush1.msra.mxu0 0.0
  %3540 = vmatprep.subr.mxu0 0.0
  %3541 = vmatpush1.msra.mxu0 0.0
  %3542 = vmatprep.subr.mxu0 0.0
  %3543 = vmatpush1.msra.mxu0 0.0
  %3544 = vmatprep.subr.mxu0 0.0
  %3545 = vmatpush1.msra.mxu0 0.0
  %3546 = vmatprep.subr.mxu0 0.0
  %3547 = vmatpush1.msra.mxu0 0.0
  %3548 = vmatprep.subr.mxu0 0.0
  %3549 = vmatpush1.msra.mxu0 0.0
  %3550 = vmatprep.subr.mxu0 0.0
  %3551 = vmatpush1.msra.mxu0 0.0
  %3552 = vmatprep.mubr.f32.mxu0 0.0
  %3553 = vmatmul.mubr.f32.gmra.mrb[0].mxu0 %v3486
  %v3554 = vpop.f32.mrb[0].mxu0
  %v3555 = vadd.f32 0.0, %v3554
  %v3556 = vpop.f32.mrb[0].mxu0
  %3557 = vdwg.mxu0
  %3558 = vrot.lane.b32.xlu0 %v2321, 64
  %v3559 = vpop.permute.xlu0 %3558
  %v3562 = vsel %vm505, %v3025, 0
  %3564 = vmatprep.subr.mxu0 0.0
  %3565 = vmatpush1.msra.mxu0 %v3559
  %3566 = vmatprep.subr.mxu0 0.0
  %3567 = vmatpush1.msra.mxu0 0.0
  %3568 = vmatprep.subr.mxu0 0.0
  %3569 = vmatpush1.msra.mxu0 0.0
  %3570 = vmatprep.subr.mxu0 0.0
  %3571 = vmatpush1.msra.mxu0 0.0
  %3572 = vmatprep.subr.mxu0 0.0
  %3573 = vmatpush1.msra.mxu0 0.0
  %3574 = vmatprep.subr.mxu0 0.0
  %3575 = vmatpush1.msra.mxu0 0.0
  %3576 = vmatprep.subr.mxu0 0.0
  %3577 = vmatpush1.msra.mxu0 0.0
  %3578 = vmatprep.subr.mxu0 0.0
  %3579 = vmatpush1.msra.mxu0 0.0
  %3580 = vmatprep.subr.mxu0 0.0
  %3581 = vmatpush1.msra.mxu0 0.0
  %3582 = vmatprep.subr.mxu0 0.0
  %3583 = vmatpush1.msra.mxu0 0.0
  %3584 = vmatprep.subr.mxu0 0.0
  %3585 = vmatpush1.msra.mxu0 0.0
  %3586 = vmatprep.subr.mxu0 0.0
  %3587 = vmatpush1.msra.mxu0 0.0
  %3588 = vmatprep.subr.mxu0 0.0
  %3589 = vmatpush1.msra.mxu0 0.0
  %3590 = vmatprep.subr.mxu0 0.0
  %3591 = vmatpush1.msra.mxu0 0.0
  %3592 = vmatprep.subr.mxu0 0.0
  %3593 = vmatpush1.msra.mxu0 0.0
  %3594 = vmatprep.subr.mxu0 0.0
  %3595 = vmatpush1.msra.mxu0 0.0
  %3596 = vmatprep.subr.mxu0 0.0
  %3597 = vmatpush1.msra.mxu0 0.0
  %3598 = vmatprep.subr.mxu0 0.0
  %3599 = vmatpush1.msra.mxu0 0.0
  %3600 = vmatprep.subr.mxu0 0.0
  %3601 = vmatpush1.msra.mxu0 0.0
  %3602 = vmatprep.subr.mxu0 0.0
  %3603 = vmatpush1.msra.mxu0 0.0
  %3604 = vmatprep.subr.mxu0 0.0
  %3605 = vmatpush1.msra.mxu0 0.0
  %3606 = vmatprep.subr.mxu0 0.0
  %3607 = vmatpush1.msra.mxu0 0.0
  %3608 = vmatprep.subr.mxu0 0.0
  %3609 = vmatpush1.msra.mxu0 0.0
  %3610 = vmatprep.subr.mxu0 0.0
  %3611 = vmatpush1.msra.mxu0 0.0
  %3612 = vmatprep.subr.mxu0 0.0
  %3613 = vmatpush1.msra.mxu0 0.0
  %3614 = vmatprep.subr.mxu0 0.0
  %3615 = vmatpush1.msra.mxu0 0.0
  %3616 = vmatprep.subr.mxu0 0.0
  %3617 = vmatpush1.msra.mxu0 0.0
  %3618 = vmatprep.subr.mxu0 0.0
  %3619 = vmatpush1.msra.mxu0 0.0
  %3620 = vmatprep.subr.mxu0 0.0
  %3621 = vmatpush1.msra.mxu0 0.0
  %3622 = vmatprep.subr.mxu0 0.0
  %3623 = vmatpush1.msra.mxu0 0.0
  %3624 = vmatprep.subr.mxu0 0.0
  %3625 = vmatpush1.msra.mxu0 0.0
  %3626 = vmatprep.subr.mxu0 0.0
  %3627 = vmatpush1.msra.mxu0 0.0
  %3628 = vmatprep.mubr.f32.mxu0 0.0
  %3629 = vmatmul.mubr.f32.gmra.mrb[0].mxu0 %v3562
  %v3630 = vpop.f32.mrb[0].mxu0
  %v3631 = vadd.f32 0.0, %v3630
  %v3632 = vpop.f32.mrb[0].mxu0
  %3633 = vdwg.mxu0
  %3636 = vrot.lane.b32.xlu0 %v3251, 8
  %v3637 = vpop.permute.xlu0 %3636
  %3638 = vrot.lane.b32.xlu0 %v3327, 8
  %v3639 = vpop.permute.xlu0 %3638
  %3644 = vrot.lane.b32.xlu0 %v3403, 16
  %v3645 = vpop.permute.xlu0 %3644
  %3646 = vrot.lane.b32.xlu0 %v3479, 16
  %v3647 = vpop.permute.xlu0 %3646
  %3652 = vrot.lane.b32.xlu0 %v3555, 24
  %v3653 = vpop.permute.xlu0 %3652
  %3654 = vrot.lane.b32.xlu0 %v3631, 24
  %v3655 = vpop.permute.xlu0 %3654
  %v3658 = vsel %vm505, %v3099, %v3637
  %v3659 = vsel %vm505, %v3175, %v3639
  %v3660 = vsel %vm1842, %v3658, %v3645
  %v3661 = vsel %vm1842, %v3659, %v3647
  %v3662 = vsel %vm1845, %v3660, %v3653
  %v3663 = vsel %vm1845, %v3661, %v3655
  %v3664 = vld [vmem:[%s4 + $0x28] sm:$0xff]
  %v3665 = vld [vmem:[%s4 + $0x70] sm:$0xff]
  %v3666 = vld [vmem:[%s4 + $0xb8] sm:$0xff]
  %v3667 = vld [vmem:[%s4 + $0x100] sm:$0xff]
  %v3668 = vlaneseq
  %v3669 = vshrl.u32 %v3668, 7
  %v3670 = vsub.s32 7, %v3669
  %v3671 = vrot.slane %v24, %v3670
  %v3673 = vsel %vm133, %v3662, 0
  %v3676 = vsel %vm133, %v3663, 0
  %3678 = vmatprep.subr.mxu0 0.0
  %3679 = vmatpush1.msra.mxu0 %v3664
  %3680 = vmatprep.subr.mxu0 0.0
  %3681 = vmatpush1.msra.mxu0 %v3665
  %3682 = vmatprep.subr.mxu0 0.0
  %3683 = vmatpush1.msra.mxu0 %v3666
  %3684 = vmatprep.subr.mxu0 0.0
  %3685 = vmatpush1.msra.mxu0 %v3667
  %3686 = vmatprep.subr.mxu0 0.0
  %3687 = vmatpush1.msra.mxu0 0.0
  %3688 = vmatprep.subr.mxu0 0.0
  %3689 = vmatpush1.msra.mxu0 0.0
  %3690 = vmatprep.subr.mxu0 0.0
  %3691 = vmatpush1.msra.mxu0 0.0
  %3692 = vmatprep.subr.mxu0 0.0
  %3693 = vmatpush1.msra.mxu0 0.0
  %3694 = vmatprep.subr.mxu0 0.0
  %3695 = vmatpush1.msra.mxu0 0.0
  %3696 = vmatprep.subr.mxu0 0.0
  %3697 = vmatpush1.msra.mxu0 0.0
  %3698 = vmatprep.subr.mxu0 0.0
  %3699 = vmatpush1.msra.mxu0 0.0
  %3700 = vmatprep.subr.mxu0 0.0
  %3701 = vmatpush1.msra.mxu0 0.0
  %3702 = vmatprep.subr.mxu0 0.0
  %3703 = vmatpush1.msra.mxu0 0.0
  %3704 = vmatprep.subr.mxu0 0.0
  %3705 = vmatpush1.msra.mxu0 0.0
  %3706 = vmatprep.subr.mxu0 0.0
  %3707 = vmatpush1.msra.mxu0 0.0
  %3708 = vmatprep.subr.mxu0 0.0
  %3709 = vmatpush1.msra.mxu0 0.0
  %3710 = vmatprep.subr.mxu0 0.0
  %3711 = vmatpush1.msra.mxu0 0.0
  %3712 = vmatprep.subr.mxu0 0.0
  %3713 = vmatpush1.msra.mxu0 0.0
  %3714 = vmatprep.subr.mxu0 0.0
  %3715 = vmatpush1.msra.mxu0 0.0
  %3716 = vmatprep.subr.mxu0 0.0
  %3717 = vmatpush1.msra.mxu0 0.0
  %3718 = vmatprep.subr.mxu0 0.0
  %3719 = vmatpush1.msra.mxu0 0.0
  %3720 = vmatprep.subr.mxu0 0.0
  %3721 = vmatpush1.msra.mxu0 0.0
  %3722 = vmatprep.subr.mxu0 0.0
  %3723 = vmatpush1.msra.mxu0 0.0
  %3724 = vmatprep.subr.mxu0 0.0
  %3725 = vmatpush1.msra.mxu0 0.0
  %3726 = vmatprep.subr.mxu0 0.0
  %3727 = vmatpush1.msra.mxu0 0.0
  %3728 = vmatprep.subr.mxu0 0.0
  %3729 = vmatpush1.msra.mxu0 0.0
  %3730 = vmatprep.subr.mxu0 0.0
  %3731 = vmatpush1.msra.mxu0 0.0
  %3732 = vmatprep.subr.mxu0 0.0
  %3733 = vmatpush1.msra.mxu0 0.0
  %3734 = vmatprep.subr.mxu0 0.0
  %3735 = vmatpush1.msra.mxu0 0.0
  %3736 = vmatprep.subr.mxu0 0.0
  %3737 = vmatpush1.msra.mxu0 0.0
  %3738 = vmatprep.subr.mxu0 0.0
  %3739 = vmatpush1.msra.mxu0 0.0
  %3740 = vmatprep.subr.mxu0 0.0
  %3741 = vmatpush1.msra.mxu0 0.0
  %3742 = vmatprep.mubr.f32.mxu0 0.0
  %3743 = vmatmul.mubr.f32.gmra.mrb[0].mxu0 %v3673
  %v3744 = vpop.f32.mrb[0].mxu0
  %v3745 = vadd.f32 %v3671, %v3744
  %v3746 = vpop.f32.mrb[0].mxu0
  %3747 = vmatprep.mubr.f32.mxu0 0.0
  %3748 = vmatmul.mubr.f32.gmra.mrb[0].mxu0 %v3676
  %v3749 = vpop.f32.mrb[0].mxu0
  %v3750 = vadd.f32 %v3671, %v3749
  %v3751 = vpop.f32.mrb[0].mxu0
  %3752 = vdwg.mxu0
  %v3753 = vadd.f32 %v3745, %v2217
  %v3754 = vadd.f32 %v3750, %v2218
  %v3755 = vsel %vm133, %v3753, 0.0
  %3756 = vadd.xlane.f32.xlu0 %v3755
  %v3757 = vpop.xlane.xlu0 %3756
  %v3758 = vsel %vm133, %v3754, 0.0
  %3759 = vadd.xlane.f32.xlu0 %v3758
  %v3760 = vpop.xlane.xlu0 %3759
  %v3761 = vmul.f32 %v3757, %v140
  %v3762 = vmul.f32 %v3760, %v140
  %v3763 = vsub.f32 %v3753, %v3761
  %v3764 = vsub.f32 %v3754, %v3762
  %v3765 = vmul.f32 %v3763, %v3763
  %v3766 = vmul.f32 %v3764, %v3764
  %v3767 = vsel %vm133, %v3765, 0.0
  %3768 = vadd.xlane.f32.xlu0 %v3767
  %v3769 = vpop.xlane.xlu0 %3768
  %v3770 = vsel %vm133, %v3766, 0.0
  %3771 = vadd.xlane.f32.xlu0 %v3770
  %v3772 = vpop.xlane.xlu0 %3771
  %v3773 = vmul.f32 %v3769, %v140
  %v3774 = vmul.f32 %v3772, %v140
  %v3775 = vadd.f32 %v3773, 1e-12
  %v3776 = vadd.f32 %v3774, 1e-12
  %v3777 = vrsqrt.pop %v3775
  %v3778 = vrsqrt.pop %v3776
  %v3779 = vmul.f32 %v3763, %v3777
  %v3780 = vmul.f32 %v3764, %v3778
  %v3781 = vlaneseq
  %v3782 = vshrl.u32 %v3781, 7
  %v3783 = vsub.s32 0, %v3782
  %v3784 = vrot.slane %v25, %v3783
  %v3785 = vmul.f32 %v3779, %v3784
  %v3786 = vmul.f32 %v3780, %v3784
  %v3787 = vlaneseq
  %v3788 = vshrl.u32 %v3787, 7
  %v3789 = vsub.s32 1, %v3788
  %v3790 = vrot.slane %v25, %v3789
  %v3791 = vadd.f32 %v3785, %v3790
  %v3792 = vadd.f32 %v3786, %v3790
  %v3793 = vld [vmem:[%s4 + $0x30] sm:$0xff]
  %v3794 = vld [vmem:[%s4 + $0x78] sm:$0xff]
  %v3795 = vld [vmem:[%s4 + $0xc0] sm:$0xff]
  %v3796 = vld [vmem:[%s4 + $0x108] sm:$0xff]
  %v3797 = vlaneseq
  %v3798 = vshrl.u32 %v3797, 7
  %v3799 = vsub.s32 2, %v3798
  %v3800 = vrot.slane %v25, %v3799
  %v3802 = vsel %vm133, %v3791, 0
  %v3805 = vsel %vm133, %v3792, 0
  %3807 = vmatprep.subr.mxu0 0.0
  %3808 = vmatpush1.msra.mxu0 %v3793
  %3809 = vmatprep.subr.mxu0 0.0
  %3810 = vmatpush1.msra.mxu0 %v3794
  %3811 = vmatprep.subr.mxu0 0.0
  %3812 = vmatpush1.msra.mxu0 %v3795
  %3813 = vmatprep.subr.mxu0 0.0
  %3814 = vmatpush1.msra.mxu0 %v3796
  %3815 = vmatprep.subr.mxu0 0.0
  %3816 = vmatpush1.msra.mxu0 0.0
  %3817 = vmatprep.subr.mxu0 0.0
  %3818 = vmatpush1.msra.mxu0 0.0
  %3819 = vmatprep.subr.mxu0 0.0
  %3820 = vmatpush1.msra.mxu0 0.0
  %3821 = vmatprep.subr.mxu0 0.0
  %3822 = vmatpush1.msra.mxu0 0.0
  %3823 = vmatprep.subr.mxu0 0.0
  %3824 = vmatpush1.msra.mxu0 0.0
  %3825 = vmatprep.subr.mxu0 0.0
  %3826 = vmatpush1.msra.mxu0 0.0
  %3827 = vmatprep.subr.mxu0 0.0
  %3828 = vmatpush1.msra.mxu0 0.0
  %3829 = vmatprep.subr.mxu0 0.0
  %3830 = vmatpush1.msra.mxu0 0.0
  %3831 = vmatprep.subr.mxu0 0.0
  %3832 = vmatpush1.msra.mxu0 0.0
  %3833 = vmatprep.subr.mxu0 0.0
  %3834 = vmatpush1.msra.mxu0 0.0
  %3835 = vmatprep.subr.mxu0 0.0
  %3836 = vmatpush1.msra.mxu0 0.0
  %3837 = vmatprep.subr.mxu0 0.0
  %3838 = vmatpush1.msra.mxu0 0.0
  %3839 = vmatprep.subr.mxu0 0.0
  %3840 = vmatpush1.msra.mxu0 0.0
  %3841 = vmatprep.subr.mxu0 0.0
  %3842 = vmatpush1.msra.mxu0 0.0
  %3843 = vmatprep.subr.mxu0 0.0
  %3844 = vmatpush1.msra.mxu0 0.0
  %3845 = vmatprep.subr.mxu0 0.0
  %3846 = vmatpush1.msra.mxu0 0.0
  %3847 = vmatprep.subr.mxu0 0.0
  %3848 = vmatpush1.msra.mxu0 0.0
  %3849 = vmatprep.subr.mxu0 0.0
  %3850 = vmatpush1.msra.mxu0 0.0
  %3851 = vmatprep.subr.mxu0 0.0
  %3852 = vmatpush1.msra.mxu0 0.0
  %3853 = vmatprep.subr.mxu0 0.0
  %3854 = vmatpush1.msra.mxu0 0.0
  %3855 = vmatprep.subr.mxu0 0.0
  %3856 = vmatpush1.msra.mxu0 0.0
  %3857 = vmatprep.subr.mxu0 0.0
  %3858 = vmatpush1.msra.mxu0 0.0
  %3859 = vmatprep.subr.mxu0 0.0
  %3860 = vmatpush1.msra.mxu0 0.0
  %3861 = vmatprep.subr.mxu0 0.0
  %3862 = vmatpush1.msra.mxu0 0.0
  %3863 = vmatprep.subr.mxu0 0.0
  %3864 = vmatpush1.msra.mxu0 0.0
  %3865 = vmatprep.subr.mxu0 0.0
  %3866 = vmatpush1.msra.mxu0 0.0
  %3867 = vmatprep.subr.mxu0 0.0
  %3868 = vmatpush1.msra.mxu0 0.0
  %3869 = vmatprep.subr.mxu0 0.0
  %3870 = vmatpush1.msra.mxu0 0.0
  %3871 = vmatprep.mubr.f32.mxu0 0.0
  %3872 = vmatmul.mubr.f32.gmra.mrb[0].mxu0 %v3802
  %v3873 = vpop.f32.mrb[0].mxu0
  %v3874 = vadd.f32 %v3800, %v3873
  %v3875 = vpop.f32.mrb[0].mxu0
  %3876 = vmatprep.mubr.f32.mxu0 0.0
  %3877 = vmatmul.mubr.f32.gmra.mrb[0].mxu0 %v3805
  %v3878 = vpop.f32.mrb[0].mxu0
  %v3879 = vadd.f32 %v3800, %v3878
  %v3880 = vpop.f32.mrb[0].mxu0
  %3881 = vdwg.mxu0
  %v3882 = vmul.f32 %v3874, 0.5
  %v3883 = vmul.f32 %v3879, 0.5
  %v3884 = vmul.f32 %v3874, 0.044715
  %v3885 = vmul.f32 %v3879, 0.044715
  %v3886 = vmul.f32 %v3884, %v3874
  %v3887 = vmul.f32 %v3885, %v3879
  %v3888 = vmul.f32 %v3886, %v3874
  %v3889 = vmul.f32 %v3887, %v3879
  %v3890 = vadd.f32 %v3874, %v3888
  %v3891 = vadd.f32 %v3879, %v3889
  %v3892 = vmul.f32 %v3890, 0.7978846
  %v3893 = vmul.f32 %v3891, 0.7978846
  %v3894 = vtanh.pop %v3892
  %v3895 = vtanh.pop %v3893
  %v3896 = vadd.f32 %v3894, 1.0
  %v3897 = vadd.f32 %v3895, 1.0
  %v3898 = vmul.f32 %v3882, %v3896
  %v3899 = vmul.f32 %v3883, %v3897
  %v3900 = vld [vmem:[%s5 + $0x100] sm:$0xff]
  %v3901 = vld [vmem:[%s5 + $0x108] sm:$0xff]
  %v3902 = vld [vmem:[%s5 + $0x110] sm:$0xff]
  %v3903 = vld [vmem:[%s5 + $0x118] sm:$0xff]
  %v3904 = vld [vmem:[%s5 + $0x120] sm:$0xff]
  %v3905 = vld [vmem:[%s5 + $0x128] sm:$0xff]
  %v3906 = vld [vmem:[%s5 + $0x130] sm:$0xff]
  %v3907 = vld [vmem:[%s5 + $0x138] sm:$0xff]
  %v3908 = vld [vmem:[%s5 + $0x140] sm:$0xff]
  %v3909 = vld [vmem:[%s5 + $0x148] sm:$0xff]
  %v3910 = vld [vmem:[%s5 + $0x150] sm:$0xff]
  %v3911 = vld [vmem:[%s5 + $0x158] sm:$0xff]
  %v3912 = vld [vmem:[%s5 + $0x160] sm:$0xff]
  %v3913 = vld [vmem:[%s5 + $0x168] sm:$0xff]
  %v3914 = vld [vmem:[%s5 + $0x170] sm:$0xff]
  %v3915 = vld [vmem:[%s5 + $0x178] sm:$0xff]
  %v3916 = vlaneseq
  %v3917 = vshrl.u32 %v3916, 7
  %v3918 = vsub.s32 3, %v3917
  %v3919 = vrot.slane %v25, %v3918
  %3920 = vmatprep.subr.mxu0 0.0
  %3921 = vmatpush1.msra.mxu0 %v3900
  %3922 = vmatprep.subr.mxu0 0.0
  %3923 = vmatpush1.msra.mxu0 %v3901
  %3924 = vmatprep.subr.mxu0 0.0
  %3925 = vmatpush1.msra.mxu0 %v3902
  %3926 = vmatprep.subr.mxu0 0.0
  %3927 = vmatpush1.msra.mxu0 %v3903
  %3928 = vmatprep.subr.mxu0 0.0
  %3929 = vmatpush1.msra.mxu0 %v3904
  %3930 = vmatprep.subr.mxu0 0.0
  %3931 = vmatpush1.msra.mxu0 %v3905
  %3932 = vmatprep.subr.mxu0 0.0
  %3933 = vmatpush1.msra.mxu0 %v3906
  %3934 = vmatprep.subr.mxu0 0.0
  %3935 = vmatpush1.msra.mxu0 %v3907
  %3936 = vmatprep.subr.mxu0 0.0
  %3937 = vmatpush1.msra.mxu0 %v3908
  %3938 = vmatprep.subr.mxu0 0.0
  %3939 = vmatpush1.msra.mxu0 %v3909
  %3940 = vmatprep.subr.mxu0 0.0
  %3941 = vmatpush1.msra.mxu0 %v3910
  %3942 = vmatprep.subr.mxu0 0.0
  %3943 = vmatpush1.msra.mxu0 %v3911
  %3944 = vmatprep.subr.mxu0 0.0
  %3945 = vmatpush1.msra.mxu0 %v3912
  %3946 = vmatprep.subr.mxu0 0.0
  %3947 = vmatpush1.msra.mxu0 %v3913
  %3948 = vmatprep.subr.mxu0 0.0
  %3949 = vmatpush1.msra.mxu0 %v3914
  %3950 = vmatprep.subr.mxu0 0.0
  %3951 = vmatpush1.msra.mxu0 %v3915
  %3952 = vmatprep.subr.mxu0 0.0
  %3953 = vmatpush1.msra.mxu0 0.0
  %3954 = vmatprep.subr.mxu0 0.0
  %3955 = vmatpush1.msra.mxu0 0.0
  %3956 = vmatprep.subr.mxu0 0.0
  %3957 = vmatpush1.msra.mxu0 0.0
  %3958 = vmatprep.subr.mxu0 0.0
  %3959 = vmatpush1.msra.mxu0 0.0
  %3960 = vmatprep.subr.mxu0 0.0
  %3961 = vmatpush1.msra.mxu0 0.0
  %3962 = vmatprep.subr.mxu0 0.0
  %3963 = vmatpush1.msra.mxu0 0.0
  %3964 = vmatprep.subr.mxu0 0.0
  %3965 = vmatpush1.msra.mxu0 0.0
  %3966 = vmatprep.subr.mxu0 0.0
  %3967 = vmatpush1.msra.mxu0 0.0
  %3968 = vmatprep.subr.mxu0 0.0
  %3969 = vmatpush1.msra.mxu0 0.0
  %3970 = vmatprep.subr.mxu0 0.0
  %3971 = vmatpush1.msra.mxu0 0.0
  %3972 = vmatprep.subr.mxu0 0.0
  %3973 = vmatpush1.msra.mxu0 0.0
  %3974 = vmatprep.subr.mxu0 0.0
  %3975 = vmatpush1.msra.mxu0 0.0
  %3976 = vmatprep.subr.mxu0 0.0
  %3977 = vmatpush1.msra.mxu0 0.0
  %3978 = vmatprep.subr.mxu0 0.0
  %3979 = vmatpush1.msra.mxu0 0.0
  %3980 = vmatprep.subr.mxu0 0.0
  %3981 = vmatpush1.msra.mxu0 0.0
  %3982 = vmatprep.subr.mxu0 0.0
  %3983 = vmatpush1.msra.mxu0 0.0
  %3984 = vmatprep.mubr.f32.mxu0 0.0
  %3985 = vmatmul.mubr.f32.gmra.mrb[0].mxu0 %v3898
  %v3986 = vpop.f32.mrb[0].mxu0
  %v3987 = vadd.f32 %v3919, %v3986
  %v3988 = vpop.f32.mrb[0].mxu0
  %3989 = vmatprep.mubr.f32.mxu0 0.0
  %3990 = vmatmul.mubr.f32.gmra.mrb[0].mxu0 %v3899
  %v3991 = vpop.f32.mrb[0].mxu0
  %v3992 = vadd.f32 %v3919, %v3991
  %v3993 = vpop.f32.mrb[0].mxu0
  %3994 = vdwg.mxu0
  %v3995 = vadd.f32 %v3987, %v3791
  %v3996 = vadd.f32 %v3992, %v3792
  %v3997 = vsel %vm133, %v3995, 0.0
  %3998 = vadd.xlane.f32.xlu0 %v3997
  %v3999 = vpop.xlane.xlu0 %3998
  %v4000 = vsel %vm133, %v3996, 0.0
  %4001 = vadd.xlane.f32.xlu0 %v4000
  %v4002 = vpop.xlane.xlu0 %4001
  %v4003 = vmul.f32 %v3999, %v140
  %v4004 = vmul.f32 %v4002, %v140
  %v4005 = vsub.f32 %v3995, %v4003
  %v4006 = vsub.f32 %v3996, %v4004
  %v4007 = vmul.f32 %v4005, %v4005
  %v4008 = vmul.f32 %v4006, %v4006
  %v4009 = vsel %vm133, %v4007, 0.0
  %4010 = vadd.xlane.f32.xlu0 %v4009
  %v4011 = vpop.xlane.xlu0 %4010
  %v4012 = vsel %vm133, %v4008, 0.0
  %4013 = vadd.xlane.f32.xlu0 %v4012
  %v4014 = vpop.xlane.xlu0 %4013
  %v4015 = vmul.f32 %v4011, %v140
  %v4016 = vmul.f32 %v4014, %v140
  %v4017 = vadd.f32 %v4015, 1e-12
  %v4018 = vadd.f32 %v4016, 1e-12
  %v4019 = vrsqrt.pop %v4017
  %v4020 = vrsqrt.pop %v4018
  %v4021 = vmul.f32 %v4005, %v4019
  %v4022 = vmul.f32 %v4006, %v4020
  %v4023 = vlaneseq
  %v4024 = vshrl.u32 %v4023, 7
  %v4025 = vsub.s32 4, %v4024
  %v4026 = vrot.slane %v25, %v4025
  %v4027 = vmul.f32 %v4021, %v4026
  %v4028 = vmul.f32 %v4022, %v4026
  %v4029 = vlaneseq
  %v4030 = vshrl.u32 %v4029, 7
  %v4031 = vsub.s32 5, %v4030
  %v4032 = vrot.slane %v25, %v4031
  %v4033 = vadd.f32 %v4027, %v4032
  %v4034 = vadd.f32 %v4028, %v4032
  %v4035 = vld [vmem:[%s4 + $0x38] sm:$0xff]
  %v4036 = vld [vmem:[%s4 + $0x80] sm:$0xff]
  %v4037 = vld [vmem:[%s4 + $0xc8] sm:$0xff]
  %v4038 = vld [vmem:[%s4 + $0x110] sm:$0xff]
  %v4039 = vlaneseq
  %v4040 = vshrl.u32 %v4039, 7
  %v4041 = vsub.s32 6, %v4040
  %v4042 = vrot.slane %v25, %v4041
  %v4044 = vsel %vm133, %v4033, 0
  %v4047 = vsel %vm133, %v4034, 0
  %4049 = vmatprep.subr.mxu0 0.0
  %4050 = vmatpush1.msra.mxu0 %v4035
  %4051 = vmatprep.subr.mxu0 0.0
  %4052 = vmatpush1.msra.mxu0 %v4036
  %4053 = vmatprep.subr.mxu0 0.0
  %4054 = vmatpush1.msra.mxu0 %v4037
  %4055 = vmatprep.subr.mxu0 0.0
  %4056 = vmatpush1.msra.mxu0 %v4038
  %4057 = vmatprep.subr.mxu0 0.0
  %4058 = vmatpush1.msra.mxu0 0.0
  %4059 = vmatprep.subr.mxu0 0.0
  %4060 = vmatpush1.msra.mxu0 0.0
  %4061 = vmatprep.subr.mxu0 0.0
  %4062 = vmatpush1.msra.mxu0 0.0
  %4063 = vmatprep.subr.mxu0 0.0
  %4064 = vmatpush1.msra.mxu0 0.0
  %4065 = vmatprep.subr.mxu0 0.0
  %4066 = vmatpush1.msra.mxu0 0.0
  %4067 = vmatprep.subr.mxu0 0.0
  %4068 = vmatpush1.msra.mxu0 0.0
  %4069 = vmatprep.subr.mxu0 0.0
  %4070 = vmatpush1.msra.mxu0 0.0
  %4071 = vmatprep.subr.mxu0 0.0
  %4072 = vmatpush1.msra.mxu0 0.0
  %4073 = vmatprep.subr.mxu0 0.0
  %4074 = vmatpush1.msra.mxu0 0.0
  %4075 = vmatprep.subr.mxu0 0.0
  %4076 = vmatpush1.msra.mxu0 0.0
  %4077 = vmatprep.subr.mxu0 0.0
  %4078 = vmatpush1.msra.mxu0 0.0
  %4079 = vmatprep.subr.mxu0 0.0
  %4080 = vmatpush1.msra.mxu0 0.0
  %4081 = vmatprep.subr.mxu0 0.0
  %4082 = vmatpush1.msra.mxu0 0.0
  %4083 = vmatprep.subr.mxu0 0.0
  %4084 = vmatpush1.msra.mxu0 0.0
  %4085 = vmatprep.subr.mxu0 0.0
  %4086 = vmatpush1.msra.mxu0 0.0
  %4087 = vmatprep.subr.mxu0 0.0
  %4088 = vmatpush1.msra.mxu0 0.0
  %4089 = vmatprep.subr.mxu0 0.0
  %4090 = vmatpush1.msra.mxu0 0.0
  %4091 = vmatprep.subr.mxu0 0.0
  %4092 = vmatpush1.msra.mxu0 0.0
  %4093 = vmatprep.subr.mxu0 0.0
  %4094 = vmatpush1.msra.mxu0 0.0
  %4095 = vmatprep.subr.mxu0 0.0
  %4096 = vmatpush1.msra.mxu0 0.0
  %4097 = vmatprep.subr.mxu0 0.0
  %4098 = vmatpush1.msra.mxu0 0.0
  %4099 = vmatprep.subr.mxu0 0.0
  %4100 = vmatpush1.msra.mxu0 0.0
  %4101 = vmatprep.subr.mxu0 0.0
  %4102 = vmatpush1.msra.mxu0 0.0
  %4103 = vmatprep.subr.mxu0 0.0
  %4104 = vmatpush1.msra.mxu0 0.0
  %4105 = vmatprep.subr.mxu0 0.0
  %4106 = vmatpush1.msra.mxu0 0.0
  %4107 = vmatprep.subr.mxu0 0.0
  %4108 = vmatpush1.msra.mxu0 0.0
  %4109 = vmatprep.subr.mxu0 0.0
  %4110 = vmatpush1.msra.mxu0 0.0
  %4111 = vmatprep.subr.mxu0 0.0
  %4112 = vmatpush1.msra.mxu0 0.0
  %4113 = vmatprep.mubr.f32.mxu0 0.0
  %4114 = vmatmul.mubr.f32.gmra.mrb[0].mxu0 %v4044
  %v4115 = vpop.f32.mrb[0].mxu0
  %v4116 = vadd.f32 %v4042, %v4115
  %v4117 = vpop.f32.mrb[0].mxu0
  %4118 = vmatprep.mubr.f32.mxu0 0.0
  %4119 = vmatmul.mubr.f32.gmra.mrb[0].mxu0 %v4047
  %v4120 = vpop.f32.mrb[0].mxu0
  %v4121 = vadd.f32 %v4042, %v4120
  %v4122 = vpop.f32.mrb[0].mxu0
  %4123 = vdwg.mxu0
  %v4124 = vmul.f32 %v4116, 0.5
  %v4125 = vmul.f32 %v4121, 0.5
  %v4126 = vmul.f32 %v4116, 0.044715
  %v4127 = vmul.f32 %v4121, 0.044715
  %v4128 = vmul.f32 %v4126, %v4116
  %v4129 = vmul.f32 %v4127, %v4121
  %v4130 = vmul.f32 %v4128, %v4116
  %v4131 = vmul.f32 %v4129, %v4121
  %v4132 = vadd.f32 %v4116, %v4130
  %v4133 = vadd.f32 %v4121, %v4131
  %v4134 = vmul.f32 %v4132, 0.7978846
  %v4135 = vmul.f32 %v4133, 0.7978846
  %v4136 = vtanh.pop %v4134
  %v4137 = vtanh.pop %v4135
  %v4138 = vadd.f32 %v4136, 1.0
  %v4139 = vadd.f32 %v4137, 1.0
  %v4140 = vmul.f32 %v4124, %v4138
  %v4141 = vmul.f32 %v4125, %v4139
  %v4142 = vsel %vm133, %v4140, 0.0
  %4143 = vadd.xlane.f32.xlu0 %v4142
  %v4144 = vpop.xlane.xlu0 %4143
  %v4145 = vsel %vm133, %v4141, 0.0
  %4146 = vadd.xlane.f32.xlu0 %v4145
  %v4147 = vpop.xlane.xlu0 %4146
  %v4148 = vmul.f32 %v4144, %v140
  %v4149 = vmul.f32 %v4147, %v140
  %v4150 = vsub.f32 %v4140, %v4148
  %v4151 = vsub.f32 %v4141, %v4149
  %v4152 = vmul.f32 %v4150, %v4150
  %v4153 = vmul.f32 %v4151, %v4151
  %v4154 = vsel %vm133, %v4152, 0.0
  %4155 = vadd.xlane.f32.xlu0 %v4154
  %v4156 = vpop.xlane.xlu0 %4155
  %v4157 = vsel %vm133, %v4153, 0.0
  %4158 = vadd.xlane.f32.xlu0 %v4157
  %v4159 = vpop.xlane.xlu0 %4158
  %v4160 = vmul.f32 %v4156, %v140
  %v4161 = vmul.f32 %v4159, %v140
  %v4162 = vadd.f32 %v4160, 1e-12
  %v4163 = vadd.f32 %v4161, 1e-12
  %v4164 = vrsqrt.pop %v4162
  %v4165 = vrsqrt.pop %v4163
  %v4166 = vmul.f32 %v4150, %v4164
  %v4167 = vmul.f32 %v4151, %v4165
  %v4168 = vlaneseq
  %v4169 = vshrl.u32 %v4168, 7
  %v4170 = vsub.s32 7, %v4169
  %v4171 = vrot.slane %v25, %v4170
  %v4172 = vmul.f32 %v4166, %v4171
  %v4173 = vmul.f32 %v4167, %v4171
  %v4174 = vlaneseq
  %v4175 = vshrl.u32 %v4174, 7
  %v4176 = vsub.s32 0, %v4175
  %v4177 = vrot.slane %v26, %v4176
  %v4178 = vadd.f32 %v4172, %v4177
  %v4179 = vadd.f32 %v4173, %v4177
  %v4180 = vld [vmem:[%s4 + $0x40] sm:$0xff]
  %v4181 = vld [vmem:[%s4 + $0x88] sm:$0xff]
  %v4182 = vld [vmem:[%s4 + $0xd0] sm:$0xff]
  %v4183 = vld [vmem:[%s4 + $0x118] sm:$0xff]
  %v4184 = vlaneseq
  %v4185 = vshrl.u32 %v4184, 7
  %v4186 = vsub.s32 1, %v4185
  %v4187 = vrot.slane %v26, %v4186
  %v4189 = vsel %vm133, %v4178, 0
  %v4192 = vsel %vm133, %v4179, 0
  %4194 = vmatprep.subr.mxu0 0.0
  %4195 = vmatpush1.msra.mxu0 %v4180
  %4196 = vmatprep.subr.mxu0 0.0
  %4197 = vmatpush1.msra.mxu0 %v4181
  %4198 = vmatprep.subr.mxu0 0.0
  %4199 = vmatpush1.msra.mxu0 %v4182
  %4200 = vmatprep.subr.mxu0 0.0
  %4201 = vmatpush1.msra.mxu0 %v4183
  %4202 = vmatprep.subr.mxu0 0.0
  %4203 = vmatpush1.msra.mxu0 0.0
  %4204 = vmatprep.subr.mxu0 0.0
  %4205 = vmatpush1.msra.mxu0 0.0
  %4206 = vmatprep.subr.mxu0 0.0
  %4207 = vmatpush1.msra.mxu0 0.0
  %4208 = vmatprep.subr.mxu0 0.0
  %4209 = vmatpush1.msra.mxu0 0.0
  %4210 = vmatprep.subr.mxu0 0.0
  %4211 = vmatpush1.msra.mxu0 0.0
  %4212 = vmatprep.subr.mxu0 0.0
  %4213 = vmatpush1.msra.mxu0 0.0
  %4214 = vmatprep.subr.mxu0 0.0
  %4215 = vmatpush1.msra.mxu0 0.0
  %4216 = vmatprep.subr.mxu0 0.0
  %4217 = vmatpush1.msra.mxu0 0.0
  %4218 = vmatprep.subr.mxu0 0.0
  %4219 = vmatpush1.msra.mxu0 0.0
  %4220 = vmatprep.subr.mxu0 0.0
  %4221 = vmatpush1.msra.mxu0 0.0
  %4222 = vmatprep.subr.mxu0 0.0
  %4223 = vmatpush1.msra.mxu0 0.0
  %4224 = vmatprep.subr.mxu0 0.0
  %4225 = vmatpush1.msra.mxu0 0.0
  %4226 = vmatprep.subr.mxu0 0.0
  %4227 = vmatpush1.msra.mxu0 0.0
  %4228 = vmatprep.subr.mxu0 0.0
  %4229 = vmatpush1.msra.mxu0 0.0
  %4230 = vmatprep.subr.mxu0 0.0
  %4231 = vmatpush1.msra.mxu0 0.0
  %4232 = vmatprep.subr.mxu0 0.0
  %4233 = vmatpush1.msra.mxu0 0.0
  %4234 = vmatprep.subr.mxu0 0.0
  %4235 = vmatpush1.msra.mxu0 0.0
  %4236 = vmatprep.subr.mxu0 0.0
  %4237 = vmatpush1.msra.mxu0 0.0
  %4238 = vmatprep.subr.mxu0 0.0
  %4239 = vmatpush1.msra.mxu0 0.0
  %4240 = vmatprep.subr.mxu0 0.0
  %4241 = vmatpush1.msra.mxu0 0.0
  %4242 = vmatprep.subr.mxu0 0.0
  %4243 = vmatpush1.msra.mxu0 0.0
  %4244 = vmatprep.subr.mxu0 0.0
  %4245 = vmatpush1.msra.mxu0 0.0
  %4246 = vmatprep.subr.mxu0 0.0
  %4247 = vmatpush1.msra.mxu0 0.0
  %4248 = vmatprep.subr.mxu0 0.0
  %4249 = vmatpush1.msra.mxu0 0.0
  %4250 = vmatprep.subr.mxu0 0.0
  %4251 = vmatpush1.msra.mxu0 0.0
  %4252 = vmatprep.subr.mxu0 0.0
  %4253 = vmatpush1.msra.mxu0 0.0
  %4254 = vmatprep.subr.mxu0 0.0
  %4255 = vmatpush1.msra.mxu0 0.0
  %4256 = vmatprep.subr.mxu0 0.0
  %4257 = vmatpush1.msra.mxu0 0.0
  %4258 = vmatprep.mubr.f32.mxu0 0.0
  %4259 = vmatmul.mubr.f32.gmra.mrb[0].mxu0 %v4189
  %v4260 = vpop.f32.mrb[0].mxu0
  %v4261 = vadd.f32 %v4187, %v4260
  %v4262 = vpop.f32.mrb[0].mxu0
  %4263 = vmatprep.mubr.f32.mxu0 0.0
  %4264 = vmatmul.mubr.f32.gmra.mrb[0].mxu0 %v4192
  %v4265 = vpop.f32.mrb[0].mxu0
  %v4266 = vadd.f32 %v4187, %v4265
  %v4267 = vpop.f32.mrb[0].mxu0
  %4268 = vdwg.mxu0
  %4269 = vrot.lane.b32.xlu0 %v4033, 64
  %v4270 = vpop.permute.xlu0 %4269
  %4271 = vrot.lane.b32.xlu0 %v4034, 64
  %v4272 = vpop.permute.xlu0 %4271
  %4277 = vrot.lane.b32.xlu0 %v171, 96
  %v4278 = vpop.permute.xlu0 %4277
  %4279 = vrot.lane.b32.xlu0 %v172, 96
  %v4280 = vpop.permute.xlu0 %4279
  %vm4283 = vcmask 523264
  %v4284 = vsel %vm4283, %v4261, %v4270
  %v4285 = vsel %vm4283, %v4266, %v4272
  %vm4286 = vcmask 785408
  %v4287 = vsel %vm4286, %v4284, %v4278
  %v4288 = vsel %vm4286, %v4285, %v4280
  %4289 = vst [vmem:[%s6] sm:$0xff] %v4287
  %4290 = vst [vmem:[%s6 + $0x8] sm:$0xff] %v4288
  // Predicated region
  $region26: #{forward.1} parent=0 // pred_check
    _
  $region27: #{forward.1} parent=0 // pred_check_branch
    %4292 = sbr.rel (0) target = $region29
  $region28: #{forward.1} parent=0 // pred_region
    _
  $region29: #{forward.1} parent=0 // pred_fallthru
    _
  // Predicated region
  $region30: #{forward.1} parent=0 // pred_check
    _
  $region31: #{forward.1} parent=0 // pred_check_branch
    %4294 = sbr.rel (0) target = $region33
  $region32: #{forward.1} parent=0 // pred_region
    _
  $region33: #{forward.1} parent=0 // pred_fallthru
    _

</llo_original>
